<compile_context>
chip_gen: v6e
topology: v6e:2x2x1
jax: 0.10.0
libtpu: 0.0.40
codegen_flags: <defaults>
</compile_context>

<pallas_src>
import jax
import jax.numpy as jnp
import numpy as np
from jax.experimental import pallas as pl
from jax.experimental.pallas import tpu as pltpu

CONV_OUT = 64  # Conv1d out_channels, fixed by the PyTorch module


# ------------------------------ fused kernel ---------------------------------
def make_fused_kernel(num_layers, T, B, C_in, H):
    """conv(im2col matmul)+ReLU+maxpool(2) -> stacked LSTM -> FC head.

    Ref layout (whole-array VMEM blocks, kernel invoked once, no grid):
      x_ref      : (T*B, 3*C_in) bf16   im2col, time-major rows t*B+b
      wconv_ref  : (3*C_in, 64)  bf16
      bconv_ref  : (1, 64)       f32
      per layer l: wih_ref (D_in, 4H) bf16, whh_ref (H, 4H) bf16, b_ref (1, 4H) f32
                   (gate columns already permuted to i, f, o, g)
      wfc_ref    : (H, 128)      bf16   lane-padded FC weight
      bfc_ref    : (1, 128)      f32
      out_ref    : (B, 128)      f32
      hs_ref     : (Tp*B, H)     f32 scratch, hidden sequence of the current layer
    """
    Tp = T // 2

    def kernel(*refs):
        x_ref, wconv_ref, bconv_ref = refs[0:3]
        lstm_refs = [tuple(refs[3 + 3 * l: 6 + 3 * l]) for l in range(num_layers)]
        base = 3 + 3 * num_layers
        wfc_ref, bfc_ref = refs[base], refs[base + 1]
        out_ref = refs[base + 2]
        hs_ref = refs[base + 3]

        # ---- Conv1d(kernel=3, padding=1) as ONE im2col matmul + ReLU + pool ----
        y = jnp.dot(x_ref[...], wconv_ref[...],
                    preferred_element_type=jnp.float32) + bconv_ref[...]
        y = jnp.maximum(y, 0.0)                            # ReLU, (T*B, 64), rows t*B+b
        # MaxPool1d(2) over time pairs (2t', 2t'+1): rows come in blocks of B per t
        y2 = y.reshape(Tp, 2 * B, CONV_OUT)
        feat = jnp.maximum(y2[:, :B, :], y2[:, B:, :]).reshape(Tp * B, CONV_OUT)

        # ---- Stacked LSTM: hoisted input projection + unrolled recurrence ----
        layer_in = feat.astype(jnp.bfloat16)               # (Tp*B, D_in), rows t*B+b
        h = None
        for l, (wih_ref, whh_ref, b_ref) in enumerate(lstm_refs):
            last_layer = (l + 1 == num_layers)
            # Non-recurrent projection for the whole sequence in one bf16 matmul.
            gx = jnp.dot(layer_in, wih_ref[...],
                         preferred_element_type=jnp.float32) + b_ref[...]
            whh = whh_ref[...]                              # (H, 4H) bf16, loaded once
            h = jnp.zeros((B, H), jnp.float32)
            c = jnp.zeros((B, H), jnp.float32)
            for t in range(Tp):                             # static unrolled (Tp small)
                gates = gx[t * B:(t + 1) * B, :] + jnp.dot(
                    h.astype(jnp.bfloat16), whh,
                    preferred_element_type=jnp.float32)
                # gate columns ordered (i, f, o, g): one sigmoid, one tanh per step
                act = jax.nn.sigmoid(gates[:, :3 * H])      # (B, 3H)
                g_g = jnp.tanh(gates[:, 3 * H:])            # (B, H)
                c = act[:, H:2 * H] * c + act[:, :H] * g_g
                h = act[:, 2 * H:3 * H] * jnp.tanh(c)
                if not last_layer:
                    hs_ref[t * B:(t + 1) * B, :] = h        # sublane-aligned store
            if not last_layer:
                layer_in = hs_ref[...].astype(jnp.bfloat16)

        # ---- FC head on the last timestep of the last layer (lane-dense) ----
        out_ref[...] = jnp.dot(h.astype(jnp.bfloat16), wfc_ref[...],
                               preferred_element_type=jnp.float32) + bfc_ref[...]

    return kernel


# --------------------------------- wrapper -----------------------------------
def _reorder_gate_cols(a, H):
    """Permute trailing 4H columns from PyTorch order (i,f,g,o) to (i,f,o,g)."""
    return jnp.concatenate(
        [a[..., :2 * H], a[..., 3 * H:4 * H], a[..., 2 * H:3 * H]], axis=-1)


def conv_lstm_forward(x, params, num_classes):
    """x: (B, T, input_size) batch-first, as in the PyTorch module."""
    B, T, C = x.shape
    assert T % 2 == 0, "MaxPool1d(2) path assumes even sequence length"
    H = params["lstm"][0][1].shape[0]
    assert H % 128 == 0, "gate slicing assumes hidden_size is a multiple of 128"
    L = len(params["lstm"])
    Bp = ((B + 7) // 8) * 8                                # pad batch to sublane tile
    O_PAD = 128                                            # lane-dense head output
    Tp = T // 2

    # im2col in the wrapper: time-major, zero-pad time (conv padding=1) and batch
    x_tm = jnp.transpose(x, (1, 0, 2)).astype(jnp.float32)          # (T, B, C)
    x_tm = jnp.pad(x_tm, ((1, 1), (0, Bp - B), (0, 0)))             # (T+2, Bp, C)
    x_i2c = jnp.concatenate(
        [x_tm[0:T], x_tm[1:T + 1], x_tm[2:T + 2]], axis=-1)         # (T, Bp, 3C)
    x_i2c = x_i2c.reshape(T * Bp, 3 * C).astype(jnp.bfloat16)

    w_conv = params["w_conv"].reshape(3 * C, CONV_OUT).astype(jnp.bfloat16)
    b_conv = params["b_conv"]

    w_fc_p = jnp.pad(params["w_fc"],
                     ((0, 0), (0, O_PAD - num_classes))).astype(jnp.bfloat16)
    b_fc_p = jnp.pad(params["b_fc"], ((0, 0), (0, O_PAD - num_classes)))

    inputs = [x_i2c, w_conv, b_conv]
    for (wih_t, whh_t, b) in params["lstm"]:
        inputs.append(_reorder_gate_cols(wih_t, H).astype(jnp.bfloat16))
        inputs.append(_reorder_gate_cols(whh_t, H).astype(jnp.bfloat16))
        inputs.append(_reorder_gate_cols(b, H))
    inputs.extend([w_fc_p, b_fc_p])

    kernel = make_fused_kernel(num_layers=L, T=T, B=Bp, C_in=C, H=H)
    out = pl.pallas_call(
        kernel,
        out_shape=jax.ShapeDtypeStruct((Bp, O_PAD), jnp.float32),
        scratch_shapes=[pltpu.VMEM((Tp * Bp, H), jnp.float32)],
    )(*inputs)
    return out[:B, :num_classes]


# ------------------------------ params / reference ---------------------------
def init_params(key, input_size, hidden, num_layers, num_classes):
    p = {}
    kc = 1.0 / np.sqrt(input_size * 3)
    key, k1, k2 = jax.random.split(key, 3)
    # wconv[k, c, o] corresponds to PyTorch conv weight[o, c, k]
    p["w_conv"] = jax.random.uniform(k1, (3, input_size, CONV_OUT), jnp.float32, -kc, kc)
    p["b_conv"] = jax.random.uniform(k2, (1, CONV_OUT), jnp.float32, -kc, kc)

    kh = 1.0 / np.sqrt(hidden)
    p["lstm"] = []
    for layer in range(num_layers):
        d_in = CONV_OUT if layer == 0 else hidden
        key, k1, k2, k3, k4 = jax.random.split(key, 5)
        w_ih = jax.random.uniform(k1, (4 * hidden, d_in), jnp.float32, -kh, kh)
        w_hh = jax.random.uniform(k2, (4 * hidden, hidden), jnp.float32, -kh, kh)
        b_ih = jax.random.uniform(k3, (4 * hidden,), jnp.float32, -kh, kh)
        b_hh = jax.random.uniform(k4, (4 * hidden,), jnp.float32, -kh, kh)
        # stored in PyTorch gate order (i, f, g, o); kernel wrapper reorders
        p["lstm"].append((w_ih.T, w_hh.T, (b_ih + b_hh).reshape(1, 4 * hidden)))

    key, k1, k2 = jax.random.split(key, 3)
    p["w_fc"] = jax.random.uniform(k1, (hidden, num_classes), jnp.float32, -kh, kh)
    p["b_fc"] = jax.random.uniform(k2, (1, num_classes), jnp.float32, -kh, kh)
    return p


def ref_forward(x, params, num_classes):
    """Pure-JAX reference matching the PyTorch ConvLSTM forward."""
    B, T, C = x.shape
    H = params["lstm"][0][1].shape[0]
    xp = jnp.pad(x.astype(jnp.float32), ((0, 0), (1, 1), (0, 0)))   # conv padding=1
    y = params["b_conv"]
    for k in range(3):
        y = y + jnp.einsum("btc,co->bto", xp[:, k:k + T, :], params["w_conv"][k])
    y = jnp.maximum(y, 0.0)                                          # ReLU, (B, T, 64)
    Tp = T // 2
    y = y.reshape(B, Tp, 2, CONV_OUT).max(axis=2)                    # MaxPool1d(2)
    h_seq = jnp.transpose(y, (1, 0, 2))                              # (Tp, B, 64)
    for (wih_t, whh_t, b) in params["lstm"]:
        def step(carry, x_t, wih_t=wih_t, whh_t=whh_t, b=b):
            h, c = carry
            g = x_t @ wih_t + h @ whh_t + b
            i, f, gg, o = jnp.split(g, 4, axis=-1)                   # PyTorch order
            c = jax.nn.sigmoid(f) * c + jax.nn.sigmoid(i) * jnp.tanh(gg)
            h = jax.nn.sigmoid(o) * jnp.tanh(c)
            return (h, c), h
        (_, _), h_seq = jax.lax.scan(
            step, (jnp.zeros((B, H)), jnp.zeros((B, H))), h_seq)
    h_last = h_seq[-1]
    return h_last @ params["w_fc"] + params["b_fc"]


# ----------------------------------- main -------------------------------------
if __name__ == "__main__":
    B, T, IN_SIZE, HIDDEN, CLASSES, LAYERS = 4, 16, 16, 128, 4, 2

    key = jax.random.PRNGKey(0)
    key, kx = jax.random.split(key)
    x = jax.random.normal(kx, (B, T, IN_SIZE), jnp.float32)   # (batch, seq, input_size)
    params = init_params(key, IN_SIZE, HIDDEN, LAYERS, CLASSES)

    out = jax.block_until_ready(conv_lstm_forward(x, params, CLASSES))
    assert out.shape == (B, CLASSES) and out.dtype == jnp.float32

    ref = jax.block_until_ready(ref_forward(x, params, CLASSES))
    # bf16 MXU operands through a 2-layer, 8-step recurrence: relaxed tolerance
    np.testing.assert_allclose(np.asarray(out), np.asarray(ref), rtol=3e-2, atol=3e-2)

    print("KERNEL_OK")
</pallas_src>

<mosaic_0001>
module attributes {stable_mosaic.version = 11 : i64} {
  func.func @kernel(%arg0: memref<128x48xbf16, #tpu.memory_space<vmem>>, %arg1: memref<48x64xbf16, #tpu.memory_space<vmem>>, %arg2: memref<1x64xf32, #tpu.memory_space<vmem>>, %arg3: memref<64x512xbf16, #tpu.memory_space<vmem>>, %arg4: memref<128x512xbf16, #tpu.memory_space<vmem>>, %arg5: memref<1x512xf32, #tpu.memory_space<vmem>>, %arg6: memref<128x512xbf16, #tpu.memory_space<vmem>>, %arg7: memref<128x512xbf16, #tpu.memory_space<vmem>>, %arg8: memref<1x512xf32, #tpu.memory_space<vmem>>, %arg9: memref<128x128xbf16, #tpu.memory_space<vmem>>, %arg10: memref<1x128xf32, #tpu.memory_space<vmem>>, %arg11: memref<8x128xf32, #tpu.memory_space<vmem>>, %arg12: memref<64x128xf32, #tpu.memory_space<vmem>>) attributes {dimension_semantics = [], scalar_prefetch = 0 : i64, scratch_operands = 1 : i64, tpu.core_type = #tpu.core_type<tc>} {
    %c0 = arith.constant 0 : index
    %c0_0 = arith.constant 0 : index
    %0 = vector.load %arg0[%c0, %c0_0] : memref<128x48xbf16, #tpu.memory_space<vmem>>, vector<128x48xbf16>
    %c0_1 = arith.constant 0 : index
    %c0_2 = arith.constant 0 : index
    %1 = vector.load %arg1[%c0_1, %c0_2] : memref<48x64xbf16, #tpu.memory_space<vmem>>, vector<48x64xbf16>
    %cst = arith.constant dense<0.000000e+00> : vector<128x64xf32>
    %2 = tpu.matmul %0, %1, %cst {dimension_numbers = #tpu.dot_dimension_numbers<[1], [0], [0], [1], [0, 0, 1, 1], [], []>} : vector<128x48xbf16>, vector<48x64xbf16>, vector<128x64xf32> -> vector<128x64xf32>
    %c0_3 = arith.constant 0 : index
    %c0_4 = arith.constant 0 : index
    %3 = vector.load %arg2[%c0_3, %c0_4] : memref<1x64xf32, #tpu.memory_space<vmem>>, vector<1x64xf32>
    %4 = vector.broadcast %3 : vector<1x64xf32> to vector<128x64xf32>
    %5 = arith.addf %2, %4 : vector<128x64xf32>
    %cst_5 = arith.constant 0.000000e+00 : f32
    %6 = vector.broadcast %cst_5 : f32 to vector<128x64xf32>
    %7 = arith.maximumf %5, %6 : vector<128x64xf32>
    %8 = vector.shape_cast %7 : vector<128x64xf32> to vector<8x16x64xf32>
    %9 = vector.extract_strided_slice %8 {offsets = [0, 0, 0], sizes = [8, 8, 64], strides = [1, 1, 1]} : vector<8x16x64xf32> to vector<8x8x64xf32>
    %10 = vector.extract_strided_slice %8 {offsets = [0, 8, 0], sizes = [8, 8, 64], strides = [1, 1, 1]} : vector<8x16x64xf32> to vector<8x8x64xf32>
    %11 = arith.maximumf %9, %10 : vector<8x8x64xf32>
    %12 = vector.shape_cast %11 : vector<8x8x64xf32> to vector<64x64xf32>
    %13 = arith.truncf %12 : vector<64x64xf32> to vector<64x64xbf16>
    %c0_6 = arith.constant 0 : index
    %c0_7 = arith.constant 0 : index
    %14 = vector.load %arg3[%c0_6, %c0_7] : memref<64x512xbf16, #tpu.memory_space<vmem>>, vector<64x512xbf16>
    %cst_8 = arith.constant dense<0.000000e+00> : vector<64x512xf32>
    %15 = tpu.matmul %13, %14, %cst_8 {dimension_numbers = #tpu.dot_dimension_numbers<[1], [0], [0], [1], [0, 0, 1, 1], [], []>} : vector<64x64xbf16>, vector<64x512xbf16>, vector<64x512xf32> -> vector<64x512xf32>
    %c0_9 = arith.constant 0 : index
    %c0_10 = arith.constant 0 : index
    %16 = vector.load %arg5[%c0_9, %c0_10] : memref<1x512xf32, #tpu.memory_space<vmem>>, vector<1x512xf32>
    %17 = vector.broadcast %16 : vector<1x512xf32> to vector<64x512xf32>
    %18 = arith.addf %15, %17 : vector<64x512xf32>
    %c0_11 = arith.constant 0 : index
    %c0_12 = arith.constant 0 : index
    %19 = vector.load %arg4[%c0_11, %c0_12] : memref<128x512xbf16, #tpu.memory_space<vmem>>, vector<128x512xbf16>
    %cst_13 = arith.constant 0.000000e+00 : f32
    %20 = vector.broadcast %cst_13 : f32 to vector<8x128xf32>
    %cst_14 = arith.constant 0.000000e+00 : f32
    %21 = vector.broadcast %cst_14 : f32 to vector<8x128xf32>
    %22 = vector.extract_strided_slice %18 {offsets = [0, 0], sizes = [8, 512], strides = [1, 1]} : vector<64x512xf32> to vector<8x512xf32>
    %23 = arith.truncf %20 : vector<8x128xf32> to vector<8x128xbf16>
    %cst_15 = arith.constant dense<0.000000e+00> : vector<8x512xf32>
    %24 = tpu.matmul %23, %19, %cst_15 {dimension_numbers = #tpu.dot_dimension_numbers<[1], [0], [0], [1], [0, 0, 1, 1], [], []>} : vector<8x128xbf16>, vector<128x512xbf16>, vector<8x512xf32> -> vector<8x512xf32>
    %25 = arith.addf %22, %24 : vector<8x512xf32>
    %26 = vector.extract_strided_slice %25 {offsets = [0, 0], sizes = [8, 384], strides = [1, 1]} : vector<8x512xf32> to vector<8x384xf32>
    %27 = arith.negf %26 : vector<8x384xf32>
    %28 = math.exp %27 : vector<8x384xf32>
    %cst_16 = arith.constant 1.000000e+00 : f32
    %29 = vector.broadcast %cst_16 : f32 to vector<8x384xf32>
    %30 = arith.addf %29, %28 : vector<8x384xf32>
    %31 = arith.divf %29, %30 : vector<8x384xf32>
    %32 = vector.extract_strided_slice %25 {offsets = [0, 384], sizes = [8, 128], strides = [1, 1]} : vector<8x512xf32> to vector<8x128xf32>
    %33 = math.tanh %32 : vector<8x128xf32>
    %34 = vector.extract_strided_slice %31 {offsets = [0, 128], sizes = [8, 128], strides = [1, 1]} : vector<8x384xf32> to vector<8x128xf32>
    %35 = arith.mulf %34, %21 : vector<8x128xf32>
    %36 = vector.extract_strided_slice %31 {offsets = [0, 0], sizes = [8, 128], strides = [1, 1]} : vector<8x384xf32> to vector<8x128xf32>
    %37 = arith.mulf %36, %33 : vector<8x128xf32>
    %38 = arith.addf %35, %37 : vector<8x128xf32>
    %39 = vector.extract_strided_slice %31 {offsets = [0, 256], sizes = [8, 128], strides = [1, 1]} : vector<8x384xf32> to vector<8x128xf32>
    %40 = math.tanh %38 : vector<8x128xf32>
    %41 = arith.mulf %39, %40 : vector<8x128xf32>
    %c0_17 = arith.constant 0 : index
    %c0_18 = arith.constant 0 : index
    %42 = vector.load %arg12[%c0_17, %c0_18] : memref<64x128xf32, #tpu.memory_space<vmem>>, vector<8x128xf32>
    tpu.vector_store %arg12[%c0_17, %c0_18], %41 {strides = array<i32>} : memref<64x128xf32, #tpu.memory_space<vmem>>, vector<8x128xf32>,
    %43 = vector.extract_strided_slice %18 {offsets = [8, 0], sizes = [8, 512], strides = [1, 1]} : vector<64x512xf32> to vector<8x512xf32>
    %44 = arith.truncf %41 : vector<8x128xf32> to vector<8x128xbf16>
    %cst_19 = arith.constant dense<0.000000e+00> : vector<8x512xf32>
    %45 = tpu.matmul %44, %19, %cst_19 {dimension_numbers = #tpu.dot_dimension_numbers<[1], [0], [0], [1], [0, 0, 1, 1], [], []>} : vector<8x128xbf16>, vector<128x512xbf16>, vector<8x512xf32> -> vector<8x512xf32>
    %46 = arith.addf %43, %45 : vector<8x512xf32>
    %47 = vector.extract_strided_slice %46 {offsets = [0, 0], sizes = [8, 384], strides = [1, 1]} : vector<8x512xf32> to vector<8x384xf32>
    %48 = arith.negf %47 : vector<8x384xf32>
    %49 = math.exp %48 : vector<8x384xf32>
    %cst_20 = arith.constant 1.000000e+00 : f32
    %50 = vector.broadcast %cst_20 : f32 to vector<8x384xf32>
    %51 = arith.addf %50, %49 : vector<8x384xf32>
    %52 = arith.divf %50, %51 : vector<8x384xf32>
    %53 = vector.extract_strided_slice %46 {offsets = [0, 384], sizes = [8, 128], strides = [1, 1]} : vector<8x512xf32> to vector<8x128xf32>
    %54 = math.tanh %53 : vector<8x128xf32>
    %55 = vector.extract_strided_slice %52 {offsets = [0, 128], sizes = [8, 128], strides = [1, 1]} : vector<8x384xf32> to vector<8x128xf32>
    %56 = arith.mulf %55, %38 : vector<8x128xf32>
    %57 = vector.extract_strided_slice %52 {offsets = [0, 0], sizes = [8, 128], strides = [1, 1]} : vector<8x384xf32> to vector<8x128xf32>
    %58 = arith.mulf %57, %54 : vector<8x128xf32>
    %59 = arith.addf %56, %58 : vector<8x128xf32>
    %60 = vector.extract_strided_slice %52 {offsets = [0, 256], sizes = [8, 128], strides = [1, 1]} : vector<8x384xf32> to vector<8x128xf32>
    %61 = math.tanh %59 : vector<8x128xf32>
    %62 = arith.mulf %60, %61 : vector<8x128xf32>
    %c8 = arith.constant 8 : index
    %c0_21 = arith.constant 0 : index
    %63 = vector.load %arg12[%c8, %c0_21] : memref<64x128xf32, #tpu.memory_space<vmem>>, vector<8x128xf32>
    tpu.vector_store %arg12[%c8, %c0_21], %62 {strides = array<i32>} : memref<64x128xf32, #tpu.memory_space<vmem>>, vector<8x128xf32>,
    %64 = vector.extract_strided_slice %18 {offsets = [16, 0], sizes = [8, 512], strides = [1, 1]} : vector<64x512xf32> to vector<8x512xf32>
    %65 = arith.truncf %62 : vector<8x128xf32> to vector<8x128xbf16>
    %cst_22 = arith.constant dense<0.000000e+00> : vector<8x512xf32>
    %66 = tpu.matmul %65, %19, %cst_22 {dimension_numbers = #tpu.dot_dimension_numbers<[1], [0], [0], [1], [0, 0, 1, 1], [], []>} : vector<8x128xbf16>, vector<128x512xbf16>, vector<8x512xf32> -> vector<8x512xf32>
    %67 = arith.addf %64, %66 : vector<8x512xf32>
    %68 = vector.extract_strided_slice %67 {offsets = [0, 0], sizes = [8, 384], strides = [1, 1]} : vector<8x512xf32> to vector<8x384xf32>
    %69 = arith.negf %68 : vector<8x384xf32>
    %70 = math.exp %69 : vector<8x384xf32>
    %cst_23 = arith.constant 1.000000e+00 : f32
    %71 = vector.broadcast %cst_23 : f32 to vector<8x384xf32>
    %72 = arith.addf %71, %70 : vector<8x384xf32>
    %73 = arith.divf %71, %72 : vector<8x384xf32>
    %74 = vector.extract_strided_slice %67 {offsets = [0, 384], sizes = [8, 128], strides = [1, 1]} : vector<8x512xf32> to vector<8x128xf32>
    %75 = math.tanh %74 : vector<8x128xf32>
    %76 = vector.extract_strided_slice %73 {offsets = [0, 128], sizes = [8, 128], strides = [1, 1]} : vector<8x384xf32> to vector<8x128xf32>
    %77 = arith.mulf %76, %59 : vector<8x128xf32>
    %78 = vector.extract_strided_slice %73 {offsets = [0, 0], sizes = [8, 128], strides = [1, 1]} : vector<8x384xf32> to vector<8x128xf32>
    %79 = arith.mulf %78, %75 : vector<8x128xf32>
    %80 = arith.addf %77, %79 : vector<8x128xf32>
    %81 = vector.extract_strided_slice %73 {offsets = [0, 256], sizes = [8, 128], strides = [1, 1]} : vector<8x384xf32> to vector<8x128xf32>
    %82 = math.tanh %80 : vector<8x128xf32>
    %83 = arith.mulf %81, %82 : vector<8x128xf32>
    %c16 = arith.constant 16 : index
    %c0_24 = arith.constant 0 : index
    %84 = vector.load %arg12[%c16, %c0_24] : memref<64x128xf32, #tpu.memory_space<vmem>>, vector<8x128xf32>
    tpu.vector_store %arg12[%c16, %c0_24], %83 {strides = array<i32>} : memref<64x128xf32, #tpu.memory_space<vmem>>, vector<8x128xf32>,
    %85 = vector.extract_strided_slice %18 {offsets = [24, 0], sizes = [8, 512], strides = [1, 1]} : vector<64x512xf32> to vector<8x512xf32>
    %86 = arith.truncf %83 : vector<8x128xf32> to vector<8x128xbf16>
    %cst_25 = arith.constant dense<0.000000e+00> : vector<8x512xf32>
    %87 = tpu.matmul %86, %19, %cst_25 {dimension_numbers = #tpu.dot_dimension_numbers<[1], [0], [0], [1], [0, 0, 1, 1], [], []>} : vector<8x128xbf16>, vector<128x512xbf16>, vector<8x512xf32> -> vector<8x512xf32>
    %88 = arith.addf %85, %87 : vector<8x512xf32>
    %89 = vector.extract_strided_slice %88 {offsets = [0, 0], sizes = [8, 384], strides = [1, 1]} : vector<8x512xf32> to vector<8x384xf32>
    %90 = arith.negf %89 : vector<8x384xf32>
    %91 = math.exp %90 : vector<8x384xf32>
    %cst_26 = arith.constant 1.000000e+00 : f32
    %92 = vector.broadcast %cst_26 : f32 to vector<8x384xf32>
    %93 = arith.addf %92, %91 : vector<8x384xf32>
    %94 = arith.divf %92, %93 : vector<8x384xf32>
    %95 = vector.extract_strided_slice %88 {offsets = [0, 384], sizes = [8, 128], strides = [1, 1]} : vector<8x512xf32> to vector<8x128xf32>
    %96 = math.tanh %95 : vector<8x128xf32>
    %97 = vector.extract_strided_slice %94 {offsets = [0, 128], sizes = [8, 128], strides = [1, 1]} : vector<8x384xf32> to vector<8x128xf32>
    %98 = arith.mulf %97, %80 : vector<8x128xf32>
    %99 = vector.extract_strided_slice %94 {offsets = [0, 0], sizes = [8, 128], strides = [1, 1]} : vector<8x384xf32> to vector<8x128xf32>
    %100 = arith.mulf %99, %96 : vector<8x128xf32>
    %101 = arith.addf %98, %100 : vector<8x128xf32>
    %102 = vector.extract_strided_slice %94 {offsets = [0, 256], sizes = [8, 128], strides = [1, 1]} : vector<8x384xf32> to vector<8x128xf32>
    %103 = math.tanh %101 : vector<8x128xf32>
    %104 = arith.mulf %102, %103 : vector<8x128xf32>
    %c24 = arith.constant 24 : index
    %c0_27 = arith.constant 0 : index
    %105 = vector.load %arg12[%c24, %c0_27] : memref<64x128xf32, #tpu.memory_space<vmem>>, vector<8x128xf32>
    tpu.vector_store %arg12[%c24, %c0_27], %104 {strides = array<i32>} : memref<64x128xf32, #tpu.memory_space<vmem>>, vector<8x128xf32>,
    %106 = vector.extract_strided_slice %18 {offsets = [32, 0], sizes = [8, 512], strides = [1, 1]} : vector<64x512xf32> to vector<8x512xf32>
    %107 = arith.truncf %104 : vector<8x128xf32> to vector<8x128xbf16>
    %cst_28 = arith.constant dense<0.000000e+00> : vector<8x512xf32>
    %108 = tpu.matmul %107, %19, %cst_28 {dimension_numbers = #tpu.dot_dimension_numbers<[1], [0], [0], [1], [0, 0, 1, 1], [], []>} : vector<8x128xbf16>, vector<128x512xbf16>, vector<8x512xf32> -> vector<8x512xf32>
    %109 = arith.addf %106, %108 : vector<8x512xf32>
    %110 = vector.extract_strided_slice %109 {offsets = [0, 0], sizes = [8, 384], strides = [1, 1]} : vector<8x512xf32> to vector<8x384xf32>
    %111 = arith.negf %110 : vector<8x384xf32>
    %112 = math.exp %111 : vector<8x384xf32>
    %cst_29 = arith.constant 1.000000e+00 : f32
    %113 = vector.broadcast %cst_29 : f32 to vector<8x384xf32>
    %114 = arith.addf %113, %112 : vector<8x384xf32>
    %115 = arith.divf %113, %114 : vector<8x384xf32>
    %116 = vector.extract_strided_slice %109 {offsets = [0, 384], sizes = [8, 128], strides = [1, 1]} : vector<8x512xf32> to vector<8x128xf32>
    %117 = math.tanh %116 : vector<8x128xf32>
    %118 = vector.extract_strided_slice %115 {offsets = [0, 128], sizes = [8, 128], strides = [1, 1]} : vector<8x384xf32> to vector<8x128xf32>
    %119 = arith.mulf %118, %101 : vector<8x128xf32>
    %120 = vector.extract_strided_slice %115 {offsets = [0, 0], sizes = [8, 128], strides = [1, 1]} : vector<8x384xf32> to vector<8x128xf32>
    %121 = arith.mulf %120, %117 : vector<8x128xf32>
    %122 = arith.addf %119, %121 : vector<8x128xf32>
    %123 = vector.extract_strided_slice %115 {offsets = [0, 256], sizes = [8, 128], strides = [1, 1]} : vector<8x384xf32> to vector<8x128xf32>
    %124 = math.tanh %122 : vector<8x128xf32>
    %125 = arith.mulf %123, %124 : vector<8x128xf32>
    %c32 = arith.constant 32 : index
    %c0_30 = arith.constant 0 : index
    %126 = vector.load %arg12[%c32, %c0_30] : memref<64x128xf32, #tpu.memory_space<vmem>>, vector<8x128xf32>
    tpu.vector_store %arg12[%c32, %c0_30], %125 {strides = array<i32>} : memref<64x128xf32, #tpu.memory_space<vmem>>, vector<8x128xf32>,
    %127 = vector.extract_strided_slice %18 {offsets = [40, 0], sizes = [8, 512], strides = [1, 1]} : vector<64x512xf32> to vector<8x512xf32>
    %128 = arith.truncf %125 : vector<8x128xf32> to vector<8x128xbf16>
    %cst_31 = arith.constant dense<0.000000e+00> : vector<8x512xf32>
    %129 = tpu.matmul %128, %19, %cst_31 {dimension_numbers = #tpu.dot_dimension_numbers<[1], [0], [0], [1], [0, 0, 1, 1], [], []>} : vector<8x128xbf16>, vector<128x512xbf16>, vector<8x512xf32> -> vector<8x512xf32>
    %130 = arith.addf %127, %129 : vector<8x512xf32>
    %131 = vector.extract_strided_slice %130 {offsets = [0, 0], sizes = [8, 384], strides = [1, 1]} : vector<8x512xf32> to vector<8x384xf32>
    %132 = arith.negf %131 : vector<8x384xf32>
    %133 = math.exp %132 : vector<8x384xf32>
    %cst_32 = arith.constant 1.000000e+00 : f32
    %134 = vector.broadcast %cst_32 : f32 to vector<8x384xf32>
    %135 = arith.addf %134, %133 : vector<8x384xf32>
    %136 = arith.divf %134, %135 : vector<8x384xf32>
    %137 = vector.extract_strided_slice %130 {offsets = [0, 384], sizes = [8, 128], strides = [1, 1]} : vector<8x512xf32> to vector<8x128xf32>
    %138 = math.tanh %137 : vector<8x128xf32>
    %139 = vector.extract_strided_slice %136 {offsets = [0, 128], sizes = [8, 128], strides = [1, 1]} : vector<8x384xf32> to vector<8x128xf32>
    %140 = arith.mulf %139, %122 : vector<8x128xf32>
    %141 = vector.extract_strided_slice %136 {offsets = [0, 0], sizes = [8, 128], strides = [1, 1]} : vector<8x384xf32> to vector<8x128xf32>
    %142 = arith.mulf %141, %138 : vector<8x128xf32>
    %143 = arith.addf %140, %142 : vector<8x128xf32>
    %144 = vector.extract_strided_slice %136 {offsets = [0, 256], sizes = [8, 128], strides = [1, 1]} : vector<8x384xf32> to vector<8x128xf32>
    %145 = math.tanh %143 : vector<8x128xf32>
    %146 = arith.mulf %144, %145 : vector<8x128xf32>
    %c40 = arith.constant 40 : index
    %c0_33 = arith.constant 0 : index
    %147 = vector.load %arg12[%c40, %c0_33] : memref<64x128xf32, #tpu.memory_space<vmem>>, vector<8x128xf32>
    tpu.vector_store %arg12[%c40, %c0_33], %146 {strides = array<i32>} : memref<64x128xf32, #tpu.memory_space<vmem>>, vector<8x128xf32>,
    %148 = vector.extract_strided_slice %18 {offsets = [48, 0], sizes = [8, 512], strides = [1, 1]} : vector<64x512xf32> to vector<8x512xf32>
    %149 = arith.truncf %146 : vector<8x128xf32> to vector<8x128xbf16>
    %cst_34 = arith.constant dense<0.000000e+00> : vector<8x512xf32>
    %150 = tpu.matmul %149, %19, %cst_34 {dimension_numbers = #tpu.dot_dimension_numbers<[1], [0], [0], [1], [0, 0, 1, 1], [], []>} : vector<8x128xbf16>, vector<128x512xbf16>, vector<8x512xf32> -> vector<8x512xf32>
    %151 = arith.addf %148, %150 : vector<8x512xf32>
    %152 = vector.extract_strided_slice %151 {offsets = [0, 0], sizes = [8, 384], strides = [1, 1]} : vector<8x512xf32> to vector<8x384xf32>
    %153 = arith.negf %152 : vector<8x384xf32>
    %154 = math.exp %153 : vector<8x384xf32>
    %cst_35 = arith.constant 1.000000e+00 : f32
    %155 = vector.broadcast %cst_35 : f32 to vector<8x384xf32>
    %156 = arith.addf %155, %154 : vector<8x384xf32>
    %157 = arith.divf %155, %156 : vector<8x384xf32>
    %158 = vector.extract_strided_slice %151 {offsets = [0, 384], sizes = [8, 128], strides = [1, 1]} : vector<8x512xf32> to vector<8x128xf32>
    %159 = math.tanh %158 : vector<8x128xf32>
    %160 = vector.extract_strided_slice %157 {offsets = [0, 128], sizes = [8, 128], strides = [1, 1]} : vector<8x384xf32> to vector<8x128xf32>
    %161 = arith.mulf %160, %143 : vector<8x128xf32>
    %162 = vector.extract_strided_slice %157 {offsets = [0, 0], sizes = [8, 128], strides = [1, 1]} : vector<8x384xf32> to vector<8x128xf32>
    %163 = arith.mulf %162, %159 : vector<8x128xf32>
    %164 = arith.addf %161, %163 : vector<8x128xf32>
    %165 = vector.extract_strided_slice %157 {offsets = [0, 256], sizes = [8, 128], strides = [1, 1]} : vector<8x384xf32> to vector<8x128xf32>
    %166 = math.tanh %164 : vector<8x128xf32>
    %167 = arith.mulf %165, %166 : vector<8x128xf32>
    %c48 = arith.constant 48 : index
    %c0_36 = arith.constant 0 : index
    %168 = vector.load %arg12[%c48, %c0_36] : memref<64x128xf32, #tpu.memory_space<vmem>>, vector<8x128xf32>
    tpu.vector_store %arg12[%c48, %c0_36], %167 {strides = array<i32>} : memref<64x128xf32, #tpu.memory_space<vmem>>, vector<8x128xf32>,
    %169 = vector.extract_strided_slice %18 {offsets = [56, 0], sizes = [8, 512], strides = [1, 1]} : vector<64x512xf32> to vector<8x512xf32>
    %170 = arith.truncf %167 : vector<8x128xf32> to vector<8x128xbf16>
    %cst_37 = arith.constant dense<0.000000e+00> : vector<8x512xf32>
    %171 = tpu.matmul %170, %19, %cst_37 {dimension_numbers = #tpu.dot_dimension_numbers<[1], [0], [0], [1], [0, 0, 1, 1], [], []>} : vector<8x128xbf16>, vector<128x512xbf16>, vector<8x512xf32> -> vector<8x512xf32>
    %172 = arith.addf %169, %171 : vector<8x512xf32>
    %173 = vector.extract_strided_slice %172 {offsets = [0, 0], sizes = [8, 384], strides = [1, 1]} : vector<8x512xf32> to vector<8x384xf32>
    %174 = arith.negf %173 : vector<8x384xf32>
    %175 = math.exp %174 : vector<8x384xf32>
    %cst_38 = arith.constant 1.000000e+00 : f32
    %176 = vector.broadcast %cst_38 : f32 to vector<8x384xf32>
    %177 = arith.addf %176, %175 : vector<8x384xf32>
    %178 = arith.divf %176, %177 : vector<8x384xf32>
    %179 = vector.extract_strided_slice %172 {offsets = [0, 384], sizes = [8, 128], strides = [1, 1]} : vector<8x512xf32> to vector<8x128xf32>
    %180 = math.tanh %179 : vector<8x128xf32>
    %181 = vector.extract_strided_slice %178 {offsets = [0, 128], sizes = [8, 128], strides = [1, 1]} : vector<8x384xf32> to vector<8x128xf32>
    %182 = arith.mulf %181, %164 : vector<8x128xf32>
    %183 = vector.extract_strided_slice %178 {offsets = [0, 0], sizes = [8, 128], strides = [1, 1]} : vector<8x384xf32> to vector<8x128xf32>
    %184 = arith.mulf %183, %180 : vector<8x128xf32>
    %185 = arith.addf %182, %184 : vector<8x128xf32>
    %186 = vector.extract_strided_slice %178 {offsets = [0, 256], sizes = [8, 128], strides = [1, 1]} : vector<8x384xf32> to vector<8x128xf32>
    %187 = math.tanh %185 : vector<8x128xf32>
    %188 = arith.mulf %186, %187 : vector<8x128xf32>
    %c56 = arith.constant 56 : index
    %c0_39 = arith.constant 0 : index
    %189 = vector.load %arg12[%c56, %c0_39] : memref<64x128xf32, #tpu.memory_space<vmem>>, vector<8x128xf32>
    tpu.vector_store %arg12[%c56, %c0_39], %188 {strides = array<i32>} : memref<64x128xf32, #tpu.memory_space<vmem>>, vector<8x128xf32>,
    %c0_40 = arith.constant 0 : index
    %c0_41 = arith.constant 0 : index
    %190 = vector.load %arg12[%c0_40, %c0_41] : memref<64x128xf32, #tpu.memory_space<vmem>>, vector<64x128xf32>
    %191 = arith.truncf %190 : vector<64x128xf32> to vector<64x128xbf16>
    %c0_42 = arith.constant 0 : index
    %c0_43 = arith.constant 0 : index
    %192 = vector.load %arg6[%c0_42, %c0_43] : memref<128x512xbf16, #tpu.memory_space<vmem>>, vector<128x512xbf16>
    %cst_44 = arith.constant dense<0.000000e+00> : vector<64x512xf32>
    %193 = tpu.matmul %191, %192, %cst_44 {dimension_numbers = #tpu.dot_dimension_numbers<[1], [0], [0], [1], [0, 0, 1, 1], [], []>} : vector<64x128xbf16>, vector<128x512xbf16>, vector<64x512xf32> -> vector<64x512xf32>
    %c0_45 = arith.constant 0 : index
    %c0_46 = arith.constant 0 : index
    %194 = vector.load %arg8[%c0_45, %c0_46] : memref<1x512xf32, #tpu.memory_space<vmem>>, vector<1x512xf32>
    %195 = vector.broadcast %194 : vector<1x512xf32> to vector<64x512xf32>
    %196 = arith.addf %193, %195 : vector<64x512xf32>
    %c0_47 = arith.constant 0 : index
    %c0_48 = arith.constant 0 : index
    %197 = vector.load %arg7[%c0_47, %c0_48] : memref<128x512xbf16, #tpu.memory_space<vmem>>, vector<128x512xbf16>
    %cst_49 = arith.constant 0.000000e+00 : f32
    %198 = vector.broadcast %cst_49 : f32 to vector<8x128xf32>
    %cst_50 = arith.constant 0.000000e+00 : f32
    %199 = vector.broadcast %cst_50 : f32 to vector<8x128xf32>
    %200 = vector.extract_strided_slice %196 {offsets = [0, 0], sizes = [8, 512], strides = [1, 1]} : vector<64x512xf32> to vector<8x512xf32>
    %201 = arith.truncf %198 : vector<8x128xf32> to vector<8x128xbf16>
    %cst_51 = arith.constant dense<0.000000e+00> : vector<8x512xf32>
    %202 = tpu.matmul %201, %197, %cst_51 {dimension_numbers = #tpu.dot_dimension_numbers<[1], [0], [0], [1], [0, 0, 1, 1], [], []>} : vector<8x128xbf16>, vector<128x512xbf16>, vector<8x512xf32> -> vector<8x512xf32>
    %203 = arith.addf %200, %202 : vector<8x512xf32>
    %204 = vector.extract_strided_slice %203 {offsets = [0, 0], sizes = [8, 384], strides = [1, 1]} : vector<8x512xf32> to vector<8x384xf32>
    %205 = arith.negf %204 : vector<8x384xf32>
    %206 = math.exp %205 : vector<8x384xf32>
    %cst_52 = arith.constant 1.000000e+00 : f32
    %207 = vector.broadcast %cst_52 : f32 to vector<8x384xf32>
    %208 = arith.addf %207, %206 : vector<8x384xf32>
    %209 = arith.divf %207, %208 : vector<8x384xf32>
    %210 = vector.extract_strided_slice %203 {offsets = [0, 384], sizes = [8, 128], strides = [1, 1]} : vector<8x512xf32> to vector<8x128xf32>
    %211 = math.tanh %210 : vector<8x128xf32>
    %212 = vector.extract_strided_slice %209 {offsets = [0, 128], sizes = [8, 128], strides = [1, 1]} : vector<8x384xf32> to vector<8x128xf32>
    %213 = arith.mulf %212, %199 : vector<8x128xf32>
    %214 = vector.extract_strided_slice %209 {offsets = [0, 0], sizes = [8, 128], strides = [1, 1]} : vector<8x384xf32> to vector<8x128xf32>
    %215 = arith.mulf %214, %211 : vector<8x128xf32>
    %216 = arith.addf %213, %215 : vector<8x128xf32>
    %217 = vector.extract_strided_slice %209 {offsets = [0, 256], sizes = [8, 128], strides = [1, 1]} : vector<8x384xf32> to vector<8x128xf32>
    %218 = math.tanh %216 : vector<8x128xf32>
    %219 = arith.mulf %217, %218 : vector<8x128xf32>
    %220 = vector.extract_strided_slice %196 {offsets = [8, 0], sizes = [8, 512], strides = [1, 1]} : vector<64x512xf32> to vector<8x512xf32>
    %221 = arith.truncf %219 : vector<8x128xf32> to vector<8x128xbf16>
    %cst_53 = arith.constant dense<0.000000e+00> : vector<8x512xf32>
    %222 = tpu.matmul %221, %197, %cst_53 {dimension_numbers = #tpu.dot_dimension_numbers<[1], [0], [0], [1], [0, 0, 1, 1], [], []>} : vector<8x128xbf16>, vector<128x512xbf16>, vector<8x512xf32> -> vector<8x512xf32>
    %223 = arith.addf %220, %222 : vector<8x512xf32>
    %224 = vector.extract_strided_slice %223 {offsets = [0, 0], sizes = [8, 384], strides = [1, 1]} : vector<8x512xf32> to vector<8x384xf32>
    %225 = arith.negf %224 : vector<8x384xf32>
    %226 = math.exp %225 : vector<8x384xf32>
    %cst_54 = arith.constant 1.000000e+00 : f32
    %227 = vector.broadcast %cst_54 : f32 to vector<8x384xf32>
    %228 = arith.addf %227, %226 : vector<8x384xf32>
    %229 = arith.divf %227, %228 : vector<8x384xf32>
    %230 = vector.extract_strided_slice %223 {offsets = [0, 384], sizes = [8, 128], strides = [1, 1]} : vector<8x512xf32> to vector<8x128xf32>
    %231 = math.tanh %230 : vector<8x128xf32>
    %232 = vector.extract_strided_slice %229 {offsets = [0, 128], sizes = [8, 128], strides = [1, 1]} : vector<8x384xf32> to vector<8x128xf32>
    %233 = arith.mulf %232, %216 : vector<8x128xf32>
    %234 = vector.extract_strided_slice %229 {offsets = [0, 0], sizes = [8, 128], strides = [1, 1]} : vector<8x384xf32> to vector<8x128xf32>
    %235 = arith.mulf %234, %231 : vector<8x128xf32>
    %236 = arith.addf %233, %235 : vector<8x128xf32>
    %237 = vector.extract_strided_slice %229 {offsets = [0, 256], sizes = [8, 128], strides = [1, 1]} : vector<8x384xf32> to vector<8x128xf32>
    %238 = math.tanh %236 : vector<8x128xf32>
    %239 = arith.mulf %237, %238 : vector<8x128xf32>
    %240 = vector.extract_strided_slice %196 {offsets = [16, 0], sizes = [8, 512], strides = [1, 1]} : vector<64x512xf32> to vector<8x512xf32>
    %241 = arith.truncf %239 : vector<8x128xf32> to vector<8x128xbf16>
    %cst_55 = arith.constant dense<0.000000e+00> : vector<8x512xf32>
    %242 = tpu.matmul %241, %197, %cst_55 {dimension_numbers = #tpu.dot_dimension_numbers<[1], [0], [0], [1], [0, 0, 1, 1], [], []>} : vector<8x128xbf16>, vector<128x512xbf16>, vector<8x512xf32> -> vector<8x512xf32>
    %243 = arith.addf %240, %242 : vector<8x512xf32>
    %244 = vector.extract_strided_slice %243 {offsets = [0, 0], sizes = [8, 384], strides = [1, 1]} : vector<8x512xf32> to vector<8x384xf32>
    %245 = arith.negf %244 : vector<8x384xf32>
    %246 = math.exp %245 : vector<8x384xf32>
    %cst_56 = arith.constant 1.000000e+00 : f32
    %247 = vector.broadcast %cst_56 : f32 to vector<8x384xf32>
    %248 = arith.addf %247, %246 : vector<8x384xf32>
    %249 = arith.divf %247, %248 : vector<8x384xf32>
    %250 = vector.extract_strided_slice %243 {offsets = [0, 384], sizes = [8, 128], strides = [1, 1]} : vector<8x512xf32> to vector<8x128xf32>
    %251 = math.tanh %250 : vector<8x128xf32>
    %252 = vector.extract_strided_slice %249 {offsets = [0, 128], sizes = [8, 128], strides = [1, 1]} : vector<8x384xf32> to vector<8x128xf32>
    %253 = arith.mulf %252, %236 : vector<8x128xf32>
    %254 = vector.extract_strided_slice %249 {offsets = [0, 0], sizes = [8, 128], strides = [1, 1]} : vector<8x384xf32> to vector<8x128xf32>
    %255 = arith.mulf %254, %251 : vector<8x128xf32>
    %256 = arith.addf %253, %255 : vector<8x128xf32>
    %257 = vector.extract_strided_slice %249 {offsets = [0, 256], sizes = [8, 128], strides = [1, 1]} : vector<8x384xf32> to vector<8x128xf32>
    %258 = math.tanh %256 : vector<8x128xf32>
    %259 = arith.mulf %257, %258 : vector<8x128xf32>
    %260 = vector.extract_strided_slice %196 {offsets = [24, 0], sizes = [8, 512], strides = [1, 1]} : vector<64x512xf32> to vector<8x512xf32>
    %261 = arith.truncf %259 : vector<8x128xf32> to vector<8x128xbf16>
    %cst_57 = arith.constant dense<0.000000e+00> : vector<8x512xf32>
    %262 = tpu.matmul %261, %197, %cst_57 {dimension_numbers = #tpu.dot_dimension_numbers<[1], [0], [0], [1], [0, 0, 1, 1], [], []>} : vector<8x128xbf16>, vector<128x512xbf16>, vector<8x512xf32> -> vector<8x512xf32>
    %263 = arith.addf %260, %262 : vector<8x512xf32>
    %264 = vector.extract_strided_slice %263 {offsets = [0, 0], sizes = [8, 384], strides = [1, 1]} : vector<8x512xf32> to vector<8x384xf32>
    %265 = arith.negf %264 : vector<8x384xf32>
    %266 = math.exp %265 : vector<8x384xf32>
    %cst_58 = arith.constant 1.000000e+00 : f32
    %267 = vector.broadcast %cst_58 : f32 to vector<8x384xf32>
    %268 = arith.addf %267, %266 : vector<8x384xf32>
    %269 = arith.divf %267, %268 : vector<8x384xf32>
    %270 = vector.extract_strided_slice %263 {offsets = [0, 384], sizes = [8, 128], strides = [1, 1]} : vector<8x512xf32> to vector<8x128xf32>
    %271 = math.tanh %270 : vector<8x128xf32>
    %272 = vector.extract_strided_slice %269 {offsets = [0, 128], sizes = [8, 128], strides = [1, 1]} : vector<8x384xf32> to vector<8x128xf32>
    %273 = arith.mulf %272, %256 : vector<8x128xf32>
    %274 = vector.extract_strided_slice %269 {offsets = [0, 0], sizes = [8, 128], strides = [1, 1]} : vector<8x384xf32> to vector<8x128xf32>
    %275 = arith.mulf %274, %271 : vector<8x128xf32>
    %276 = arith.addf %273, %275 : vector<8x128xf32>
    %277 = vector.extract_strided_slice %269 {offsets = [0, 256], sizes = [8, 128], strides = [1, 1]} : vector<8x384xf32> to vector<8x128xf32>
    %278 = math.tanh %276 : vector<8x128xf32>
    %279 = arith.mulf %277, %278 : vector<8x128xf32>
    %280 = vector.extract_strided_slice %196 {offsets = [32, 0], sizes = [8, 512], strides = [1, 1]} : vector<64x512xf32> to vector<8x512xf32>
    %281 = arith.truncf %279 : vector<8x128xf32> to vector<8x128xbf16>
    %cst_59 = arith.constant dense<0.000000e+00> : vector<8x512xf32>
    %282 = tpu.matmul %281, %197, %cst_59 {dimension_numbers = #tpu.dot_dimension_numbers<[1], [0], [0], [1], [0, 0, 1, 1], [], []>} : vector<8x128xbf16>, vector<128x512xbf16>, vector<8x512xf32> -> vector<8x512xf32>
    %283 = arith.addf %280, %282 : vector<8x512xf32>
    %284 = vector.extract_strided_slice %283 {offsets = [0, 0], sizes = [8, 384], strides = [1, 1]} : vector<8x512xf32> to vector<8x384xf32>
    %285 = arith.negf %284 : vector<8x384xf32>
    %286 = math.exp %285 : vector<8x384xf32>
    %cst_60 = arith.constant 1.000000e+00 : f32
    %287 = vector.broadcast %cst_60 : f32 to vector<8x384xf32>
    %288 = arith.addf %287, %286 : vector<8x384xf32>
    %289 = arith.divf %287, %288 : vector<8x384xf32>
    %290 = vector.extract_strided_slice %283 {offsets = [0, 384], sizes = [8, 128], strides = [1, 1]} : vector<8x512xf32> to vector<8x128xf32>
    %291 = math.tanh %290 : vector<8x128xf32>
    %292 = vector.extract_strided_slice %289 {offsets = [0, 128], sizes = [8, 128], strides = [1, 1]} : vector<8x384xf32> to vector<8x128xf32>
    %293 = arith.mulf %292, %276 : vector<8x128xf32>
    %294 = vector.extract_strided_slice %289 {offsets = [0, 0], sizes = [8, 128], strides = [1, 1]} : vector<8x384xf32> to vector<8x128xf32>
    %295 = arith.mulf %294, %291 : vector<8x128xf32>
    %296 = arith.addf %293, %295 : vector<8x128xf32>
    %297 = vector.extract_strided_slice %289 {offsets = [0, 256], sizes = [8, 128], strides = [1, 1]} : vector<8x384xf32> to vector<8x128xf32>
    %298 = math.tanh %296 : vector<8x128xf32>
    %299 = arith.mulf %297, %298 : vector<8x128xf32>
    %300 = vector.extract_strided_slice %196 {offsets = [40, 0], sizes = [8, 512], strides = [1, 1]} : vector<64x512xf32> to vector<8x512xf32>
    %301 = arith.truncf %299 : vector<8x128xf32> to vector<8x128xbf16>
    %cst_61 = arith.constant dense<0.000000e+00> : vector<8x512xf32>
    %302 = tpu.matmul %301, %197, %cst_61 {dimension_numbers = #tpu.dot_dimension_numbers<[1], [0], [0], [1], [0, 0, 1, 1], [], []>} : vector<8x128xbf16>, vector<128x512xbf16>, vector<8x512xf32> -> vector<8x512xf32>
    %303 = arith.addf %300, %302 : vector<8x512xf32>
    %304 = vector.extract_strided_slice %303 {offsets = [0, 0], sizes = [8, 384], strides = [1, 1]} : vector<8x512xf32> to vector<8x384xf32>
    %305 = arith.negf %304 : vector<8x384xf32>
    %306 = math.exp %305 : vector<8x384xf32>
    %cst_62 = arith.constant 1.000000e+00 : f32
    %307 = vector.broadcast %cst_62 : f32 to vector<8x384xf32>
    %308 = arith.addf %307, %306 : vector<8x384xf32>
    %309 = arith.divf %307, %308 : vector<8x384xf32>
    %310 = vector.extract_strided_slice %303 {offsets = [0, 384], sizes = [8, 128], strides = [1, 1]} : vector<8x512xf32> to vector<8x128xf32>
    %311 = math.tanh %310 : vector<8x128xf32>
    %312 = vector.extract_strided_slice %309 {offsets = [0, 128], sizes = [8, 128], strides = [1, 1]} : vector<8x384xf32> to vector<8x128xf32>
    %313 = arith.mulf %312, %296 : vector<8x128xf32>
    %314 = vector.extract_strided_slice %309 {offsets = [0, 0], sizes = [8, 128], strides = [1, 1]} : vector<8x384xf32> to vector<8x128xf32>
    %315 = arith.mulf %314, %311 : vector<8x128xf32>
    %316 = arith.addf %313, %315 : vector<8x128xf32>
    %317 = vector.extract_strided_slice %309 {offsets = [0, 256], sizes = [8, 128], strides = [1, 1]} : vector<8x384xf32> to vector<8x128xf32>
    %318 = math.tanh %316 : vector<8x128xf32>
    %319 = arith.mulf %317, %318 : vector<8x128xf32>
    %320 = vector.extract_strided_slice %196 {offsets = [48, 0], sizes = [8, 512], strides = [1, 1]} : vector<64x512xf32> to vector<8x512xf32>
    %321 = arith.truncf %319 : vector<8x128xf32> to vector<8x128xbf16>
    %cst_63 = arith.constant dense<0.000000e+00> : vector<8x512xf32>
    %322 = tpu.matmul %321, %197, %cst_63 {dimension_numbers = #tpu.dot_dimension_numbers<[1], [0], [0], [1], [0, 0, 1, 1], [], []>} : vector<8x128xbf16>, vector<128x512xbf16>, vector<8x512xf32> -> vector<8x512xf32>
    %323 = arith.addf %320, %322 : vector<8x512xf32>
    %324 = vector.extract_strided_slice %323 {offsets = [0, 0], sizes = [8, 384], strides = [1, 1]} : vector<8x512xf32> to vector<8x384xf32>
    %325 = arith.negf %324 : vector<8x384xf32>
    %326 = math.exp %325 : vector<8x384xf32>
    %cst_64 = arith.constant 1.000000e+00 : f32
    %327 = vector.broadcast %cst_64 : f32 to vector<8x384xf32>
    %328 = arith.addf %327, %326 : vector<8x384xf32>
    %329 = arith.divf %327, %328 : vector<8x384xf32>
    %330 = vector.extract_strided_slice %323 {offsets = [0, 384], sizes = [8, 128], strides = [1, 1]} : vector<8x512xf32> to vector<8x128xf32>
    %331 = math.tanh %330 : vector<8x128xf32>
    %332 = vector.extract_strided_slice %329 {offsets = [0, 128], sizes = [8, 128], strides = [1, 1]} : vector<8x384xf32> to vector<8x128xf32>
    %333 = arith.mulf %332, %316 : vector<8x128xf32>
    %334 = vector.extract_strided_slice %329 {offsets = [0, 0], sizes = [8, 128], strides = [1, 1]} : vector<8x384xf32> to vector<8x128xf32>
    %335 = arith.mulf %334, %331 : vector<8x128xf32>
    %336 = arith.addf %333, %335 : vector<8x128xf32>
    %337 = vector.extract_strided_slice %329 {offsets = [0, 256], sizes = [8, 128], strides = [1, 1]} : vector<8x384xf32> to vector<8x128xf32>
    %338 = math.tanh %336 : vector<8x128xf32>
    %339 = arith.mulf %337, %338 : vector<8x128xf32>
    %340 = vector.extract_strided_slice %196 {offsets = [56, 0], sizes = [8, 512], strides = [1, 1]} : vector<64x512xf32> to vector<8x512xf32>
    %341 = arith.truncf %339 : vector<8x128xf32> to vector<8x128xbf16>
    %cst_65 = arith.constant dense<0.000000e+00> : vector<8x512xf32>
    %342 = tpu.matmul %341, %197, %cst_65 {dimension_numbers = #tpu.dot_dimension_numbers<[1], [0], [0], [1], [0, 0, 1, 1], [], []>} : vector<8x128xbf16>, vector<128x512xbf16>, vector<8x512xf32> -> vector<8x512xf32>
    %343 = arith.addf %340, %342 : vector<8x512xf32>
    %344 = vector.extract_strided_slice %343 {offsets = [0, 0], sizes = [8, 384], strides = [1, 1]} : vector<8x512xf32> to vector<8x384xf32>
    %345 = arith.negf %344 : vector<8x384xf32>
    %346 = math.exp %345 : vector<8x384xf32>
    %cst_66 = arith.constant 1.000000e+00 : f32
    %347 = vector.broadcast %cst_66 : f32 to vector<8x384xf32>
    %348 = arith.addf %347, %346 : vector<8x384xf32>
    %349 = arith.divf %347, %348 : vector<8x384xf32>
    %350 = vector.extract_strided_slice %343 {offsets = [0, 384], sizes = [8, 128], strides = [1, 1]} : vector<8x512xf32> to vector<8x128xf32>
    %351 = math.tanh %350 : vector<8x128xf32>
    %352 = vector.extract_strided_slice %349 {offsets = [0, 128], sizes = [8, 128], strides = [1, 1]} : vector<8x384xf32> to vector<8x128xf32>
    %353 = arith.mulf %352, %336 : vector<8x128xf32>
    %354 = vector.extract_strided_slice %349 {offsets = [0, 0], sizes = [8, 128], strides = [1, 1]} : vector<8x384xf32> to vector<8x128xf32>
    %355 = arith.mulf %354, %351 : vector<8x128xf32>
    %356 = arith.addf %353, %355 : vector<8x128xf32>
    %357 = vector.extract_strided_slice %349 {offsets = [0, 256], sizes = [8, 128], strides = [1, 1]} : vector<8x384xf32> to vector<8x128xf32>
    %358 = math.tanh %356 : vector<8x128xf32>
    %359 = arith.mulf %357, %358 : vector<8x128xf32>
    %360 = arith.truncf %359 : vector<8x128xf32> to vector<8x128xbf16>
    %c0_67 = arith.constant 0 : index
    %c0_68 = arith.constant 0 : index
    %361 = vector.load %arg9[%c0_67, %c0_68] : memref<128x128xbf16, #tpu.memory_space<vmem>>, vector<128x128xbf16>
    %cst_69 = arith.constant dense<0.000000e+00> : vector<8x128xf32>
    %362 = tpu.matmul %360, %361, %cst_69 {dimension_numbers = #tpu.dot_dimension_numbers<[1], [0], [0], [1], [0, 0, 1, 1], [], []>} : vector<8x128xbf16>, vector<128x128xbf16>, vector<8x128xf32> -> vector<8x128xf32>
    %c0_70 = arith.constant 0 : index
    %c0_71 = arith.constant 0 : index
    %363 = vector.load %arg10[%c0_70, %c0_71] : memref<1x128xf32, #tpu.memory_space<vmem>>, vector<1x128xf32>
    %364 = vector.broadcast %363 : vector<1x128xf32> to vector<8x128xf32>
    %365 = arith.addf %362, %364 : vector<8x128xf32>
    %c0_72 = arith.constant 0 : index
    %c0_73 = arith.constant 0 : index
    %366 = vector.load %arg11[%c0_72, %c0_73] : memref<8x128xf32, #tpu.memory_space<vmem>>, vector<8x128xf32>
    tpu.vector_store %arg11[%c0_72, %c0_73], %365 {strides = array<i32>} : memref<8x128xf32, #tpu.memory_space<vmem>>, vector<8x128xf32>,
    return
  }
}

</mosaic_0001>

<llo_original>
// kernel: tpu_custom_call.1
$region0: #{tpu_custom_call.1}
  #allocation0 [shape = 'u32[]', space=smem, size = 0x4, offset = 0x4, fixed_abs, tag = 'smem constant byte address 0x4 - core index']
  #allocation1 [shape = 'u32[144,128]{1,0:T(1,128)}', space=vmem, size = 0x12000, scoped, tag = 'internal scratch']
  #allocation2 [shape = 'f32[64,128]{1,0:T(8,128)}', space=vmem, size = 0x8000, scoped, tag = 'scratch operand']
  %s0 = inlined_call_operand.vmem [shape: bf16[128,48], index: 0, kind: input, shape index: {}]
  %s1 = inlined_call_operand.vmem [shape: bf16[48,64], index: 1, kind: input, shape index: {}]
  %s2 = inlined_call_operand.vmem [shape: f32[1,64], index: 2, kind: input, shape index: {}]
  %s3 = inlined_call_operand.hbm [shape: bf16[64,512], index: 3, kind: input, shape index: {}]
  %s4 = inlined_call_operand.hbm [shape: bf16[128,512], index: 4, kind: input, shape index: {}]
  %s5 = inlined_call_operand.vmem [shape: f32[1,512], index: 5, kind: input, shape index: {}]
  %s6 = inlined_call_operand.hbm [shape: bf16[128,512], index: 6, kind: input, shape index: {}]
  %s7 = inlined_call_operand.hbm [shape: bf16[128,512], index: 7, kind: input, shape index: {}]
  %s8 = inlined_call_operand.vmem [shape: f32[1,512], index: 8, kind: input, shape index: {}]
  %s9 = inlined_call_operand.vmem [shape: bf16[128,128], index: 9, kind: input, shape index: {}]
  %s10 = inlined_call_operand.vmem [shape: f32[1,128], index: 10, kind: input, shape index: {}]
  %s11 = inlined_call_operand.hbm [shape: f32[8,128], index: 11, kind: output, shape index: {}]
  %s12 = sld [smem:[#allocation0]]
  $region70: #{tpu_custom_call.1} parent=0
    _
  %s14 = ssub.s32 1, %s12
  %s15 = scalar_select 0, %s14, %s12
  $region1: #{tpu_custom_call.1} parent=0
    #allocation3 [shape = 'u8[65536]{0}', space=vmem, size = 0x10000, scoped, tag = 'input window, operand 3, single buffered']
    #allocation4 [shape = 's32[1]{0}', space=sflag, size = 0x4, scoped, tag = 'scoped memory for tpu_custom_call.1']
    #allocation5 [shape = 's32[1]{0}', space=sflag, size = 0x4, scoped, tag = 'scoped memory for tpu_custom_call.1']
    #allocation6 [shape = 'u8[131072]{0}', space=vmem, size = 0x20000, scoped, tag = 'input window, operand 4, single buffered']
    #allocation7 [shape = 's32[1]{0}', space=sflag, size = 0x4, scoped, tag = 'scoped memory for tpu_custom_call.1']
    #allocation8 [shape = 'u8[131072]{0}', space=vmem, size = 0x20000, scoped, tag = 'input window, operand 6, single buffered']
    #allocation9 [shape = 'u8[131072]{0}', space=vmem, size = 0x20000, scoped, tag = 'input window, operand 7, single buffered']
    #allocation10 [shape = 's32[1]{0}', space=sflag, size = 0x4, scoped, tag = 'scoped memory for tpu_custom_call.1']
    #allocation11 [shape = 'u8[4096]{0}', space=vmem, size = 0x1000, scoped, tag = 'output window, operand 0, single buffered']
    %16 = vsyncpa [#allocation4], 0
    %17 = vsyncpa [#allocation7], 0
    %18 = vsyncpa [#allocation10], 0
    %19 = vsyncpa [#allocation5], 0
    // Predicated region
    $region2: #{tpu_custom_call.1} parent=1 // pred_check
      _
    $region3: #{tpu_custom_call.1} parent=1 // pred_check_branch
      %21 = sbr.rel (0) target = $region5
    $region4: #{tpu_custom_call.1} parent=1 // pred_region
      _
    $region5: #{tpu_custom_call.1} parent=1 // pred_fallthru
      _
    // Predicated region
    $region6: #{tpu_custom_call.1} parent=1 // pred_check
      _
    $region7: #{tpu_custom_call.1} parent=1 // pred_check_branch
      %23 = sbr.rel (0) target = $region9
    $region8: #{tpu_custom_call.1} parent=1 // pred_region
      _
    $region9: #{tpu_custom_call.1} parent=1 // pred_fallthru
      _
    // Predicated region
    $region10: #{tpu_custom_call.1} parent=1 // pred_check
      _
    $region11: #{tpu_custom_call.1} parent=1 // pred_check_branch
      %25 = sbr.rel (0) target = $region13
    $region12: #{tpu_custom_call.1} parent=1 // pred_region
      _
    $region13: #{tpu_custom_call.1} parent=1 // pred_fallthru
      _
    // Predicated region
    $region14: #{tpu_custom_call.1} parent=1 // pred_check
      _
    $region15: #{tpu_custom_call.1} parent=1 // pred_check_branch
      %27 = sbr.rel (0) target = $region17
    $region16: #{tpu_custom_call.1} parent=1 // pred_region
      %s29 = ssub.s32 2048, 2048
      %30 = vsyncadd [#allocation4], %s29
      %s31 = sshll.u32 [#allocation3], 4
      %s32 = int_to_ptr.vmem [resolvable:$true] %s31
      %37 = dma.hbm_to_vmem [thread:$0]  %s3, 2048, %s32, [#allocation4], 256, 256, 16
    $region17: #{tpu_custom_call.1} parent=1 // pred_fallthru
      _
    // Predicated region
    $region18: #{tpu_custom_call.1} parent=1 // pred_check
      _
    $region19: #{tpu_custom_call.1} parent=1 // pred_check_branch
      %39 = sbr.rel (0) target = $region21
    $region20: #{tpu_custom_call.1} parent=1 // pred_region
      %s41 = ssub.s32 4096, 4096
      %42 = vsyncadd [#allocation7], %s41
      %s43 = sshll.u32 [#allocation6], 4
      %s44 = int_to_ptr.vmem [resolvable:$true] %s43
      %49 = dma.hbm_to_vmem [thread:$0]  %s4, 4096, %s44, [#allocation7], 256, 256, 16
    $region21: #{tpu_custom_call.1} parent=1 // pred_fallthru
      _
    // Predicated region
    $region22: #{tpu_custom_call.1} parent=1 // pred_check
      _
    $region23: #{tpu_custom_call.1} parent=1 // pred_check_branch
      %51 = sbr.rel (0) target = $region25
    $region24: #{tpu_custom_call.1} parent=1 // pred_region
      _
    $region25: #{tpu_custom_call.1} parent=1 // pred_fallthru
      _
    // Predicated region
    $region26: #{tpu_custom_call.1} parent=1 // pred_check
      _
    $region27: #{tpu_custom_call.1} parent=1 // pred_check_branch
      %53 = sbr.rel (0) target = $region29
    $region28: #{tpu_custom_call.1} parent=1 // pred_region
      %s55 = ssub.s32 4096, 4096
      %56 = vsyncadd [#allocation7], %s55
      %s57 = sshll.u32 [#allocation8], 4
      %s58 = int_to_ptr.vmem [resolvable:$true] %s57
      %63 = dma.hbm_to_vmem [thread:$0]  %s6, 4096, %s58, [#allocation7], 256, 256, 16
    $region29: #{tpu_custom_call.1} parent=1 // pred_fallthru
      _
    // Predicated region
    $region30: #{tpu_custom_call.1} parent=1 // pred_check
      _
    $region31: #{tpu_custom_call.1} parent=1 // pred_check_branch
      %65 = sbr.rel (0) target = $region33
    $region32: #{tpu_custom_call.1} parent=1 // pred_region
      %s67 = ssub.s32 4096, 4096
      %68 = vsyncadd [#allocation10], %s67
      %s69 = sshll.u32 [#allocation9], 4
      %s70 = int_to_ptr.vmem [resolvable:$true] %s69
      %75 = dma.hbm_to_vmem [thread:$0]  %s7, 4096, %s70, [#allocation10], 256, 256, 16
    $region33: #{tpu_custom_call.1} parent=1 // pred_fallthru
      _
    // Predicated region
    $region34: #{tpu_custom_call.1} parent=1 // pred_check
      _
    $region35: #{tpu_custom_call.1} parent=1 // pred_check_branch
      %77 = sbr.rel (0) target = $region37
    $region36: #{tpu_custom_call.1} parent=1 // pred_region
      _
    $region37: #{tpu_custom_call.1} parent=1 // pred_fallthru
      _
    // Predicated region
    $region38: #{tpu_custom_call.1} parent=1 // pred_check
      _
    $region39: #{tpu_custom_call.1} parent=1 // pred_check_branch
      %79 = sbr.rel (0) target = $region41
    $region40: #{tpu_custom_call.1} parent=1 // pred_region
      _
    $region41: #{tpu_custom_call.1} parent=1 // pred_fallthru
      _
    // Predicated region
    $region42: #{tpu_custom_call.1} parent=1 // pred_check
      _
    $region43: #{tpu_custom_call.1} parent=1 // pred_check_branch
      %81 = sbr.rel (0) target = $region45
    $region44: #{tpu_custom_call.1} parent=1 // pred_region
      _
    $region45: #{tpu_custom_call.1} parent=1 // pred_fallthru
      _
    // Predicated region
    $region46: #{tpu_custom_call.1} parent=1 // pred_check
      _
    $region47: #{tpu_custom_call.1} parent=1 // pred_check_branch
      %83 = sbr.rel (0) target = $region49
    $region48: #{tpu_custom_call.1} parent=1 // pred_region
      %84 = dma.done [#allocation4], 2048
    $region49: #{tpu_custom_call.1} parent=1 // pred_fallthru
      _
    // Predicated region
    $region50: #{tpu_custom_call.1} parent=1 // pred_check
      _
    $region51: #{tpu_custom_call.1} parent=1 // pred_check_branch
      %86 = sbr.rel (0) target = $region53
    $region52: #{tpu_custom_call.1} parent=1 // pred_region
      %87 = dma.done [#allocation7], 4096
    $region53: #{tpu_custom_call.1} parent=1 // pred_fallthru
      _
    // Predicated region
    $region54: #{tpu_custom_call.1} parent=1 // pred_check
      _
    $region55: #{tpu_custom_call.1} parent=1 // pred_check_branch
      %89 = sbr.rel (0) target = $region57
    $region56: #{tpu_custom_call.1} parent=1 // pred_region
      %90 = dma.done [#allocation7], 4096
    $region57: #{tpu_custom_call.1} parent=1 // pred_fallthru
      _
    // Predicated region
    $region58: #{tpu_custom_call.1} parent=1 // pred_check
      _
    $region59: #{tpu_custom_call.1} parent=1 // pred_check_branch
      %92 = sbr.rel (0) target = $region61
    $region60: #{tpu_custom_call.1} parent=1 // pred_region
      %93 = dma.done [#allocation10], 4096
    $region61: #{tpu_custom_call.1} parent=1 // pred_fallthru
      _
    %v95 = vld [vmem:[%s0] sm:$0xf]
    %v96 = vld [vmem:[%s0 + $0x4] sm:$0xf]
    %v97 = vld [vmem:[%s0 + $0x8] sm:$0xf]
    %v98 = vld [vmem:[%s0 + $0xc] sm:$0xf]
    %v99 = vld [vmem:[%s0 + $0x10] sm:$0xf]
    %v100 = vld [vmem:[%s0 + $0x14] sm:$0xf]
    %v101 = vld [vmem:[%s0 + $0x18] sm:$0xf]
    %v102 = vld [vmem:[%s0 + $0x1c] sm:$0xf]
    %v103 = vld [vmem:[%s0 + $0x20] sm:$0xf]
    %v104 = vld [vmem:[%s0 + $0x24] sm:$0xf]
    %v105 = vld [vmem:[%s0 + $0x28] sm:$0xf]
    %v106 = vld [vmem:[%s0 + $0x2c] sm:$0xf]
    %v107 = vld [vmem:[%s0 + $0x30] sm:$0xf]
    %v108 = vld [vmem:[%s0 + $0x34] sm:$0xf]
    %v109 = vld [vmem:[%s0 + $0x38] sm:$0xf]
    %v110 = vld [vmem:[%s0 + $0x3c] sm:$0xf]
    %v111 = vld [vmem:[%s1] sm:$0xf]
    %v112 = vld [vmem:[%s1 + $0x4] sm:$0xf]
    %v113 = vld [vmem:[%s1 + $0x8] sm:$0xf]
    %v114 = vld [vmem:[%s1 + $0xc] sm:$0xf]
    %v115 = vld [vmem:[%s1 + $0x10] sm:$0xf]
    %v116 = vld [vmem:[%s1 + $0x14] sm:$0xf]
    %v117 = vld [vmem:[%s2] sm:$0x1]
    %v119 = vlaneseq
    %v120 = vshrl.u32 %v119, 7
    %v121 = vsub.s32 0, %v120
    %v122 = vrot.slane %v117, %v121
    %v140 = vunpack.c.l.b16 %v95
    %v141 = vunpack.c.l.b16 %v96
    %v142 = vunpack.c.l.b16 %v97
    %v143 = vunpack.c.l.b16 %v98
    %v144 = vunpack.c.l.b16 %v99
    %v145 = vunpack.c.l.b16 %v100
    %v146 = vunpack.c.l.b16 %v101
    %v147 = vunpack.c.l.b16 %v102
    %v148 = vunpack.c.l.b16 %v103
    %v149 = vunpack.c.l.b16 %v104
    %v150 = vunpack.c.l.b16 %v105
    %v151 = vunpack.c.l.b16 %v106
    %v152 = vunpack.c.l.b16 %v107
    %v153 = vunpack.c.l.b16 %v108
    %v154 = vunpack.c.l.b16 %v109
    %v155 = vunpack.c.l.b16 %v110
    %v156 = vpack.c.b16 %v141, %v140
    %v157 = vpack.c.b16 %v143, %v142
    %v158 = vpack.c.b16 %v145, %v144
    %v159 = vpack.c.b16 %v147, %v146
    %v160 = vpack.c.b16 %v149, %v148
    %v161 = vpack.c.b16 %v151, %v150
    %v162 = vpack.c.b16 %v153, %v152
    %v163 = vpack.c.b16 %v155, %v154
    %v170 = vunpack.c.l.b16 %v111
    %v171 = vunpack.c.l.b16 %v112
    %v172 = vunpack.c.l.b16 %v113
    %v173 = vunpack.c.l.b16 %v114
    %v174 = vunpack.c.l.b16 %v115
    %v175 = vunpack.c.l.b16 %v116
    %v176 = vpack.c.b16 %v171, %v170
    %v177 = vpack.c.b16 %v173, %v172
    %v178 = vpack.c.b16 %v175, %v174
    %vm182 = vcmask 392192
    %v184 = vsel %vm182, %v156, 0
    %v187 = vsel %vm182, %v157, 0
    %v190 = vsel %vm182, %v158, 0
    %v193 = vsel %vm182, %v159, 0
    %v196 = vsel %vm182, %v160, 0
    %v199 = vsel %vm182, %v161, 0
    %v202 = vsel %vm182, %v162, 0
    %v205 = vsel %vm182, %v163, 0
    %207 = vmatprep.subr.bf16.mxu0 0
    %208 = vmatpush1.bf16.msra.mxu0 0
    %209 = vmatprep.subr.bf16.mxu0 0
    %210 = vmatpush1.bf16.msra.mxu0 0
    %211 = vmatprep.subr.bf16.mxu0 0
    %212 = vmatpush1.bf16.msra.mxu0 0
    %213 = vmatprep.subr.bf16.mxu0 0
    %214 = vmatpush1.bf16.msra.mxu0 0
    %215 = vmatprep.subr.bf16.mxu0 0
    %216 = vmatpush1.bf16.msra.mxu0 0
    %217 = vmatprep.subr.bf16.mxu0 0
    %218 = vmatpush1.bf16.msra.mxu0 %v178
    %219 = vmatprep.subr.bf16.mxu0 0
    %220 = vmatpush1.bf16.msra.mxu0 %v177
    %221 = vmatprep.subr.bf16.mxu0 0
    %222 = vmatpush1.bf16.msra.mxu0 %v176
    %223 = vmatprep.subr.bf16.mxu0 0
    %224 = vmatpush2.bf16.msra.mxu0 0
    %225 = vmatprep.subr.bf16.mxu0 0
    %226 = vmatpush2.bf16.msra.mxu0 0
    %227 = vmatprep.subr.bf16.mxu0 0
    %228 = vmatpush2.bf16.msra.mxu0 0
    %229 = vmatprep.subr.bf16.mxu0 0
    %230 = vmatpush2.bf16.msra.mxu0 0
    %231 = vmatprep.subr.bf16.mxu0 0
    %232 = vmatpush2.bf16.msra.mxu0 0
    %233 = vmatprep.subr.bf16.mxu0 0
    %234 = vmatpush2.bf16.msra.mxu0 0
    %235 = vmatprep.subr.bf16.mxu0 0
    %236 = vmatpush2.bf16.msra.mxu0 0
    %237 = vmatprep.subr.bf16.mxu0 0
    %238 = vmatpush2.bf16.msra.mxu0 0
    %239 = vmatprep.mubr.bf16.mxu0 0
    %240 = vmatmul.mubr.bf16.gmra.mxu0 %v184
    %v241 = vpop.f32.mrf.mxu0
    %v242 = vadd.f32 %v122, %v241
    %v243 = vpop.f32.mrf.mxu0
    %v244 = vpop.f32.mrf.mxu0
    %v245 = vadd.f32 %v122, %v244
    %v246 = vpop.f32.mrf.mxu0
    %247 = vmatprep.mubr.bf16.mxu0 0
    %248 = vmatmul.mubr.bf16.gmra.mxu0 %v187
    %v249 = vpop.f32.mrf.mxu0
    %v250 = vadd.f32 %v122, %v249
    %v251 = vpop.f32.mrf.mxu0
    %v252 = vpop.f32.mrf.mxu0
    %v253 = vadd.f32 %v122, %v252
    %v254 = vpop.f32.mrf.mxu0
    %255 = vmatprep.mubr.bf16.mxu0 0
    %256 = vmatmul.mubr.bf16.gmra.mxu0 %v190
    %v257 = vpop.f32.mrf.mxu0
    %v258 = vadd.f32 %v122, %v257
    %v259 = vpop.f32.mrf.mxu0
    %v260 = vpop.f32.mrf.mxu0
    %v261 = vadd.f32 %v122, %v260
    %v262 = vpop.f32.mrf.mxu0
    %263 = vmatprep.mubr.bf16.mxu0 0
    %264 = vmatmul.mubr.bf16.gmra.mxu0 %v193
    %v265 = vpop.f32.mrf.mxu0
    %v266 = vadd.f32 %v122, %v265
    %v267 = vpop.f32.mrf.mxu0
    %v268 = vpop.f32.mrf.mxu0
    %v269 = vadd.f32 %v122, %v268
    %v270 = vpop.f32.mrf.mxu0
    %271 = vmatprep.mubr.bf16.mxu0 0
    %272 = vmatmul.mubr.bf16.gmra.mxu0 %v196
    %v273 = vpop.f32.mrf.mxu0
    %v274 = vadd.f32 %v122, %v273
    %v275 = vpop.f32.mrf.mxu0
    %v276 = vpop.f32.mrf.mxu0
    %v277 = vadd.f32 %v122, %v276
    %v278 = vpop.f32.mrf.mxu0
    %279 = vmatprep.mubr.bf16.mxu0 0
    %280 = vmatmul.mubr.bf16.gmra.mxu0 %v199
    %v281 = vpop.f32.mrf.mxu0
    %v282 = vadd.f32 %v122, %v281
    %v283 = vpop.f32.mrf.mxu0
    %v284 = vpop.f32.mrf.mxu0
    %v285 = vadd.f32 %v122, %v284
    %v286 = vpop.f32.mrf.mxu0
    %287 = vmatprep.mubr.bf16.mxu0 0
    %288 = vmatmul.mubr.bf16.gmra.mxu0 %v202
    %v289 = vpop.f32.mrf.mxu0
    %v290 = vadd.f32 %v122, %v289
    %v291 = vpop.f32.mrf.mxu0
    %v292 = vpop.f32.mrf.mxu0
    %v293 = vadd.f32 %v122, %v292
    %v294 = vpop.f32.mrf.mxu0
    %295 = vmatprep.mubr.bf16.mxu0 0
    %296 = vmatmul.mubr.bf16.gmra.mxu0 %v205
    %v297 = vpop.f32.mrf.mxu0
    %v298 = vadd.f32 %v122, %v297
    %v299 = vpop.f32.mrf.mxu0
    %v300 = vpop.f32.mrf.mxu0
    %v301 = vadd.f32 %v122, %v300
    %v302 = vpop.f32.mrf.mxu0
    %303 = vdwg.mxu0
    %v304 = vmax.f32 %v242, 0.0
    %v305 = vmax.f32 %v245, 0.0
    %v306 = vmax.f32 %v250, 0.0
    %v307 = vmax.f32 %v253, 0.0
    %v308 = vmax.f32 %v258, 0.0
    %v309 = vmax.f32 %v261, 0.0
    %v310 = vmax.f32 %v266, 0.0
    %v311 = vmax.f32 %v269, 0.0
    %v312 = vmax.f32 %v274, 0.0
    %v313 = vmax.f32 %v277, 0.0
    %v314 = vmax.f32 %v282, 0.0
    %v315 = vmax.f32 %v285, 0.0
    %v316 = vmax.f32 %v290, 0.0
    %v317 = vmax.f32 %v293, 0.0
    %v318 = vmax.f32 %v298, 0.0
    %v319 = vmax.f32 %v301, 0.0
    %v320 = vmax.f32 %v304, %v305
    %v321 = vmax.f32 %v306, %v307
    %v322 = vmax.f32 %v308, %v309
    %v323 = vmax.f32 %v310, %v311
    %v324 = vmax.f32 %v312, %v313
    %v325 = vmax.f32 %v314, %v315
    %v326 = vmax.f32 %v316, %v317
    %v327 = vmax.f32 %v318, %v319
    %v328 = vpack.c.bf16 %v321, %v320
    %v329 = vpack.c.bf16 %v323, %v322
    %v330 = vpack.c.bf16 %v325, %v324
    %v331 = vpack.c.bf16 %v327, %v326
    %v332 = vld [vmem:[#allocation3] sm:$0xff]
    %v333 = vld [vmem:[#allocation3 + $0x8] sm:$0xff]
    %v334 = vld [vmem:[#allocation3 + $0x10] sm:$0xff]
    %v335 = vld [vmem:[#allocation3 + $0x18] sm:$0xff]
    %v336 = vld [vmem:[#allocation3 + $0x20] sm:$0xff]
    %v337 = vld [vmem:[#allocation3 + $0x28] sm:$0xff]
    %v338 = vld [vmem:[#allocation3 + $0x30] sm:$0xff]
    %v339 = vld [vmem:[#allocation3 + $0x38] sm:$0xff]
    %v340 = vld [vmem:[#allocation3 + $0x40] sm:$0xff]
    %v341 = vld [vmem:[#allocation3 + $0x48] sm:$0xff]
    %v342 = vld [vmem:[#allocation3 + $0x50] sm:$0xff]
    %v343 = vld [vmem:[#allocation3 + $0x58] sm:$0xff]
    %v344 = vld [vmem:[#allocation3 + $0x60] sm:$0xff]
    %v345 = vld [vmem:[#allocation3 + $0x68] sm:$0xff]
    %v346 = vld [vmem:[#allocation3 + $0x70] sm:$0xff]
    %v347 = vld [vmem:[#allocation3 + $0x78] sm:$0xff]
    %v348 = vld [vmem:[%s5] sm:$0xf]
    %v350 = vlaneseq
    %v351 = vshrl.u32 %v350, 7
    %v352 = vsub.s32 0, %v351
    %v353 = vrot.slane %v348, %v352
    %v354 = vlaneseq
    %v355 = vshrl.u32 %v354, 7
    %v356 = vsub.s32 1, %v355
    %v357 = vrot.slane %v348, %v356
    %v358 = vlaneseq
    %v359 = vshrl.u32 %v358, 7
    %v360 = vsub.s32 2, %v359
    %v361 = vrot.slane %v348, %v360
    %v362 = vlaneseq
    %v363 = vshrl.u32 %v362, 7
    %v364 = vsub.s32 3, %v363
    %v365 = vrot.slane %v348, %v364
    %v386 = vunpack.c.l.b16 %v332
    %v387 = vunpack.c.h.b16 %v332
    %v388 = vunpack.c.l.b16 %v333
    %v389 = vunpack.c.h.b16 %v333
    %v390 = vunpack.c.l.b16 %v334
    %v391 = vunpack.c.h.b16 %v334
    %v392 = vunpack.c.l.b16 %v335
    %v393 = vunpack.c.h.b16 %v335
    %v394 = vunpack.c.l.b16 %v336
    %v395 = vunpack.c.h.b16 %v336
    %v396 = vunpack.c.l.b16 %v337
    %v397 = vunpack.c.h.b16 %v337
    %v398 = vunpack.c.l.b16 %v338
    %v399 = vunpack.c.h.b16 %v338
    %v400 = vunpack.c.l.b16 %v339
    %v401 = vunpack.c.h.b16 %v339
    %v402 = vunpack.c.l.b16 %v340
    %v403 = vunpack.c.h.b16 %v340
    %v404 = vunpack.c.l.b16 %v341
    %v405 = vunpack.c.h.b16 %v341
    %v406 = vunpack.c.l.b16 %v342
    %v407 = vunpack.c.h.b16 %v342
    %v408 = vunpack.c.l.b16 %v343
    %v409 = vunpack.c.h.b16 %v343
    %v410 = vunpack.c.l.b16 %v344
    %v411 = vunpack.c.h.b16 %v344
    %v412 = vunpack.c.l.b16 %v345
    %v413 = vunpack.c.h.b16 %v345
    %v414 = vunpack.c.l.b16 %v346
    %v415 = vunpack.c.h.b16 %v346
    %v416 = vunpack.c.l.b16 %v347
    %v417 = vunpack.c.h.b16 %v347
    %v418 = vpack.c.b16 %v390, %v386
    %v419 = vpack.c.b16 %v391, %v387
    %v420 = vpack.c.b16 %v392, %v388
    %v421 = vpack.c.b16 %v393, %v389
    %v422 = vpack.c.b16 %v398, %v394
    %v423 = vpack.c.b16 %v399, %v395
    %v424 = vpack.c.b16 %v400, %v396
    %v425 = vpack.c.b16 %v401, %v397
    %v426 = vpack.c.b16 %v406, %v402
    %v427 = vpack.c.b16 %v407, %v403
    %v428 = vpack.c.b16 %v408, %v404
    %v429 = vpack.c.b16 %v409, %v405
    %v430 = vpack.c.b16 %v414, %v410
    %v431 = vpack.c.b16 %v415, %v411
    %v432 = vpack.c.b16 %v416, %v412
    %v433 = vpack.c.b16 %v417, %v413
    %vm450 = vcmask 523264
    %v452 = vsel %vm450, %v328, 0
    %v455 = vsel %vm450, %v329, 0
    %v458 = vsel %vm450, %v330, 0
    %v461 = vsel %vm450, %v331, 0
    %463 = vmatprep.subr.bf16.mxu0 0
    %464 = vmatpush1.bf16.msra.mxu0 0
    %465 = vmatprep.subr.bf16.mxu0 0
    %466 = vmatpush1.bf16.msra.mxu0 0
    %467 = vmatprep.subr.bf16.mxu0 0
    %468 = vmatpush1.bf16.msra.mxu0 0
    %469 = vmatprep.subr.bf16.mxu0 0
    %470 = vmatpush1.bf16.msra.mxu0 0
    %471 = vmatprep.subr.bf16.mxu0 %v431
    %472 = vmatpush1.bf16.msra.mxu0 %v430
    %473 = vmatprep.subr.bf16.mxu0 %v427
    %474 = vmatpush1.bf16.msra.mxu0 %v426
    %475 = vmatprep.subr.bf16.mxu0 %v423
    %476 = vmatpush1.bf16.msra.mxu0 %v422
    %477 = vmatprep.subr.bf16.mxu0 %v419
    %478 = vmatpush1.bf16.msra.mxu0 %v418
    %479 = vmatprep.subr.bf16.mxu0 0
    %480 = vmatpush2.bf16.msra.mxu0 0
    %481 = vmatprep.subr.bf16.mxu0 0
    %482 = vmatpush2.bf16.msra.mxu0 0
    %483 = vmatprep.subr.bf16.mxu0 0
    %484 = vmatpush2.bf16.msra.mxu0 0
    %485 = vmatprep.subr.bf16.mxu0 0
    %486 = vmatpush2.bf16.msra.mxu0 0
    %487 = vmatprep.subr.bf16.mxu0 0
    %488 = vmatpush2.bf16.msra.mxu0 0
    %489 = vmatprep.subr.bf16.mxu0 0
    %490 = vmatpush2.bf16.msra.mxu0 0
    %491 = vmatprep.subr.bf16.mxu0 0
    %492 = vmatpush2.bf16.msra.mxu0 0
    %493 = vmatprep.subr.bf16.mxu0 0
    %494 = vmatpush2.bf16.msra.mxu0 0
    %495 = vmatprep.mubr.bf16.mxu0 0
    %496 = vmatmul.mubr.bf16.gmra.mxu0 %v452
    %v497 = vpop.f32.mrf.mxu0
    %v498 = vadd.f32 %v353, %v497
    %v499 = vpop.f32.mrf.mxu0
    %v500 = vadd.f32 %v357, %v499
    %v501 = vpop.f32.mrf.mxu0
    %v502 = vadd.f32 %v353, %v501
    %v503 = vpop.f32.mrf.mxu0
    %v504 = vadd.f32 %v357, %v503
    %505 = vmatprep.mubr.bf16.mxu0 0
    %506 = vmatmul.mubr.bf16.gmra.mxu0 %v455
    %v507 = vpop.f32.mrf.mxu0
    %v508 = vadd.f32 %v353, %v507
    %v509 = vpop.f32.mrf.mxu0
    %v510 = vadd.f32 %v357, %v509
    %v511 = vpop.f32.mrf.mxu0
    %v512 = vadd.f32 %v353, %v511
    %v513 = vpop.f32.mrf.mxu0
    %v514 = vadd.f32 %v357, %v513
    %515 = vmatprep.mubr.bf16.mxu0 0
    %516 = vmatmul.mubr.bf16.gmra.mxu0 %v458
    %v517 = vpop.f32.mrf.mxu0
    %v518 = vadd.f32 %v353, %v517
    %v519 = vpop.f32.mrf.mxu0
    %v520 = vadd.f32 %v357, %v519
    %v521 = vpop.f32.mrf.mxu0
    %v522 = vadd.f32 %v353, %v521
    %v523 = vpop.f32.mrf.mxu0
    %v524 = vadd.f32 %v357, %v523
    %525 = vmatprep.mubr.bf16.mxu0 0
    %526 = vmatmul.mubr.bf16.gmra.mxu0 %v461
    %v527 = vpop.f32.mrf.mxu0
    %v528 = vadd.f32 %v353, %v527
    %v529 = vpop.f32.mrf.mxu0
    %v530 = vadd.f32 %v357, %v529
    %v531 = vpop.f32.mrf.mxu0
    %v532 = vadd.f32 %v353, %v531
    %v533 = vpop.f32.mrf.mxu0
    %v534 = vadd.f32 %v357, %v533
    %535 = vdwg.mxu0
    %536 = vmatprep.subr.bf16.mxu0 0
    %537 = vmatpush1.bf16.msra.mxu0 0
    %538 = vmatprep.subr.bf16.mxu0 0
    %539 = vmatpush1.bf16.msra.mxu0 0
    %540 = vmatprep.subr.bf16.mxu0 0
    %541 = vmatpush1.bf16.msra.mxu0 0
    %542 = vmatprep.subr.bf16.mxu0 0
    %543 = vmatpush1.bf16.msra.mxu0 0
    %544 = vmatprep.subr.bf16.mxu0 %v433
    %545 = vmatpush1.bf16.msra.mxu0 %v432
    %546 = vmatprep.subr.bf16.mxu0 %v429
    %547 = vmatpush1.bf16.msra.mxu0 %v428
    %548 = vmatprep.subr.bf16.mxu0 %v425
    %549 = vmatpush1.bf16.msra.mxu0 %v424
    %550 = vmatprep.subr.bf16.mxu0 %v421
    %551 = vmatpush1.bf16.msra.mxu0 %v420
    %552 = vmatprep.subr.bf16.mxu0 0
    %553 = vmatpush2.bf16.msra.mxu0 0
    %554 = vmatprep.subr.bf16.mxu0 0
    %555 = vmatpush2.bf16.msra.mxu0 0
    %556 = vmatprep.subr.bf16.mxu0 0
    %557 = vmatpush2.bf16.msra.mxu0 0
    %558 = vmatprep.subr.bf16.mxu0 0
    %559 = vmatpush2.bf16.msra.mxu0 0
    %560 = vmatprep.subr.bf16.mxu0 0
    %561 = vmatpush2.bf16.msra.mxu0 0
    %562 = vmatprep.subr.bf16.mxu0 0
    %563 = vmatpush2.bf16.msra.mxu0 0
    %564 = vmatprep.subr.bf16.mxu0 0
    %565 = vmatpush2.bf16.msra.mxu0 0
    %566 = vmatprep.subr.bf16.mxu0 0
    %567 = vmatpush2.bf16.msra.mxu0 0
    %568 = vmatprep.mubr.bf16.mxu0 0
    %569 = vmatmul.mubr.bf16.gmra.mxu0 %v452
    %v570 = vpop.f32.mrf.mxu0
    %v571 = vadd.f32 %v361, %v570
    %v572 = vpop.f32.mrf.mxu0
    %v573 = vadd.f32 %v365, %v572
    %v574 = vpop.f32.mrf.mxu0
    %v575 = vadd.f32 %v361, %v574
    %v576 = vpop.f32.mrf.mxu0
    %v577 = vadd.f32 %v365, %v576
    %578 = vmatprep.mubr.bf16.mxu0 0
    %579 = vmatmul.mubr.bf16.gmra.mxu0 %v455
    %v580 = vpop.f32.mrf.mxu0
    %v581 = vadd.f32 %v361, %v580
    %v582 = vpop.f32.mrf.mxu0
    %v583 = vadd.f32 %v365, %v582
    %v584 = vpop.f32.mrf.mxu0
    %v585 = vadd.f32 %v361, %v584
    %v586 = vpop.f32.mrf.mxu0
    %v587 = vadd.f32 %v365, %v586
    %588 = vmatprep.mubr.bf16.mxu0 0
    %589 = vmatmul.mubr.bf16.gmra.mxu0 %v458
    %v590 = vpop.f32.mrf.mxu0
    %v591 = vadd.f32 %v361, %v590
    %v592 = vpop.f32.mrf.mxu0
    %v593 = vadd.f32 %v365, %v592
    %v594 = vpop.f32.mrf.mxu0
    %v595 = vadd.f32 %v361, %v594
    %v596 = vpop.f32.mrf.mxu0
    %v597 = vadd.f32 %v365, %v596
    %598 = vmatprep.mubr.bf16.mxu0 0
    %599 = vmatmul.mubr.bf16.gmra.mxu0 %v461
    %v600 = vpop.f32.mrf.mxu0
    %v601 = vadd.f32 %v361, %v600
    %v602 = vpop.f32.mrf.mxu0
    %v603 = vadd.f32 %v365, %v602
    %v604 = vpop.f32.mrf.mxu0
    %v605 = vadd.f32 %v361, %v604
    %v606 = vpop.f32.mrf.mxu0
    %v607 = vadd.f32 %v365, %v606
    %608 = vdwg.mxu0
    %v609 = vld [vmem:[#allocation6] sm:$0xff]
    %v610 = vld [vmem:[#allocation6 + $0x8] sm:$0xff]
    %v611 = vld [vmem:[#allocation6 + $0x10] sm:$0xff]
    %v612 = vld [vmem:[#allocation6 + $0x18] sm:$0xff]
    %v613 = vld [vmem:[#allocation6 + $0x20] sm:$0xff]
    %v614 = vld [vmem:[#allocation6 + $0x28] sm:$0xff]
    %v615 = vld [vmem:[#allocation6 + $0x30] sm:$0xff]
    %v616 = vld [vmem:[#allocation6 + $0x38] sm:$0xff]
    %v617 = vld [vmem:[#allocation6 + $0x40] sm:$0xff]
    %v618 = vld [vmem:[#allocation6 + $0x48] sm:$0xff]
    %v619 = vld [vmem:[#allocation6 + $0x50] sm:$0xff]
    %v620 = vld [vmem:[#allocation6 + $0x58] sm:$0xff]
    %v621 = vld [vmem:[#allocation6 + $0x60] sm:$0xff]
    %v622 = vld [vmem:[#allocation6 + $0x68] sm:$0xff]
    %v623 = vld [vmem:[#allocation6 + $0x70] sm:$0xff]
    %v624 = vld [vmem:[#allocation6 + $0x78] sm:$0xff]
    %v625 = vld [vmem:[#allocation6 + $0x80] sm:$0xff]
    %v626 = vld [vmem:[#allocation6 + $0x88] sm:$0xff]
    %v627 = vld [vmem:[#allocation6 + $0x90] sm:$0xff]
    %v628 = vld [vmem:[#allocation6 + $0x98] sm:$0xff]
    %v629 = vld [vmem:[#allocation6 + $0xa0] sm:$0xff]
    %v630 = vld [vmem:[#allocation6 + $0xa8] sm:$0xff]
    %v631 = vld [vmem:[#allocation6 + $0xb0] sm:$0xff]
    %v632 = vld [vmem:[#allocation6 + $0xb8] sm:$0xff]
    %v633 = vld [vmem:[#allocation6 + $0xc0] sm:$0xff]
    %v634 = vld [vmem:[#allocation6 + $0xc8] sm:$0xff]
    %v635 = vld [vmem:[#allocation6 + $0xd0] sm:$0xff]
    %v636 = vld [vmem:[#allocation6 + $0xd8] sm:$0xff]
    %v637 = vld [vmem:[#allocation6 + $0xe0] sm:$0xff]
    %v638 = vld [vmem:[#allocation6 + $0xe8] sm:$0xff]
    %v639 = vld [vmem:[#allocation6 + $0xf0] sm:$0xff]
    %v640 = vld [vmem:[#allocation6 + $0xf8] sm:$0xff]
    %v673 = vunpack.c.l.b16 %v609
    %v674 = vunpack.c.h.b16 %v609
    %v675 = vunpack.c.l.b16 %v610
    %v676 = vunpack.c.h.b16 %v610
    %v677 = vunpack.c.l.b16 %v611
    %v678 = vunpack.c.h.b16 %v611
    %v679 = vunpack.c.l.b16 %v612
    %v680 = vunpack.c.h.b16 %v612
    %v681 = vunpack.c.l.b16 %v613
    %v682 = vunpack.c.h.b16 %v613
    %v683 = vunpack.c.l.b16 %v614
    %v684 = vunpack.c.h.b16 %v614
    %v685 = vunpack.c.l.b16 %v615
    %v686 = vunpack.c.h.b16 %v615
    %v687 = vunpack.c.l.b16 %v616
    %v688 = vunpack.c.h.b16 %v616
    %v689 = vunpack.c.l.b16 %v617
    %v690 = vunpack.c.h.b16 %v617
    %v691 = vunpack.c.l.b16 %v618
    %v692 = vunpack.c.h.b16 %v618
    %v693 = vunpack.c.l.b16 %v619
    %v694 = vunpack.c.h.b16 %v619
    %v695 = vunpack.c.l.b16 %v620
    %v696 = vunpack.c.h.b16 %v620
    %v697 = vunpack.c.l.b16 %v621
    %v698 = vunpack.c.h.b16 %v621
    %v699 = vunpack.c.l.b16 %v622
    %v700 = vunpack.c.h.b16 %v622
    %v701 = vunpack.c.l.b16 %v623
    %v702 = vunpack.c.h.b16 %v623
    %v703 = vunpack.c.l.b16 %v624
    %v704 = vunpack.c.h.b16 %v624
    %v705 = vunpack.c.l.b16 %v625
    %v706 = vunpack.c.h.b16 %v625
    %v707 = vunpack.c.l.b16 %v626
    %v708 = vunpack.c.h.b16 %v626
    %v709 = vunpack.c.l.b16 %v627
    %v710 = vunpack.c.h.b16 %v627
    %v711 = vunpack.c.l.b16 %v628
    %v712 = vunpack.c.h.b16 %v628
    %v713 = vunpack.c.l.b16 %v629
    %v714 = vunpack.c.h.b16 %v629
    %v715 = vunpack.c.l.b16 %v630
    %v716 = vunpack.c.h.b16 %v630
    %v717 = vunpack.c.l.b16 %v631
    %v718 = vunpack.c.h.b16 %v631
    %v719 = vunpack.c.l.b16 %v632
    %v720 = vunpack.c.h.b16 %v632
    %v721 = vunpack.c.l.b16 %v633
    %v722 = vunpack.c.h.b16 %v633
    %v723 = vunpack.c.l.b16 %v634
    %v724 = vunpack.c.h.b16 %v634
    %v725 = vunpack.c.l.b16 %v635
    %v726 = vunpack.c.h.b16 %v635
    %v727 = vunpack.c.l.b16 %v636
    %v728 = vunpack.c.h.b16 %v636
    %v729 = vunpack.c.l.b16 %v637
    %v730 = vunpack.c.h.b16 %v637
    %v731 = vunpack.c.l.b16 %v638
    %v732 = vunpack.c.h.b16 %v638
    %v733 = vunpack.c.l.b16 %v639
    %v734 = vunpack.c.h.b16 %v639
    %v735 = vunpack.c.l.b16 %v640
    %v736 = vunpack.c.h.b16 %v640
    %v737 = vpack.c.b16 %v677, %v673
    %v738 = vpack.c.b16 %v678, %v674
    %v739 = vpack.c.b16 %v679, %v675
    %v740 = vpack.c.b16 %v680, %v676
    %v741 = vpack.c.b16 %v685, %v681
    %v742 = vpack.c.b16 %v686, %v682
    %v743 = vpack.c.b16 %v687, %v683
    %v744 = vpack.c.b16 %v688, %v684
    %v745 = vpack.c.b16 %v693, %v689
    %v746 = vpack.c.b16 %v694, %v690
    %v747 = vpack.c.b16 %v695, %v691
    %v748 = vpack.c.b16 %v696, %v692
    %v749 = vpack.c.b16 %v701, %v697
    %v750 = vpack.c.b16 %v702, %v698
    %v751 = vpack.c.b16 %v703, %v699
    %v752 = vpack.c.b16 %v704, %v700
    %v753 = vpack.c.b16 %v709, %v705
    %v754 = vpack.c.b16 %v710, %v706
    %v755 = vpack.c.b16 %v711, %v707
    %v756 = vpack.c.b16 %v712, %v708
    %v757 = vpack.c.b16 %v717, %v713
    %v758 = vpack.c.b16 %v718, %v714
    %v759 = vpack.c.b16 %v719, %v715
    %v760 = vpack.c.b16 %v720, %v716
    %v761 = vpack.c.b16 %v725, %v721
    %v762 = vpack.c.b16 %v726, %v722
    %v763 = vpack.c.b16 %v727, %v723
    %v764 = vpack.c.b16 %v728, %v724
    %v765 = vpack.c.b16 %v733, %v729
    %v766 = vpack.c.b16 %v734, %v730
    %v767 = vpack.c.b16 %v735, %v731
    %v768 = vpack.c.b16 %v736, %v732
    %801 = vmatprep.subr.bf16.mxu0 %v766
    %802 = vmatpush1.bf16.msra.mxu0 %v765
    %803 = vmatprep.subr.bf16.mxu0 %v762
    %804 = vmatpush1.bf16.msra.mxu0 %v761
    %805 = vmatprep.subr.bf16.mxu0 %v758
    %806 = vmatpush1.bf16.msra.mxu0 %v757
    %807 = vmatprep.subr.bf16.mxu0 %v754
    %808 = vmatpush1.bf16.msra.mxu0 %v753
    %809 = vmatprep.subr.bf16.mxu0 %v750
    %810 = vmatpush1.bf16.msra.mxu0 %v749
    %811 = vmatprep.subr.bf16.mxu0 %v746
    %812 = vmatpush1.bf16.msra.mxu0 %v745
    %813 = vmatprep.subr.bf16.mxu0 %v742
    %814 = vmatpush1.bf16.msra.mxu0 %v741
    %815 = vmatprep.subr.bf16.mxu0 %v738
    %816 = vmatpush1.bf16.msra.mxu0 %v737
    %817 = vmatprep.subr.bf16.mxu0 0
    %818 = vmatpush2.bf16.msra.mxu0 0
    %819 = vmatprep.subr.bf16.mxu0 0
    %820 = vmatpush2.bf16.msra.mxu0 0
    %821 = vmatprep.subr.bf16.mxu0 0
    %822 = vmatpush2.bf16.msra.mxu0 0
    %823 = vmatprep.subr.bf16.mxu0 0
    %824 = vmatpush2.bf16.msra.mxu0 0
    %825 = vmatprep.subr.bf16.mxu0 0
    %826 = vmatpush2.bf16.msra.mxu0 0
    %827 = vmatprep.subr.bf16.mxu0 0
    %828 = vmatpush2.bf16.msra.mxu0 0
    %829 = vmatprep.subr.bf16.mxu0 0
    %830 = vmatpush2.bf16.msra.mxu0 0
    %831 = vmatprep.subr.bf16.mxu0 0
    %832 = vmatpush2.bf16.msra.mxu0 0
    %833 = vmatprep.mubr.bf16.mxu0 0
    %834 = vmatmul.mubr.bf16.gmra.mxu0 0
    %v835 = vpop.f32.mrf.mxu0
    %v836 = vadd.f32 0.0, %v835
    %v837 = vpop.f32.mrf.mxu0
    %v838 = vadd.f32 0.0, %v837
    %v839 = vpop.f32.mrf.mxu0
    %v840 = vpop.f32.mrf.mxu0
    %841 = vdwg.mxu0
    %842 = vmatprep.subr.bf16.mxu0 %v768
    %843 = vmatpush1.bf16.msra.mxu0 %v767
    %844 = vmatprep.subr.bf16.mxu0 %v764
    %845 = vmatpush1.bf16.msra.mxu0 %v763
    %846 = vmatprep.subr.bf16.mxu0 %v760
    %847 = vmatpush1.bf16.msra.mxu0 %v759
    %848 = vmatprep.subr.bf16.mxu0 %v756
    %849 = vmatpush1.bf16.msra.mxu0 %v755
    %850 = vmatprep.subr.bf16.mxu0 %v752
    %851 = vmatpush1.bf16.msra.mxu0 %v751
    %852 = vmatprep.subr.bf16.mxu0 %v748
    %853 = vmatpush1.bf16.msra.mxu0 %v747
    %854 = vmatprep.subr.bf16.mxu0 %v744
    %855 = vmatpush1.bf16.msra.mxu0 %v743
    %856 = vmatprep.subr.bf16.mxu0 %v740
    %857 = vmatpush1.bf16.msra.mxu0 %v739
    %858 = vmatprep.subr.bf16.mxu0 0
    %859 = vmatpush2.bf16.msra.mxu0 0
    %860 = vmatprep.subr.bf16.mxu0 0
    %861 = vmatpush2.bf16.msra.mxu0 0
    %862 = vmatprep.subr.bf16.mxu0 0
    %863 = vmatpush2.bf16.msra.mxu0 0
    %864 = vmatprep.subr.bf16.mxu0 0
    %865 = vmatpush2.bf16.msra.mxu0 0
    %866 = vmatprep.subr.bf16.mxu0 0
    %867 = vmatpush2.bf16.msra.mxu0 0
    %868 = vmatprep.subr.bf16.mxu0 0
    %869 = vmatpush2.bf16.msra.mxu0 0
    %870 = vmatprep.subr.bf16.mxu0 0
    %871 = vmatpush2.bf16.msra.mxu0 0
    %872 = vmatprep.subr.bf16.mxu0 0
    %873 = vmatpush2.bf16.msra.mxu0 0
    %874 = vmatprep.mubr.bf16.mxu0 0
    %875 = vmatmul.mubr.bf16.gmra.mxu0 0
    %v876 = vpop.f32.mrf.mxu0
    %v877 = vadd.f32 0.0, %v876
    %v878 = vpop.f32.mrf.mxu0
    %v879 = vadd.f32 0.0, %v878
    %v880 = vpop.f32.mrf.mxu0
    %v881 = vpop.f32.mrf.mxu0
    %882 = vdwg.mxu0
    %v883 = vadd.f32 %v498, %v836
    %v884 = vadd.f32 %v500, %v838
    %v885 = vadd.f32 %v571, %v877
    %v886 = vadd.f32 %v573, %v879
    %v887 = vxor.u32 %v883, 2147483648
    %v888 = vxor.u32 %v884, 2147483648
    %v889 = vxor.u32 %v885, 2147483648
    %v890 = vmul.f32 %v887, 1.442695
    %v891 = vpow.pop %v890
    %v892 = vmul.f32 %v888, 1.442695
    %v893 = vpow.pop %v892
    %v894 = vmul.f32 %v889, 1.442695
    %v895 = vpow.pop %v894
    %v896 = vadd.f32 %v891, 1.0
    %v897 = vadd.f32 %v893, 1.0
    %v898 = vadd.f32 %v895, 1.0
    %v899 = vrcp.pop %v896
    %v900 = vmul.f32 1.0, %v899
    %v901 = vrcp.pop %v897
    %v902 = vmul.f32 1.0, %v901
    %v903 = vrcp.pop %v898
    %v904 = vmul.f32 1.0, %v903
    %v905 = vtanh.pop %v886
    %v906 = vmul.f32 %v902, 0.0
    %v907 = vmul.f32 %v900, %v905
    %v908 = vadd.f32 %v906, %v907
    %v909 = vtanh.pop %v908
    %v910 = vmul.f32 %v904, %v909
    %911 = vst [vmem:[#allocation2] sm:$0xff] %v910
    %v912 = vpack.c.bf16 %v910, %v910
    %913 = vmatprep.subr.bf16.mxu0 %v766
    %914 = vmatpush1.bf16.msra.mxu0 %v765
    %915 = vmatprep.subr.bf16.mxu0 %v762
    %916 = vmatpush1.bf16.msra.mxu0 %v761
    %917 = vmatprep.subr.bf16.mxu0 %v758
    %918 = vmatpush1.bf16.msra.mxu0 %v757
    %919 = vmatprep.subr.bf16.mxu0 %v754
    %920 = vmatpush1.bf16.msra.mxu0 %v753
    %921 = vmatprep.subr.bf16.mxu0 %v750
    %922 = vmatpush1.bf16.msra.mxu0 %v749
    %923 = vmatprep.subr.bf16.mxu0 %v746
    %924 = vmatpush1.bf16.msra.mxu0 %v745
    %925 = vmatprep.subr.bf16.mxu0 %v742
    %926 = vmatpush1.bf16.msra.mxu0 %v741
    %927 = vmatprep.subr.bf16.mxu0 %v738
    %928 = vmatpush1.bf16.msra.mxu0 %v737
    %929 = vmatprep.subr.bf16.mxu0 0
    %930 = vmatpush2.bf16.msra.mxu0 0
    %931 = vmatprep.subr.bf16.mxu0 0
    %932 = vmatpush2.bf16.msra.mxu0 0
    %933 = vmatprep.subr.bf16.mxu0 0
    %934 = vmatpush2.bf16.msra.mxu0 0
    %935 = vmatprep.subr.bf16.mxu0 0
    %936 = vmatpush2.bf16.msra.mxu0 0
    %937 = vmatprep.subr.bf16.mxu0 0
    %938 = vmatpush2.bf16.msra.mxu0 0
    %939 = vmatprep.subr.bf16.mxu0 0
    %940 = vmatpush2.bf16.msra.mxu0 0
    %941 = vmatprep.subr.bf16.mxu0 0
    %942 = vmatpush2.bf16.msra.mxu0 0
    %943 = vmatprep.subr.bf16.mxu0 0
    %944 = vmatpush2.bf16.msra.mxu0 0
    %945 = vmatprep.mubr.bf16.mxu0 0
    %946 = vmatmul.mubr.bf16.gmra.mxu0 %v912
    %v947 = vpop.f32.mrf.mxu0
    %v948 = vadd.f32 0.0, %v947
    %v949 = vpop.f32.mrf.mxu0
    %v950 = vadd.f32 0.0, %v949
    %v951 = vpop.f32.mrf.mxu0
    %v952 = vpop.f32.mrf.mxu0
    %953 = vdwg.mxu0
    %954 = vmatprep.subr.bf16.mxu0 %v768
    %955 = vmatpush1.bf16.msra.mxu0 %v767
    %956 = vmatprep.subr.bf16.mxu0 %v764
    %957 = vmatpush1.bf16.msra.mxu0 %v763
    %958 = vmatprep.subr.bf16.mxu0 %v760
    %959 = vmatpush1.bf16.msra.mxu0 %v759
    %960 = vmatprep.subr.bf16.mxu0 %v756
    %961 = vmatpush1.bf16.msra.mxu0 %v755
    %962 = vmatprep.subr.bf16.mxu0 %v752
    %963 = vmatpush1.bf16.msra.mxu0 %v751
    %964 = vmatprep.subr.bf16.mxu0 %v748
    %965 = vmatpush1.bf16.msra.mxu0 %v747
    %966 = vmatprep.subr.bf16.mxu0 %v744
    %967 = vmatpush1.bf16.msra.mxu0 %v743
    %968 = vmatprep.subr.bf16.mxu0 %v740
    %969 = vmatpush1.bf16.msra.mxu0 %v739
    %970 = vmatprep.subr.bf16.mxu0 0
    %971 = vmatpush2.bf16.msra.mxu0 0
    %972 = vmatprep.subr.bf16.mxu0 0
    %973 = vmatpush2.bf16.msra.mxu0 0
    %974 = vmatprep.subr.bf16.mxu0 0
    %975 = vmatpush2.bf16.msra.mxu0 0
    %976 = vmatprep.subr.bf16.mxu0 0
    %977 = vmatpush2.bf16.msra.mxu0 0
    %978 = vmatprep.subr.bf16.mxu0 0
    %979 = vmatpush2.bf16.msra.mxu0 0
    %980 = vmatprep.subr.bf16.mxu0 0
    %981 = vmatpush2.bf16.msra.mxu0 0
    %982 = vmatprep.subr.bf16.mxu0 0
    %983 = vmatpush2.bf16.msra.mxu0 0
    %984 = vmatprep.subr.bf16.mxu0 0
    %985 = vmatpush2.bf16.msra.mxu0 0
    %986 = vmatprep.mubr.bf16.mxu0 0
    %987 = vmatmul.mubr.bf16.gmra.mxu0 %v912
    %v988 = vpop.f32.mrf.mxu0
    %v989 = vadd.f32 0.0, %v988
    %v990 = vpop.f32.mrf.mxu0
    %v991 = vadd.f32 0.0, %v990
    %v992 = vpop.f32.mrf.mxu0
    %v993 = vpop.f32.mrf.mxu0
    %994 = vdwg.mxu0
    %v995 = vadd.f32 %v502, %v948
    %v996 = vadd.f32 %v504, %v950
    %v997 = vadd.f32 %v575, %v989
    %v998 = vadd.f32 %v577, %v991
    %v999 = vxor.u32 %v995, 2147483648
    %v1000 = vxor.u32 %v996, 2147483648
    %v1001 = vxor.u32 %v997, 2147483648
    %v1002 = vmul.f32 %v999, 1.442695
    %v1003 = vpow.pop %v1002
    %v1004 = vmul.f32 %v1000, 1.442695
    %v1005 = vpow.pop %v1004
    %v1006 = vmul.f32 %v1001, 1.442695
    %v1007 = vpow.pop %v1006
    %v1008 = vadd.f32 %v1003, 1.0
    %v1009 = vadd.f32 %v1005, 1.0
    %v1010 = vadd.f32 %v1007, 1.0
    %v1011 = vrcp.pop %v1008
    %v1012 = vmul.f32 1.0, %v1011
    %v1013 = vrcp.pop %v1009
    %v1014 = vmul.f32 1.0, %v1013
    %v1015 = vrcp.pop %v1010
    %v1016 = vmul.f32 1.0, %v1015
    %v1017 = vtanh.pop %v998
    %v1018 = vmul.f32 %v1014, %v908
    %v1019 = vmul.f32 %v1012, %v1017
    %v1020 = vadd.f32 %v1018, %v1019
    %v1021 = vtanh.pop %v1020
    %v1022 = vmul.f32 %v1016, %v1021
    %1023 = vst [vmem:[#allocation2 + $0x8] sm:$0xff] %v1022
    %v1024 = vpack.c.bf16 %v1022, %v1022
    %1025 = vmatprep.subr.bf16.mxu0 %v766
    %1026 = vmatpush1.bf16.msra.mxu0 %v765
    %1027 = vmatprep.subr.bf16.mxu0 %v762
    %1028 = vmatpush1.bf16.msra.mxu0 %v761
    %1029 = vmatprep.subr.bf16.mxu0 %v758
    %1030 = vmatpush1.bf16.msra.mxu0 %v757
    %1031 = vmatprep.subr.bf16.mxu0 %v754
    %1032 = vmatpush1.bf16.msra.mxu0 %v753
    %1033 = vmatprep.subr.bf16.mxu0 %v750
    %1034 = vmatpush1.bf16.msra.mxu0 %v749
    %1035 = vmatprep.subr.bf16.mxu0 %v746
    %1036 = vmatpush1.bf16.msra.mxu0 %v745
    %1037 = vmatprep.subr.bf16.mxu0 %v742
    %1038 = vmatpush1.bf16.msra.mxu0 %v741
    %1039 = vmatprep.subr.bf16.mxu0 %v738
    %1040 = vmatpush1.bf16.msra.mxu0 %v737
    %1041 = vmatprep.subr.bf16.mxu0 0
    %1042 = vmatpush2.bf16.msra.mxu0 0
    %1043 = vmatprep.subr.bf16.mxu0 0
    %1044 = vmatpush2.bf16.msra.mxu0 0
    %1045 = vmatprep.subr.bf16.mxu0 0
    %1046 = vmatpush2.bf16.msra.mxu0 0
    %1047 = vmatprep.subr.bf16.mxu0 0
    %1048 = vmatpush2.bf16.msra.mxu0 0
    %1049 = vmatprep.subr.bf16.mxu0 0
    %1050 = vmatpush2.bf16.msra.mxu0 0
    %1051 = vmatprep.subr.bf16.mxu0 0
    %1052 = vmatpush2.bf16.msra.mxu0 0
    %1053 = vmatprep.subr.bf16.mxu0 0
    %1054 = vmatpush2.bf16.msra.mxu0 0
    %1055 = vmatprep.subr.bf16.mxu0 0
    %1056 = vmatpush2.bf16.msra.mxu0 0
    %1057 = vmatprep.mubr.bf16.mxu0 0
    %1058 = vmatmul.mubr.bf16.gmra.mxu0 %v1024
    %v1059 = vpop.f32.mrf.mxu0
    %v1060 = vadd.f32 0.0, %v1059
    %v1061 = vpop.f32.mrf.mxu0
    %v1062 = vadd.f32 0.0, %v1061
    %v1063 = vpop.f32.mrf.mxu0
    %v1064 = vpop.f32.mrf.mxu0
    %1065 = vdwg.mxu0
    %1066 = vmatprep.subr.bf16.mxu0 %v768
    %1067 = vmatpush1.bf16.msra.mxu0 %v767
    %1068 = vmatprep.subr.bf16.mxu0 %v764
    %1069 = vmatpush1.bf16.msra.mxu0 %v763
    %1070 = vmatprep.subr.bf16.mxu0 %v760
    %1071 = vmatpush1.bf16.msra.mxu0 %v759
    %1072 = vmatprep.subr.bf16.mxu0 %v756
    %1073 = vmatpush1.bf16.msra.mxu0 %v755
    %1074 = vmatprep.subr.bf16.mxu0 %v752
    %1075 = vmatpush1.bf16.msra.mxu0 %v751
    %1076 = vmatprep.subr.bf16.mxu0 %v748
    %1077 = vmatpush1.bf16.msra.mxu0 %v747
    %1078 = vmatprep.subr.bf16.mxu0 %v744
    %1079 = vmatpush1.bf16.msra.mxu0 %v743
    %1080 = vmatprep.subr.bf16.mxu0 %v740
    %1081 = vmatpush1.bf16.msra.mxu0 %v739
    %1082 = vmatprep.subr.bf16.mxu0 0
    %1083 = vmatpush2.bf16.msra.mxu0 0
    %1084 = vmatprep.subr.bf16.mxu0 0
    %1085 = vmatpush2.bf16.msra.mxu0 0
    %1086 = vmatprep.subr.bf16.mxu0 0
    %1087 = vmatpush2.bf16.msra.mxu0 0
    %1088 = vmatprep.subr.bf16.mxu0 0
    %1089 = vmatpush2.bf16.msra.mxu0 0
    %1090 = vmatprep.subr.bf16.mxu0 0
    %1091 = vmatpush2.bf16.msra.mxu0 0
    %1092 = vmatprep.subr.bf16.mxu0 0
    %1093 = vmatpush2.bf16.msra.mxu0 0
    %1094 = vmatprep.subr.bf16.mxu0 0
    %1095 = vmatpush2.bf16.msra.mxu0 0
    %1096 = vmatprep.subr.bf16.mxu0 0
    %1097 = vmatpush2.bf16.msra.mxu0 0
    %1098 = vmatprep.mubr.bf16.mxu0 0
    %1099 = vmatmul.mubr.bf16.gmra.mxu0 %v1024
    %v1100 = vpop.f32.mrf.mxu0
    %v1101 = vadd.f32 0.0, %v1100
    %v1102 = vpop.f32.mrf.mxu0
    %v1103 = vadd.f32 0.0, %v1102
    %v1104 = vpop.f32.mrf.mxu0
    %v1105 = vpop.f32.mrf.mxu0
    %1106 = vdwg.mxu0
    %v1107 = vadd.f32 %v508, %v1060
    %v1108 = vadd.f32 %v510, %v1062
    %v1109 = vadd.f32 %v581, %v1101
    %v1110 = vadd.f32 %v583, %v1103
    %v1111 = vxor.u32 %v1107, 2147483648
    %v1112 = vxor.u32 %v1108, 2147483648
    %v1113 = vxor.u32 %v1109, 2147483648
    %v1114 = vmul.f32 %v1111, 1.442695
    %v1115 = vpow.pop %v1114
    %v1116 = vmul.f32 %v1112, 1.442695
    %v1117 = vpow.pop %v1116
    %v1118 = vmul.f32 %v1113, 1.442695
    %v1119 = vpow.pop %v1118
    %v1120 = vadd.f32 %v1115, 1.0
    %v1121 = vadd.f32 %v1117, 1.0
    %v1122 = vadd.f32 %v1119, 1.0
    %v1123 = vrcp.pop %v1120
    %v1124 = vmul.f32 1.0, %v1123
    %v1125 = vrcp.pop %v1121
    %v1126 = vmul.f32 1.0, %v1125
    %v1127 = vrcp.pop %v1122
    %v1128 = vmul.f32 1.0, %v1127
    %v1129 = vtanh.pop %v1110
    %v1130 = vmul.f32 %v1126, %v1020
    %v1131 = vmul.f32 %v1124, %v1129
    %v1132 = vadd.f32 %v1130, %v1131
    %v1133 = vtanh.pop %v1132
    %v1134 = vmul.f32 %v1128, %v1133
    %1135 = vst [vmem:[#allocation2 + $0x10] sm:$0xff] %v1134
    %v1136 = vpack.c.bf16 %v1134, %v1134
    %1137 = vmatprep.subr.bf16.mxu0 %v766
    %1138 = vmatpush1.bf16.msra.mxu0 %v765
    %1139 = vmatprep.subr.bf16.mxu0 %v762
    %1140 = vmatpush1.bf16.msra.mxu0 %v761
    %1141 = vmatprep.subr.bf16.mxu0 %v758
    %1142 = vmatpush1.bf16.msra.mxu0 %v757
    %1143 = vmatprep.subr.bf16.mxu0 %v754
    %1144 = vmatpush1.bf16.msra.mxu0 %v753
    %1145 = vmatprep.subr.bf16.mxu0 %v750
    %1146 = vmatpush1.bf16.msra.mxu0 %v749
    %1147 = vmatprep.subr.bf16.mxu0 %v746
    %1148 = vmatpush1.bf16.msra.mxu0 %v745
    %1149 = vmatprep.subr.bf16.mxu0 %v742
    %1150 = vmatpush1.bf16.msra.mxu0 %v741
    %1151 = vmatprep.subr.bf16.mxu0 %v738
    %1152 = vmatpush1.bf16.msra.mxu0 %v737
    %1153 = vmatprep.subr.bf16.mxu0 0
    %1154 = vmatpush2.bf16.msra.mxu0 0
    %1155 = vmatprep.subr.bf16.mxu0 0
    %1156 = vmatpush2.bf16.msra.mxu0 0
    %1157 = vmatprep.subr.bf16.mxu0 0
    %1158 = vmatpush2.bf16.msra.mxu0 0
    %1159 = vmatprep.subr.bf16.mxu0 0
    %1160 = vmatpush2.bf16.msra.mxu0 0
    %1161 = vmatprep.subr.bf16.mxu0 0
    %1162 = vmatpush2.bf16.msra.mxu0 0
    %1163 = vmatprep.subr.bf16.mxu0 0
    %1164 = vmatpush2.bf16.msra.mxu0 0
    %1165 = vmatprep.subr.bf16.mxu0 0
    %1166 = vmatpush2.bf16.msra.mxu0 0
    %1167 = vmatprep.subr.bf16.mxu0 0
    %1168 = vmatpush2.bf16.msra.mxu0 0
    %1169 = vmatprep.mubr.bf16.mxu0 0
    %1170 = vmatmul.mubr.bf16.gmra.mxu0 %v1136
    %v1171 = vpop.f32.mrf.mxu0
    %v1172 = vadd.f32 0.0, %v1171
    %v1173 = vpop.f32.mrf.mxu0
    %v1174 = vadd.f32 0.0, %v1173
    %v1175 = vpop.f32.mrf.mxu0
    %v1176 = vpop.f32.mrf.mxu0
    %1177 = vdwg.mxu0
    %1178 = vmatprep.subr.bf16.mxu0 %v768
    %1179 = vmatpush1.bf16.msra.mxu0 %v767
    %1180 = vmatprep.subr.bf16.mxu0 %v764
    %1181 = vmatpush1.bf16.msra.mxu0 %v763
    %1182 = vmatprep.subr.bf16.mxu0 %v760
    %1183 = vmatpush1.bf16.msra.mxu0 %v759
    %1184 = vmatprep.subr.bf16.mxu0 %v756
    %1185 = vmatpush1.bf16.msra.mxu0 %v755
    %1186 = vmatprep.subr.bf16.mxu0 %v752
    %1187 = vmatpush1.bf16.msra.mxu0 %v751
    %1188 = vmatprep.subr.bf16.mxu0 %v748
    %1189 = vmatpush1.bf16.msra.mxu0 %v747
    %1190 = vmatprep.subr.bf16.mxu0 %v744
    %1191 = vmatpush1.bf16.msra.mxu0 %v743
    %1192 = vmatprep.subr.bf16.mxu0 %v740
    %1193 = vmatpush1.bf16.msra.mxu0 %v739
    %1194 = vmatprep.subr.bf16.mxu0 0
    %1195 = vmatpush2.bf16.msra.mxu0 0
    %1196 = vmatprep.subr.bf16.mxu0 0
    %1197 = vmatpush2.bf16.msra.mxu0 0
    %1198 = vmatprep.subr.bf16.mxu0 0
    %1199 = vmatpush2.bf16.msra.mxu0 0
    %1200 = vmatprep.subr.bf16.mxu0 0
    %1201 = vmatpush2.bf16.msra.mxu0 0
    %1202 = vmatprep.subr.bf16.mxu0 0
    %1203 = vmatpush2.bf16.msra.mxu0 0
    %1204 = vmatprep.subr.bf16.mxu0 0
    %1205 = vmatpush2.bf16.msra.mxu0 0
    %1206 = vmatprep.subr.bf16.mxu0 0
    %1207 = vmatpush2.bf16.msra.mxu0 0
    %1208 = vmatprep.subr.bf16.mxu0 0
    %1209 = vmatpush2.bf16.msra.mxu0 0
    %1210 = vmatprep.mubr.bf16.mxu0 0
    %1211 = vmatmul.mubr.bf16.gmra.mxu0 %v1136
    %v1212 = vpop.f32.mrf.mxu0
    %v1213 = vadd.f32 0.0, %v1212
    %v1214 = vpop.f32.mrf.mxu0
    %v1215 = vadd.f32 0.0, %v1214
    %v1216 = vpop.f32.mrf.mxu0
    %v1217 = vpop.f32.mrf.mxu0
    %1218 = vdwg.mxu0
    %v1219 = vadd.f32 %v512, %v1172
    %v1220 = vadd.f32 %v514, %v1174
    %v1221 = vadd.f32 %v585, %v1213
    %v1222 = vadd.f32 %v587, %v1215
    %v1223 = vxor.u32 %v1219, 2147483648
    %v1224 = vxor.u32 %v1220, 2147483648
    %v1225 = vxor.u32 %v1221, 2147483648
    %v1226 = vmul.f32 %v1223, 1.442695
    %v1227 = vpow.pop %v1226
    %v1228 = vmul.f32 %v1224, 1.442695
    %v1229 = vpow.pop %v1228
    %v1230 = vmul.f32 %v1225, 1.442695
    %v1231 = vpow.pop %v1230
    %v1232 = vadd.f32 %v1227, 1.0
    %v1233 = vadd.f32 %v1229, 1.0
    %v1234 = vadd.f32 %v1231, 1.0
    %v1235 = vrcp.pop %v1232
    %v1236 = vmul.f32 1.0, %v1235
    %v1237 = vrcp.pop %v1233
    %v1238 = vmul.f32 1.0, %v1237
    %v1239 = vrcp.pop %v1234
    %v1240 = vmul.f32 1.0, %v1239
    %v1241 = vtanh.pop %v1222
    %v1242 = vmul.f32 %v1238, %v1132
    %v1243 = vmul.f32 %v1236, %v1241
    %v1244 = vadd.f32 %v1242, %v1243
    %v1245 = vtanh.pop %v1244
    %v1246 = vmul.f32 %v1240, %v1245
    %1247 = vst [vmem:[#allocation2 + $0x18] sm:$0xff] %v1246
    %v1248 = vpack.c.bf16 %v1246, %v1246
    %1249 = vmatprep.subr.bf16.mxu0 %v766
    %1250 = vmatpush1.bf16.msra.mxu0 %v765
    %1251 = vmatprep.subr.bf16.mxu0 %v762
    %1252 = vmatpush1.bf16.msra.mxu0 %v761
    %1253 = vmatprep.subr.bf16.mxu0 %v758
    %1254 = vmatpush1.bf16.msra.mxu0 %v757
    %1255 = vmatprep.subr.bf16.mxu0 %v754
    %1256 = vmatpush1.bf16.msra.mxu0 %v753
    %1257 = vmatprep.subr.bf16.mxu0 %v750
    %1258 = vmatpush1.bf16.msra.mxu0 %v749
    %1259 = vmatprep.subr.bf16.mxu0 %v746
    %1260 = vmatpush1.bf16.msra.mxu0 %v745
    %1261 = vmatprep.subr.bf16.mxu0 %v742
    %1262 = vmatpush1.bf16.msra.mxu0 %v741
    %1263 = vmatprep.subr.bf16.mxu0 %v738
    %1264 = vmatpush1.bf16.msra.mxu0 %v737
    %1265 = vmatprep.subr.bf16.mxu0 0
    %1266 = vmatpush2.bf16.msra.mxu0 0
    %1267 = vmatprep.subr.bf16.mxu0 0
    %1268 = vmatpush2.bf16.msra.mxu0 0
    %1269 = vmatprep.subr.bf16.mxu0 0
    %1270 = vmatpush2.bf16.msra.mxu0 0
    %1271 = vmatprep.subr.bf16.mxu0 0
    %1272 = vmatpush2.bf16.msra.mxu0 0
    %1273 = vmatprep.subr.bf16.mxu0 0
    %1274 = vmatpush2.bf16.msra.mxu0 0
    %1275 = vmatprep.subr.bf16.mxu0 0
    %1276 = vmatpush2.bf16.msra.mxu0 0
    %1277 = vmatprep.subr.bf16.mxu0 0
    %1278 = vmatpush2.bf16.msra.mxu0 0
    %1279 = vmatprep.subr.bf16.mxu0 0
    %1280 = vmatpush2.bf16.msra.mxu0 0
    %1281 = vmatprep.mubr.bf16.mxu0 0
    %1282 = vmatmul.mubr.bf16.gmra.mxu0 %v1248
    %v1283 = vpop.f32.mrf.mxu0
    %v1284 = vadd.f32 0.0, %v1283
    %v1285 = vpop.f32.mrf.mxu0
    %v1286 = vadd.f32 0.0, %v1285
    %v1287 = vpop.f32.mrf.mxu0
    %v1288 = vpop.f32.mrf.mxu0
    %1289 = vdwg.mxu0
    %1290 = vmatprep.subr.bf16.mxu0 %v768
    %1291 = vmatpush1.bf16.msra.mxu0 %v767
    %1292 = vmatprep.subr.bf16.mxu0 %v764
    %1293 = vmatpush1.bf16.msra.mxu0 %v763
    %1294 = vmatprep.subr.bf16.mxu0 %v760
    %1295 = vmatpush1.bf16.msra.mxu0 %v759
    %1296 = vmatprep.subr.bf16.mxu0 %v756
    %1297 = vmatpush1.bf16.msra.mxu0 %v755
    %1298 = vmatprep.subr.bf16.mxu0 %v752
    %1299 = vmatpush1.bf16.msra.mxu0 %v751
    %1300 = vmatprep.subr.bf16.mxu0 %v748
    %1301 = vmatpush1.bf16.msra.mxu0 %v747
    %1302 = vmatprep.subr.bf16.mxu0 %v744
    %1303 = vmatpush1.bf16.msra.mxu0 %v743
    %1304 = vmatprep.subr.bf16.mxu0 %v740
    %1305 = vmatpush1.bf16.msra.mxu0 %v739
    %1306 = vmatprep.subr.bf16.mxu0 0
    %1307 = vmatpush2.bf16.msra.mxu0 0
    %1308 = vmatprep.subr.bf16.mxu0 0
    %1309 = vmatpush2.bf16.msra.mxu0 0
    %1310 = vmatprep.subr.bf16.mxu0 0
    %1311 = vmatpush2.bf16.msra.mxu0 0
    %1312 = vmatprep.subr.bf16.mxu0 0
    %1313 = vmatpush2.bf16.msra.mxu0 0
    %1314 = vmatprep.subr.bf16.mxu0 0
    %1315 = vmatpush2.bf16.msra.mxu0 0
    %1316 = vmatprep.subr.bf16.mxu0 0
    %1317 = vmatpush2.bf16.msra.mxu0 0
    %1318 = vmatprep.subr.bf16.mxu0 0
    %1319 = vmatpush2.bf16.msra.mxu0 0
    %1320 = vmatprep.subr.bf16.mxu0 0
    %1321 = vmatpush2.bf16.msra.mxu0 0
    %1322 = vmatprep.mubr.bf16.mxu0 0
    %1323 = vmatmul.mubr.bf16.gmra.mxu0 %v1248
    %v1324 = vpop.f32.mrf.mxu0
    %v1325 = vadd.f32 0.0, %v1324
    %v1326 = vpop.f32.mrf.mxu0
    %v1327 = vadd.f32 0.0, %v1326
    %v1328 = vpop.f32.mrf.mxu0
    %v1329 = vpop.f32.mrf.mxu0
    %1330 = vdwg.mxu0
    %v1331 = vadd.f32 %v518, %v1284
    %v1332 = vadd.f32 %v520, %v1286
    %v1333 = vadd.f32 %v591, %v1325
    %v1334 = vadd.f32 %v593, %v1327
    %v1335 = vxor.u32 %v1331, 2147483648
    %v1336 = vxor.u32 %v1332, 2147483648
    %v1337 = vxor.u32 %v1333, 2147483648
    %v1338 = vmul.f32 %v1335, 1.442695
    %v1339 = vpow.pop %v1338
    %v1340 = vmul.f32 %v1336, 1.442695
    %v1341 = vpow.pop %v1340
    %v1342 = vmul.f32 %v1337, 1.442695
    %v1343 = vpow.pop %v1342
    %v1344 = vadd.f32 %v1339, 1.0
    %v1345 = vadd.f32 %v1341, 1.0
    %v1346 = vadd.f32 %v1343, 1.0
    %v1347 = vrcp.pop %v1344
    %v1348 = vmul.f32 1.0, %v1347
    %v1349 = vrcp.pop %v1345
    %v1350 = vmul.f32 1.0, %v1349
    %v1351 = vrcp.pop %v1346
    %v1352 = vmul.f32 1.0, %v1351
    %v1353 = vtanh.pop %v1334
    %v1354 = vmul.f32 %v1350, %v1244
    %v1355 = vmul.f32 %v1348, %v1353
    %v1356 = vadd.f32 %v1354, %v1355
    %v1357 = vtanh.pop %v1356
    %v1358 = vmul.f32 %v1352, %v1357
    %1359 = vst [vmem:[#allocation2 + $0x20] sm:$0xff] %v1358
    %v1360 = vpack.c.bf16 %v1358, %v1358
    %1361 = vmatprep.subr.bf16.mxu0 %v766
    %1362 = vmatpush1.bf16.msra.mxu0 %v765
    %1363 = vmatprep.subr.bf16.mxu0 %v762
    %1364 = vmatpush1.bf16.msra.mxu0 %v761
    %1365 = vmatprep.subr.bf16.mxu0 %v758
    %1366 = vmatpush1.bf16.msra.mxu0 %v757
    %1367 = vmatprep.subr.bf16.mxu0 %v754
    %1368 = vmatpush1.bf16.msra.mxu0 %v753
    %1369 = vmatprep.subr.bf16.mxu0 %v750
    %1370 = vmatpush1.bf16.msra.mxu0 %v749
    %1371 = vmatprep.subr.bf16.mxu0 %v746
    %1372 = vmatpush1.bf16.msra.mxu0 %v745
    %1373 = vmatprep.subr.bf16.mxu0 %v742
    %1374 = vmatpush1.bf16.msra.mxu0 %v741
    %1375 = vmatprep.subr.bf16.mxu0 %v738
    %1376 = vmatpush1.bf16.msra.mxu0 %v737
    %1377 = vmatprep.subr.bf16.mxu0 0
    %1378 = vmatpush2.bf16.msra.mxu0 0
    %1379 = vmatprep.subr.bf16.mxu0 0
    %1380 = vmatpush2.bf16.msra.mxu0 0
    %1381 = vmatprep.subr.bf16.mxu0 0
    %1382 = vmatpush2.bf16.msra.mxu0 0
    %1383 = vmatprep.subr.bf16.mxu0 0
    %1384 = vmatpush2.bf16.msra.mxu0 0
    %1385 = vmatprep.subr.bf16.mxu0 0
    %1386 = vmatpush2.bf16.msra.mxu0 0
    %1387 = vmatprep.subr.bf16.mxu0 0
    %1388 = vmatpush2.bf16.msra.mxu0 0
    %1389 = vmatprep.subr.bf16.mxu0 0
    %1390 = vmatpush2.bf16.msra.mxu0 0
    %1391 = vmatprep.subr.bf16.mxu0 0
    %1392 = vmatpush2.bf16.msra.mxu0 0
    %1393 = vmatprep.mubr.bf16.mxu0 0
    %1394 = vmatmul.mubr.bf16.gmra.mxu0 %v1360
    %v1395 = vpop.f32.mrf.mxu0
    %v1396 = vadd.f32 0.0, %v1395
    %v1397 = vpop.f32.mrf.mxu0
    %v1398 = vadd.f32 0.0, %v1397
    %v1399 = vpop.f32.mrf.mxu0
    %v1400 = vpop.f32.mrf.mxu0
    %1401 = vdwg.mxu0
    %1402 = vmatprep.subr.bf16.mxu0 %v768
    %1403 = vmatpush1.bf16.msra.mxu0 %v767
    %1404 = vmatprep.subr.bf16.mxu0 %v764
    %1405 = vmatpush1.bf16.msra.mxu0 %v763
    %1406 = vmatprep.subr.bf16.mxu0 %v760
    %1407 = vmatpush1.bf16.msra.mxu0 %v759
    %1408 = vmatprep.subr.bf16.mxu0 %v756
    %1409 = vmatpush1.bf16.msra.mxu0 %v755
    %1410 = vmatprep.subr.bf16.mxu0 %v752
    %1411 = vmatpush1.bf16.msra.mxu0 %v751
    %1412 = vmatprep.subr.bf16.mxu0 %v748
    %1413 = vmatpush1.bf16.msra.mxu0 %v747
    %1414 = vmatprep.subr.bf16.mxu0 %v744
    %1415 = vmatpush1.bf16.msra.mxu0 %v743
    %1416 = vmatprep.subr.bf16.mxu0 %v740
    %1417 = vmatpush1.bf16.msra.mxu0 %v739
    %1418 = vmatprep.subr.bf16.mxu0 0
    %1419 = vmatpush2.bf16.msra.mxu0 0
    %1420 = vmatprep.subr.bf16.mxu0 0
    %1421 = vmatpush2.bf16.msra.mxu0 0
    %1422 = vmatprep.subr.bf16.mxu0 0
    %1423 = vmatpush2.bf16.msra.mxu0 0
    %1424 = vmatprep.subr.bf16.mxu0 0
    %1425 = vmatpush2.bf16.msra.mxu0 0
    %1426 = vmatprep.subr.bf16.mxu0 0
    %1427 = vmatpush2.bf16.msra.mxu0 0
    %1428 = vmatprep.subr.bf16.mxu0 0
    %1429 = vmatpush2.bf16.msra.mxu0 0
    %1430 = vmatprep.subr.bf16.mxu0 0
    %1431 = vmatpush2.bf16.msra.mxu0 0
    %1432 = vmatprep.subr.bf16.mxu0 0
    %1433 = vmatpush2.bf16.msra.mxu0 0
    %1434 = vmatprep.mubr.bf16.mxu0 0
    %1435 = vmatmul.mubr.bf16.gmra.mxu0 %v1360
    %v1436 = vpop.f32.mrf.mxu0
    %v1437 = vadd.f32 0.0, %v1436
    %v1438 = vpop.f32.mrf.mxu0
    %v1439 = vadd.f32 0.0, %v1438
    %v1440 = vpop.f32.mrf.mxu0
    %v1441 = vpop.f32.mrf.mxu0
    %1442 = vdwg.mxu0
    %v1443 = vadd.f32 %v522, %v1396
    %v1444 = vadd.f32 %v524, %v1398
    %v1445 = vadd.f32 %v595, %v1437
    %v1446 = vadd.f32 %v597, %v1439
    %v1447 = vxor.u32 %v1443, 2147483648
    %v1448 = vxor.u32 %v1444, 2147483648
    %v1449 = vxor.u32 %v1445, 2147483648
    %v1450 = vmul.f32 %v1447, 1.442695
    %v1451 = vpow.pop %v1450
    %v1452 = vmul.f32 %v1448, 1.442695
    %v1453 = vpow.pop %v1452
    %v1454 = vmul.f32 %v1449, 1.442695
    %v1455 = vpow.pop %v1454
    %v1456 = vadd.f32 %v1451, 1.0
    %v1457 = vadd.f32 %v1453, 1.0
    %v1458 = vadd.f32 %v1455, 1.0
    %v1459 = vrcp.pop %v1456
    %v1460 = vmul.f32 1.0, %v1459
    %v1461 = vrcp.pop %v1457
    %v1462 = vmul.f32 1.0, %v1461
    %v1463 = vrcp.pop %v1458
    %v1464 = vmul.f32 1.0, %v1463
    %v1465 = vtanh.pop %v1446
    %v1466 = vmul.f32 %v1462, %v1356
    %v1467 = vmul.f32 %v1460, %v1465
    %v1468 = vadd.f32 %v1466, %v1467
    %v1469 = vtanh.pop %v1468
    %v1470 = vmul.f32 %v1464, %v1469
    %1471 = vst [vmem:[#allocation2 + $0x28] sm:$0xff] %v1470
    %v1472 = vpack.c.bf16 %v1470, %v1470
    %1473 = vmatprep.subr.bf16.mxu0 %v766
    %1474 = vmatpush1.bf16.msra.mxu0 %v765
    %1475 = vmatprep.subr.bf16.mxu0 %v762
    %1476 = vmatpush1.bf16.msra.mxu0 %v761
    %1477 = vmatprep.subr.bf16.mxu0 %v758
    %1478 = vmatpush1.bf16.msra.mxu0 %v757
    %1479 = vmatprep.subr.bf16.mxu0 %v754
    %1480 = vmatpush1.bf16.msra.mxu0 %v753
    %1481 = vmatprep.subr.bf16.mxu0 %v750
    %1482 = vmatpush1.bf16.msra.mxu0 %v749
    %1483 = vmatprep.subr.bf16.mxu0 %v746
    %1484 = vmatpush1.bf16.msra.mxu0 %v745
    %1485 = vmatprep.subr.bf16.mxu0 %v742
    %1486 = vmatpush1.bf16.msra.mxu0 %v741
    %1487 = vmatprep.subr.bf16.mxu0 %v738
    %1488 = vmatpush1.bf16.msra.mxu0 %v737
    %1489 = vmatprep.subr.bf16.mxu0 0
    %1490 = vmatpush2.bf16.msra.mxu0 0
    %1491 = vmatprep.subr.bf16.mxu0 0
    %1492 = vmatpush2.bf16.msra.mxu0 0
    %1493 = vmatprep.subr.bf16.mxu0 0
    %1494 = vmatpush2.bf16.msra.mxu0 0
    %1495 = vmatprep.subr.bf16.mxu0 0
    %1496 = vmatpush2.bf16.msra.mxu0 0
    %1497 = vmatprep.subr.bf16.mxu0 0
    %1498 = vmatpush2.bf16.msra.mxu0 0
    %1499 = vmatprep.subr.bf16.mxu0 0
    %1500 = vmatpush2.bf16.msra.mxu0 0
    %1501 = vmatprep.subr.bf16.mxu0 0
    %1502 = vmatpush2.bf16.msra.mxu0 0
    %1503 = vmatprep.subr.bf16.mxu0 0
    %1504 = vmatpush2.bf16.msra.mxu0 0
    %1505 = vmatprep.mubr.bf16.mxu0 0
    %1506 = vmatmul.mubr.bf16.gmra.mxu0 %v1472
    %v1507 = vpop.f32.mrf.mxu0
    %v1508 = vadd.f32 0.0, %v1507
    %v1509 = vpop.f32.mrf.mxu0
    %v1510 = vadd.f32 0.0, %v1509
    %v1511 = vpop.f32.mrf.mxu0
    %v1512 = vpop.f32.mrf.mxu0
    %1513 = vdwg.mxu0
    %1514 = vmatprep.subr.bf16.mxu0 %v768
    %1515 = vmatpush1.bf16.msra.mxu0 %v767
    %1516 = vmatprep.subr.bf16.mxu0 %v764
    %1517 = vmatpush1.bf16.msra.mxu0 %v763
    %1518 = vmatprep.subr.bf16.mxu0 %v760
    %1519 = vmatpush1.bf16.msra.mxu0 %v759
    %1520 = vmatprep.subr.bf16.mxu0 %v756
    %1521 = vmatpush1.bf16.msra.mxu0 %v755
    %1522 = vmatprep.subr.bf16.mxu0 %v752
    %1523 = vmatpush1.bf16.msra.mxu0 %v751
    %1524 = vmatprep.subr.bf16.mxu0 %v748
    %1525 = vmatpush1.bf16.msra.mxu0 %v747
    %1526 = vmatprep.subr.bf16.mxu0 %v744
    %1527 = vmatpush1.bf16.msra.mxu0 %v743
    %1528 = vmatprep.subr.bf16.mxu0 %v740
    %1529 = vmatpush1.bf16.msra.mxu0 %v739
    %1530 = vmatprep.subr.bf16.mxu0 0
    %1531 = vmatpush2.bf16.msra.mxu0 0
    %1532 = vmatprep.subr.bf16.mxu0 0
    %1533 = vmatpush2.bf16.msra.mxu0 0
    %1534 = vmatprep.subr.bf16.mxu0 0
    %1535 = vmatpush2.bf16.msra.mxu0 0
    %1536 = vmatprep.subr.bf16.mxu0 0
    %1537 = vmatpush2.bf16.msra.mxu0 0
    %1538 = vmatprep.subr.bf16.mxu0 0
    %1539 = vmatpush2.bf16.msra.mxu0 0
    %1540 = vmatprep.subr.bf16.mxu0 0
    %1541 = vmatpush2.bf16.msra.mxu0 0
    %1542 = vmatprep.subr.bf16.mxu0 0
    %1543 = vmatpush2.bf16.msra.mxu0 0
    %1544 = vmatprep.subr.bf16.mxu0 0
    %1545 = vmatpush2.bf16.msra.mxu0 0
    %1546 = vmatprep.mubr.bf16.mxu0 0
    %1547 = vmatmul.mubr.bf16.gmra.mxu0 %v1472
    %v1548 = vpop.f32.mrf.mxu0
    %v1549 = vadd.f32 0.0, %v1548
    %v1550 = vpop.f32.mrf.mxu0
    %v1551 = vadd.f32 0.0, %v1550
    %v1552 = vpop.f32.mrf.mxu0
    %v1553 = vpop.f32.mrf.mxu0
    %1554 = vdwg.mxu0
    %v1555 = vadd.f32 %v528, %v1508
    %v1556 = vadd.f32 %v530, %v1510
    %v1557 = vadd.f32 %v601, %v1549
    %v1558 = vadd.f32 %v603, %v1551
    %v1559 = vxor.u32 %v1555, 2147483648
    %v1560 = vxor.u32 %v1556, 2147483648
    %v1561 = vxor.u32 %v1557, 2147483648
    %v1562 = vmul.f32 %v1559, 1.442695
    %v1563 = vpow.pop %v1562
    %v1564 = vmul.f32 %v1560, 1.442695
    %v1565 = vpow.pop %v1564
    %v1566 = vmul.f32 %v1561, 1.442695
    %v1567 = vpow.pop %v1566
    %v1568 = vadd.f32 %v1563, 1.0
    %v1569 = vadd.f32 %v1565, 1.0
    %v1570 = vadd.f32 %v1567, 1.0
    %v1571 = vrcp.pop %v1568
    %v1572 = vmul.f32 1.0, %v1571
    %v1573 = vrcp.pop %v1569
    %v1574 = vmul.f32 1.0, %v1573
    %v1575 = vrcp.pop %v1570
    %v1576 = vmul.f32 1.0, %v1575
    %v1577 = vtanh.pop %v1558
    %v1578 = vmul.f32 %v1574, %v1468
    %v1579 = vmul.f32 %v1572, %v1577
    %v1580 = vadd.f32 %v1578, %v1579
    %v1581 = vtanh.pop %v1580
    %v1582 = vmul.f32 %v1576, %v1581
    %1583 = vst [vmem:[#allocation2 + $0x30] sm:$0xff] %v1582
    %v1584 = vpack.c.bf16 %v1582, %v1582
    %1585 = vmatprep.subr.bf16.mxu0 %v766
    %1586 = vmatpush1.bf16.msra.mxu0 %v765
    %1587 = vmatprep.subr.bf16.mxu0 %v762
    %1588 = vmatpush1.bf16.msra.mxu0 %v761
    %1589 = vmatprep.subr.bf16.mxu0 %v758
    %1590 = vmatpush1.bf16.msra.mxu0 %v757
    %1591 = vmatprep.subr.bf16.mxu0 %v754
    %1592 = vmatpush1.bf16.msra.mxu0 %v753
    %1593 = vmatprep.subr.bf16.mxu0 %v750
    %1594 = vmatpush1.bf16.msra.mxu0 %v749
    %1595 = vmatprep.subr.bf16.mxu0 %v746
    %1596 = vmatpush1.bf16.msra.mxu0 %v745
    %1597 = vmatprep.subr.bf16.mxu0 %v742
    %1598 = vmatpush1.bf16.msra.mxu0 %v741
    %1599 = vmatprep.subr.bf16.mxu0 %v738
    %1600 = vmatpush1.bf16.msra.mxu0 %v737
    %1601 = vmatprep.subr.bf16.mxu0 0
    %1602 = vmatpush2.bf16.msra.mxu0 0
    %1603 = vmatprep.subr.bf16.mxu0 0
    %1604 = vmatpush2.bf16.msra.mxu0 0
    %1605 = vmatprep.subr.bf16.mxu0 0
    %1606 = vmatpush2.bf16.msra.mxu0 0
    %1607 = vmatprep.subr.bf16.mxu0 0
    %1608 = vmatpush2.bf16.msra.mxu0 0
    %1609 = vmatprep.subr.bf16.mxu0 0
    %1610 = vmatpush2.bf16.msra.mxu0 0
    %1611 = vmatprep.subr.bf16.mxu0 0
    %1612 = vmatpush2.bf16.msra.mxu0 0
    %1613 = vmatprep.subr.bf16.mxu0 0
    %1614 = vmatpush2.bf16.msra.mxu0 0
    %1615 = vmatprep.subr.bf16.mxu0 0
    %1616 = vmatpush2.bf16.msra.mxu0 0
    %1617 = vmatprep.mubr.bf16.mxu0 0
    %1618 = vmatmul.mubr.bf16.gmra.mxu0 %v1584
    %v1619 = vpop.f32.mrf.mxu0
    %v1620 = vadd.f32 0.0, %v1619
    %v1621 = vpop.f32.mrf.mxu0
    %v1622 = vadd.f32 0.0, %v1621
    %v1623 = vpop.f32.mrf.mxu0
    %v1624 = vpop.f32.mrf.mxu0
    %1625 = vdwg.mxu0
    %1626 = vmatprep.subr.bf16.mxu0 %v768
    %1627 = vmatpush1.bf16.msra.mxu0 %v767
    %1628 = vmatprep.subr.bf16.mxu0 %v764
    %1629 = vmatpush1.bf16.msra.mxu0 %v763
    %1630 = vmatprep.subr.bf16.mxu0 %v760
    %1631 = vmatpush1.bf16.msra.mxu0 %v759
    %1632 = vmatprep.subr.bf16.mxu0 %v756
    %1633 = vmatpush1.bf16.msra.mxu0 %v755
    %1634 = vmatprep.subr.bf16.mxu0 %v752
    %1635 = vmatpush1.bf16.msra.mxu0 %v751
    %1636 = vmatprep.subr.bf16.mxu0 %v748
    %1637 = vmatpush1.bf16.msra.mxu0 %v747
    %1638 = vmatprep.subr.bf16.mxu0 %v744
    %1639 = vmatpush1.bf16.msra.mxu0 %v743
    %1640 = vmatprep.subr.bf16.mxu0 %v740
    %1641 = vmatpush1.bf16.msra.mxu0 %v739
    %1642 = vmatprep.subr.bf16.mxu0 0
    %1643 = vmatpush2.bf16.msra.mxu0 0
    %1644 = vmatprep.subr.bf16.mxu0 0
    %1645 = vmatpush2.bf16.msra.mxu0 0
    %1646 = vmatprep.subr.bf16.mxu0 0
    %1647 = vmatpush2.bf16.msra.mxu0 0
    %1648 = vmatprep.subr.bf16.mxu0 0
    %1649 = vmatpush2.bf16.msra.mxu0 0
    %1650 = vmatprep.subr.bf16.mxu0 0
    %1651 = vmatpush2.bf16.msra.mxu0 0
    %1652 = vmatprep.subr.bf16.mxu0 0
    %1653 = vmatpush2.bf16.msra.mxu0 0
    %1654 = vmatprep.subr.bf16.mxu0 0
    %1655 = vmatpush2.bf16.msra.mxu0 0
    %1656 = vmatprep.subr.bf16.mxu0 0
    %1657 = vmatpush2.bf16.msra.mxu0 0
    %1658 = vmatprep.mubr.bf16.mxu0 0
    %1659 = vmatmul.mubr.bf16.gmra.mxu0 %v1584
    %v1660 = vpop.f32.mrf.mxu0
    %v1661 = vadd.f32 0.0, %v1660
    %v1662 = vpop.f32.mrf.mxu0
    %v1663 = vadd.f32 0.0, %v1662
    %v1664 = vpop.f32.mrf.mxu0
    %v1665 = vpop.f32.mrf.mxu0
    %1666 = vdwg.mxu0
    %v1667 = vadd.f32 %v532, %v1620
    %v1668 = vadd.f32 %v534, %v1622
    %v1669 = vadd.f32 %v605, %v1661
    %v1670 = vadd.f32 %v607, %v1663
    %v1671 = vxor.u32 %v1667, 2147483648
    %v1672 = vxor.u32 %v1668, 2147483648
    %v1673 = vxor.u32 %v1669, 2147483648
    %v1674 = vmul.f32 %v1671, 1.442695
    %v1675 = vpow.pop %v1674
    %v1676 = vmul.f32 %v1672, 1.442695
    %v1677 = vpow.pop %v1676
    %v1678 = vmul.f32 %v1673, 1.442695
    %v1679 = vpow.pop %v1678
    %v1680 = vadd.f32 %v1675, 1.0
    %v1681 = vadd.f32 %v1677, 1.0
    %v1682 = vadd.f32 %v1679, 1.0
    %v1683 = vrcp.pop %v1680
    %v1684 = vmul.f32 1.0, %v1683
    %v1685 = vrcp.pop %v1681
    %v1686 = vmul.f32 1.0, %v1685
    %v1687 = vrcp.pop %v1682
    %v1688 = vmul.f32 1.0, %v1687
    %v1689 = vtanh.pop %v1670
    %v1690 = vmul.f32 %v1686, %v1580
    %v1691 = vmul.f32 %v1684, %v1689
    %v1692 = vadd.f32 %v1690, %v1691
    %v1693 = vtanh.pop %v1692
    %v1694 = vmul.f32 %v1688, %v1693
    %1695 = vst [vmem:[#allocation2 + $0x38] sm:$0xff] %v1694
    %v1696 = vld [vmem:[#allocation2] sm:$0xff]
    %v1697 = vld [vmem:[#allocation2 + $0x8] sm:$0xff]
    %v1698 = vld [vmem:[#allocation2 + $0x10] sm:$0xff]
    %v1699 = vld [vmem:[#allocation2 + $0x18] sm:$0xff]
    %v1700 = vld [vmem:[#allocation2 + $0x20] sm:$0xff]
    %v1701 = vld [vmem:[#allocation2 + $0x28] sm:$0xff]
    %v1702 = vld [vmem:[#allocation2 + $0x30] sm:$0xff]
    %v1703 = vld [vmem:[#allocation2 + $0x38] sm:$0xff]
    %v1704 = vpack.c.bf16 %v1697, %v1696
    %v1705 = vpack.c.bf16 %v1699, %v1698
    %v1706 = vpack.c.bf16 %v1701, %v1700
    %v1707 = vpack.c.bf16 %v1703, %v1702
    %v1708 = vld [vmem:[#allocation8] sm:$0xff]
    %v1709 = vld [vmem:[#allocation8 + $0x8] sm:$0xff]
    %v1710 = vld [vmem:[#allocation8 + $0x10] sm:$0xff]
    %v1711 = vld [vmem:[#allocation8 + $0x18] sm:$0xff]
    %v1712 = vld [vmem:[#allocation8 + $0x20] sm:$0xff]
    %v1713 = vld [vmem:[#allocation8 + $0x28] sm:$0xff]
    %v1714 = vld [vmem:[#allocation8 + $0x30] sm:$0xff]
    %v1715 = vld [vmem:[#allocation8 + $0x38] sm:$0xff]
    %v1716 = vld [vmem:[#allocation8 + $0x40] sm:$0xff]
    %v1717 = vld [vmem:[#allocation8 + $0x48] sm:$0xff]
    %v1718 = vld [vmem:[#allocation8 + $0x50] sm:$0xff]
    %v1719 = vld [vmem:[#allocation8 + $0x58] sm:$0xff]
    %v1720 = vld [vmem:[#allocation8 + $0x60] sm:$0xff]
    %v1721 = vld [vmem:[#allocation8 + $0x68] sm:$0xff]
    %v1722 = vld [vmem:[#allocation8 + $0x70] sm:$0xff]
    %v1723 = vld [vmem:[#allocation8 + $0x78] sm:$0xff]
    %v1724 = vld [vmem:[#allocation8 + $0x80] sm:$0xff]
    %v1725 = vld [vmem:[#allocation8 + $0x88] sm:$0xff]
    %v1726 = vld [vmem:[#allocation8 + $0x90] sm:$0xff]
    %v1727 = vld [vmem:[#allocation8 + $0x98] sm:$0xff]
    %v1728 = vld [vmem:[#allocation8 + $0xa0] sm:$0xff]
    %v1729 = vld [vmem:[#allocation8 + $0xa8] sm:$0xff]
    %v1730 = vld [vmem:[#allocation8 + $0xb0] sm:$0xff]
    %v1731 = vld [vmem:[#allocation8 + $0xb8] sm:$0xff]
    %v1732 = vld [vmem:[#allocation8 + $0xc0] sm:$0xff]
    %v1733 = vld [vmem:[#allocation8 + $0xc8] sm:$0xff]
    %v1734 = vld [vmem:[#allocation8 + $0xd0] sm:$0xff]
    %v1735 = vld [vmem:[#allocation8 + $0xd8] sm:$0xff]
    %v1736 = vld [vmem:[#allocation8 + $0xe0] sm:$0xff]
    %v1737 = vld [vmem:[#allocation8 + $0xe8] sm:$0xff]
    %v1738 = vld [vmem:[#allocation8 + $0xf0] sm:$0xff]
    %v1739 = vld [vmem:[#allocation8 + $0xf8] sm:$0xff]
    %v1740 = vld [vmem:[%s8] sm:$0xf]
    %v1742 = vlaneseq
    %v1743 = vshrl.u32 %v1742, 7
    %v1744 = vsub.s32 0, %v1743
    %v1745 = vrot.slane %v1740, %v1744
    %v1746 = vlaneseq
    %v1747 = vshrl.u32 %v1746, 7
    %v1748 = vsub.s32 1, %v1747
    %v1749 = vrot.slane %v1740, %v1748
    %v1750 = vlaneseq
    %v1751 = vshrl.u32 %v1750, 7
    %v1752 = vsub.s32 2, %v1751
    %v1753 = vrot.slane %v1740, %v1752
    %v1754 = vlaneseq
    %v1755 = vshrl.u32 %v1754, 7
    %v1756 = vsub.s32 3, %v1755
    %v1757 = vrot.slane %v1740, %v1756
    %v1794 = vunpack.c.l.b16 %v1708
    %v1795 = vunpack.c.h.b16 %v1708
    %v1796 = vunpack.c.l.b16 %v1709
    %v1797 = vunpack.c.h.b16 %v1709
    %v1798 = vunpack.c.l.b16 %v1710
    %v1799 = vunpack.c.h.b16 %v1710
    %v1800 = vunpack.c.l.b16 %v1711
    %v1801 = vunpack.c.h.b16 %v1711
    %v1802 = vunpack.c.l.b16 %v1712
    %v1803 = vunpack.c.h.b16 %v1712
    %v1804 = vunpack.c.l.b16 %v1713
    %v1805 = vunpack.c.h.b16 %v1713
    %v1806 = vunpack.c.l.b16 %v1714
    %v1807 = vunpack.c.h.b16 %v1714
    %v1808 = vunpack.c.l.b16 %v1715
    %v1809 = vunpack.c.h.b16 %v1715
    %v1810 = vunpack.c.l.b16 %v1716
    %v1811 = vunpack.c.h.b16 %v1716
    %v1812 = vunpack.c.l.b16 %v1717
    %v1813 = vunpack.c.h.b16 %v1717
    %v1814 = vunpack.c.l.b16 %v1718
    %v1815 = vunpack.c.h.b16 %v1718
    %v1816 = vunpack.c.l.b16 %v1719
    %v1817 = vunpack.c.h.b16 %v1719
    %v1818 = vunpack.c.l.b16 %v1720
    %v1819 = vunpack.c.h.b16 %v1720
    %v1820 = vunpack.c.l.b16 %v1721
    %v1821 = vunpack.c.h.b16 %v1721
    %v1822 = vunpack.c.l.b16 %v1722
    %v1823 = vunpack.c.h.b16 %v1722
    %v1824 = vunpack.c.l.b16 %v1723
    %v1825 = vunpack.c.h.b16 %v1723
    %v1826 = vunpack.c.l.b16 %v1724
    %v1827 = vunpack.c.h.b16 %v1724
    %v1828 = vunpack.c.l.b16 %v1725
    %v1829 = vunpack.c.h.b16 %v1725
    %v1830 = vunpack.c.l.b16 %v1726
    %v1831 = vunpack.c.h.b16 %v1726
    %v1832 = vunpack.c.l.b16 %v1727
    %v1833 = vunpack.c.h.b16 %v1727
    %v1834 = vunpack.c.l.b16 %v1728
    %v1835 = vunpack.c.h.b16 %v1728
    %v1836 = vunpack.c.l.b16 %v1729
    %v1837 = vunpack.c.h.b16 %v1729
    %v1838 = vunpack.c.l.b16 %v1730
    %v1839 = vunpack.c.h.b16 %v1730
    %v1840 = vunpack.c.l.b16 %v1731
    %v1841 = vunpack.c.h.b16 %v1731
    %v1842 = vunpack.c.l.b16 %v1732
    %v1843 = vunpack.c.h.b16 %v1732
    %v1844 = vunpack.c.l.b16 %v1733
    %v1845 = vunpack.c.h.b16 %v1733
    %v1846 = vunpack.c.l.b16 %v1734
    %v1847 = vunpack.c.h.b16 %v1734
    %v1848 = vunpack.c.l.b16 %v1735
    %v1849 = vunpack.c.h.b16 %v1735
    %v1850 = vunpack.c.l.b16 %v1736
    %v1851 = vunpack.c.h.b16 %v1736
    %v1852 = vunpack.c.l.b16 %v1737
    %v1853 = vunpack.c.h.b16 %v1737
    %v1854 = vunpack.c.l.b16 %v1738
    %v1855 = vunpack.c.h.b16 %v1738
    %v1856 = vunpack.c.l.b16 %v1739
    %v1857 = vunpack.c.h.b16 %v1739
    %v1858 = vpack.c.b16 %v1798, %v1794
    %v1859 = vpack.c.b16 %v1799, %v1795
    %v1860 = vpack.c.b16 %v1800, %v1796
    %v1861 = vpack.c.b16 %v1801, %v1797
    %v1862 = vpack.c.b16 %v1806, %v1802
    %v1863 = vpack.c.b16 %v1807, %v1803
    %v1864 = vpack.c.b16 %v1808, %v1804
    %v1865 = vpack.c.b16 %v1809, %v1805
    %v1866 = vpack.c.b16 %v1814, %v1810
    %v1867 = vpack.c.b16 %v1815, %v1811
    %v1868 = vpack.c.b16 %v1816, %v1812
    %v1869 = vpack.c.b16 %v1817, %v1813
    %v1870 = vpack.c.b16 %v1822, %v1818
    %v1871 = vpack.c.b16 %v1823, %v1819
    %v1872 = vpack.c.b16 %v1824, %v1820
    %v1873 = vpack.c.b16 %v1825, %v1821
    %v1874 = vpack.c.b16 %v1830, %v1826
    %v1875 = vpack.c.b16 %v1831, %v1827
    %v1876 = vpack.c.b16 %v1832, %v1828
    %v1877 = vpack.c.b16 %v1833, %v1829
    %v1878 = vpack.c.b16 %v1838, %v1834
    %v1879 = vpack.c.b16 %v1839, %v1835
    %v1880 = vpack.c.b16 %v1840, %v1836
    %v1881 = vpack.c.b16 %v1841, %v1837
    %v1882 = vpack.c.b16 %v1846, %v1842
    %v1883 = vpack.c.b16 %v1847, %v1843
    %v1884 = vpack.c.b16 %v1848, %v1844
    %v1885 = vpack.c.b16 %v1849, %v1845
    %v1886 = vpack.c.b16 %v1854, %v1850
    %v1887 = vpack.c.b16 %v1855, %v1851
    %v1888 = vpack.c.b16 %v1856, %v1852
    %v1889 = vpack.c.b16 %v1857, %v1853
    %1922 = vmatprep.subr.bf16.mxu0 %v1887
    %1923 = vmatpush1.bf16.msra.mxu0 %v1886
    %1924 = vmatprep.subr.bf16.mxu0 %v1883
    %1925 = vmatpush1.bf16.msra.mxu0 %v1882
    %1926 = vmatprep.subr.bf16.mxu0 %v1879
    %1927 = vmatpush1.bf16.msra.mxu0 %v1878
    %1928 = vmatprep.subr.bf16.mxu0 %v1875
    %1929 = vmatpush1.bf16.msra.mxu0 %v1874
    %1930 = vmatprep.subr.bf16.mxu0 %v1871
    %1931 = vmatpush1.bf16.msra.mxu0 %v1870
    %1932 = vmatprep.subr.bf16.mxu0 %v1867
    %1933 = vmatpush1.bf16.msra.mxu0 %v1866
    %1934 = vmatprep.subr.bf16.mxu0 %v1863
    %1935 = vmatpush1.bf16.msra.mxu0 %v1862
    %1936 = vmatprep.subr.bf16.mxu0 %v1859
    %1937 = vmatpush1.bf16.msra.mxu0 %v1858
    %1938 = vmatprep.subr.bf16.mxu0 0
    %1939 = vmatpush2.bf16.msra.mxu0 0
    %1940 = vmatprep.subr.bf16.mxu0 0
    %1941 = vmatpush2.bf16.msra.mxu0 0
    %1942 = vmatprep.subr.bf16.mxu0 0
    %1943 = vmatpush2.bf16.msra.mxu0 0
    %1944 = vmatprep.subr.bf16.mxu0 0
    %1945 = vmatpush2.bf16.msra.mxu0 0
    %1946 = vmatprep.subr.bf16.mxu0 0
    %1947 = vmatpush2.bf16.msra.mxu0 0
    %1948 = vmatprep.subr.bf16.mxu0 0
    %1949 = vmatpush2.bf16.msra.mxu0 0
    %1950 = vmatprep.subr.bf16.mxu0 0
    %1951 = vmatpush2.bf16.msra.mxu0 0
    %1952 = vmatprep.subr.bf16.mxu0 0
    %1953 = vmatpush2.bf16.msra.mxu0 0
    %1954 = vmatprep.mubr.bf16.mxu0 0
    %1955 = vmatmul.mubr.bf16.gmra.mxu0 %v1704
    %v1956 = vpop.f32.mrf.mxu0
    %v1957 = vadd.f32 %v1745, %v1956
    %v1958 = vpop.f32.mrf.mxu0
    %v1959 = vadd.f32 %v1749, %v1958
    %v1960 = vpop.f32.mrf.mxu0
    %v1961 = vadd.f32 %v1745, %v1960
    %v1962 = vpop.f32.mrf.mxu0
    %v1963 = vadd.f32 %v1749, %v1962
    %1964 = vmatprep.mubr.bf16.mxu0 0
    %1965 = vmatmul.mubr.bf16.gmra.mxu0 %v1705
    %v1966 = vpop.f32.mrf.mxu0
    %v1967 = vadd.f32 %v1745, %v1966
    %v1968 = vpop.f32.mrf.mxu0
    %v1969 = vadd.f32 %v1749, %v1968
    %v1970 = vpop.f32.mrf.mxu0
    %v1971 = vadd.f32 %v1745, %v1970
    %v1972 = vpop.f32.mrf.mxu0
    %v1973 = vadd.f32 %v1749, %v1972
    %1974 = vmatprep.mubr.bf16.mxu0 0
    %1975 = vmatmul.mubr.bf16.gmra.mxu0 %v1706
    %v1976 = vpop.f32.mrf.mxu0
    %v1977 = vadd.f32 %v1745, %v1976
    %v1978 = vpop.f32.mrf.mxu0
    %v1979 = vadd.f32 %v1749, %v1978
    %v1980 = vpop.f32.mrf.mxu0
    %v1981 = vadd.f32 %v1745, %v1980
    %v1982 = vpop.f32.mrf.mxu0
    %v1983 = vadd.f32 %v1749, %v1982
    %1984 = vmatprep.mubr.bf16.mxu0 0
    %1985 = vmatmul.mubr.bf16.gmra.mxu0 %v1707
    %v1986 = vpop.f32.mrf.mxu0
    %v1987 = vadd.f32 %v1745, %v1986
    %v1988 = vpop.f32.mrf.mxu0
    %v1989 = vadd.f32 %v1749, %v1988
    %v1990 = vpop.f32.mrf.mxu0
    %v1991 = vadd.f32 %v1745, %v1990
    %v1992 = vpop.f32.mrf.mxu0
    %v1993 = vadd.f32 %v1749, %v1992
    %1994 = vdwg.mxu0
    %1995 = vmatprep.subr.bf16.mxu0 %v1889
    %1996 = vmatpush1.bf16.msra.mxu0 %v1888
    %1997 = vmatprep.subr.bf16.mxu0 %v1885
    %1998 = vmatpush1.bf16.msra.mxu0 %v1884
    %1999 = vmatprep.subr.bf16.mxu0 %v1881
    %2000 = vmatpush1.bf16.msra.mxu0 %v1880
    %2001 = vmatprep.subr.bf16.mxu0 %v1877
    %2002 = vmatpush1.bf16.msra.mxu0 %v1876
    %2003 = vmatprep.subr.bf16.mxu0 %v1873
    %2004 = vmatpush1.bf16.msra.mxu0 %v1872
    %2005 = vmatprep.subr.bf16.mxu0 %v1869
    %2006 = vmatpush1.bf16.msra.mxu0 %v1868
    %2007 = vmatprep.subr.bf16.mxu0 %v1865
    %2008 = vmatpush1.bf16.msra.mxu0 %v1864
    %2009 = vmatprep.subr.bf16.mxu0 %v1861
    %2010 = vmatpush1.bf16.msra.mxu0 %v1860
    %2011 = vmatprep.subr.bf16.mxu0 0
    %2012 = vmatpush2.bf16.msra.mxu0 0
    %2013 = vmatprep.subr.bf16.mxu0 0
    %2014 = vmatpush2.bf16.msra.mxu0 0
    %2015 = vmatprep.subr.bf16.mxu0 0
    %2016 = vmatpush2.bf16.msra.mxu0 0
    %2017 = vmatprep.subr.bf16.mxu0 0
    %2018 = vmatpush2.bf16.msra.mxu0 0
    %2019 = vmatprep.subr.bf16.mxu0 0
    %2020 = vmatpush2.bf16.msra.mxu0 0
    %2021 = vmatprep.subr.bf16.mxu0 0
    %2022 = vmatpush2.bf16.msra.mxu0 0
    %2023 = vmatprep.subr.bf16.mxu0 0
    %2024 = vmatpush2.bf16.msra.mxu0 0
    %2025 = vmatprep.subr.bf16.mxu0 0
    %2026 = vmatpush2.bf16.msra.mxu0 0
    %2027 = vmatprep.mubr.bf16.mxu0 0
    %2028 = vmatmul.mubr.bf16.gmra.mxu0 %v1704
    %v2029 = vpop.f32.mrf.mxu0
    %v2030 = vadd.f32 %v1753, %v2029
    %v2031 = vpop.f32.mrf.mxu0
    %v2032 = vadd.f32 %v1757, %v2031
    %v2033 = vpop.f32.mrf.mxu0
    %v2034 = vadd.f32 %v1753, %v2033
    %v2035 = vpop.f32.mrf.mxu0
    %v2036 = vadd.f32 %v1757, %v2035
    %2037 = vmatprep.mubr.bf16.mxu0 0
    %2038 = vmatmul.mubr.bf16.gmra.mxu0 %v1705
    %v2039 = vpop.f32.mrf.mxu0
    %v2040 = vadd.f32 %v1753, %v2039
    %v2041 = vpop.f32.mrf.mxu0
    %v2042 = vadd.f32 %v1757, %v2041
    %v2043 = vpop.f32.mrf.mxu0
    %v2044 = vadd.f32 %v1753, %v2043
    %v2045 = vpop.f32.mrf.mxu0
    %v2046 = vadd.f32 %v1757, %v2045
    %2047 = vmatprep.mubr.bf16.mxu0 0
    %2048 = vmatmul.mubr.bf16.gmra.mxu0 %v1706
    %v2049 = vpop.f32.mrf.mxu0
    %v2050 = vadd.f32 %v1753, %v2049
    %v2051 = vpop.f32.mrf.mxu0
    %v2052 = vadd.f32 %v1757, %v2051
    %v2053 = vpop.f32.mrf.mxu0
    %v2054 = vadd.f32 %v1753, %v2053
    %v2055 = vpop.f32.mrf.mxu0
    %v2056 = vadd.f32 %v1757, %v2055
    %2057 = vmatprep.mubr.bf16.mxu0 0
    %2058 = vmatmul.mubr.bf16.gmra.mxu0 %v1707
    %v2059 = vpop.f32.mrf.mxu0
    %v2060 = vadd.f32 %v1753, %v2059
    %v2061 = vpop.f32.mrf.mxu0
    %v2062 = vadd.f32 %v1757, %v2061
    %v2063 = vpop.f32.mrf.mxu0
    %v2064 = vadd.f32 %v1753, %v2063
    %v2065 = vpop.f32.mrf.mxu0
    %v2066 = vadd.f32 %v1757, %v2065
    %2067 = vdwg.mxu0
    %v2068 = vld [vmem:[#allocation9] sm:$0xff]
    %v2069 = vld [vmem:[#allocation9 + $0x8] sm:$0xff]
    %v2070 = vld [vmem:[#allocation9 + $0x10] sm:$0xff]
    %v2071 = vld [vmem:[#allocation9 + $0x18] sm:$0xff]
    %v2072 = vld [vmem:[#allocation9 + $0x20] sm:$0xff]
    %v2073 = vld [vmem:[#allocation9 + $0x28] sm:$0xff]
    %v2074 = vld [vmem:[#allocation9 + $0x30] sm:$0xff]
    %v2075 = vld [vmem:[#allocation9 + $0x38] sm:$0xff]
    %v2076 = vld [vmem:[#allocation9 + $0x40] sm:$0xff]
    %v2077 = vld [vmem:[#allocation9 + $0x48] sm:$0xff]
    %v2078 = vld [vmem:[#allocation9 + $0x50] sm:$0xff]
    %v2079 = vld [vmem:[#allocation9 + $0x58] sm:$0xff]
    %v2080 = vld [vmem:[#allocation9 + $0x60] sm:$0xff]
    %v2081 = vld [vmem:[#allocation9 + $0x68] sm:$0xff]
    %v2082 = vld [vmem:[#allocation9 + $0x70] sm:$0xff]
    %v2083 = vld [vmem:[#allocation9 + $0x78] sm:$0xff]
    %v2084 = vld [vmem:[#allocation9 + $0x80] sm:$0xff]
    %v2085 = vld [vmem:[#allocation9 + $0x88] sm:$0xff]
    %v2086 = vld [vmem:[#allocation9 + $0x90] sm:$0xff]
    %v2087 = vld [vmem:[#allocation9 + $0x98] sm:$0xff]
    %v2088 = vld [vmem:[#allocation9 + $0xa0] sm:$0xff]
    %v2089 = vld [vmem:[#allocation9 + $0xa8] sm:$0xff]
    %v2090 = vld [vmem:[#allocation9 + $0xb0] sm:$0xff]
    %v2091 = vld [vmem:[#allocation9 + $0xb8] sm:$0xff]
    %v2092 = vld [vmem:[#allocation9 + $0xc0] sm:$0xff]
    %v2093 = vld [vmem:[#allocation9 + $0xc8] sm:$0xff]
    %v2094 = vld [vmem:[#allocation9 + $0xd0] sm:$0xff]
    %v2095 = vld [vmem:[#allocation9 + $0xd8] sm:$0xff]
    %v2096 = vld [vmem:[#allocation9 + $0xe0] sm:$0xff]
    %v2097 = vld [vmem:[#allocation9 + $0xe8] sm:$0xff]
    %v2098 = vld [vmem:[#allocation9 + $0xf0] sm:$0xff]
    %v2099 = vld [vmem:[#allocation9 + $0xf8] sm:$0xff]
    %v2132 = vunpack.c.l.b16 %v2068
    %v2133 = vunpack.c.h.b16 %v2068
    %v2134 = vunpack.c.l.b16 %v2069
    %v2135 = vunpack.c.h.b16 %v2069
    %v2136 = vunpack.c.l.b16 %v2070
    %v2137 = vunpack.c.h.b16 %v2070
    %v2138 = vunpack.c.l.b16 %v2071
    %v2139 = vunpack.c.h.b16 %v2071
    %v2140 = vunpack.c.l.b16 %v2072
    %v2141 = vunpack.c.h.b16 %v2072
    %v2142 = vunpack.c.l.b16 %v2073
    %v2143 = vunpack.c.h.b16 %v2073
    %v2144 = vunpack.c.l.b16 %v2074
    %v2145 = vunpack.c.h.b16 %v2074
    %v2146 = vunpack.c.l.b16 %v2075
    %v2147 = vunpack.c.h.b16 %v2075
    %v2148 = vunpack.c.l.b16 %v2076
    %v2149 = vunpack.c.h.b16 %v2076
    %v2150 = vunpack.c.l.b16 %v2077
    %v2151 = vunpack.c.h.b16 %v2077
    %v2152 = vunpack.c.l.b16 %v2078
    %v2153 = vunpack.c.h.b16 %v2078
    %v2154 = vunpack.c.l.b16 %v2079
    %v2155 = vunpack.c.h.b16 %v2079
    %v2156 = vunpack.c.l.b16 %v2080
    %v2157 = vunpack.c.h.b16 %v2080
    %v2158 = vunpack.c.l.b16 %v2081
    %v2159 = vunpack.c.h.b16 %v2081
    %v2160 = vunpack.c.l.b16 %v2082
    %v2161 = vunpack.c.h.b16 %v2082
    %v2162 = vunpack.c.l.b16 %v2083
    %v2163 = vunpack.c.h.b16 %v2083
    %v2164 = vunpack.c.l.b16 %v2084
    %v2165 = vunpack.c.h.b16 %v2084
    %v2166 = vunpack.c.l.b16 %v2085
    %v2167 = vunpack.c.h.b16 %v2085
    %v2168 = vunpack.c.l.b16 %v2086
    %v2169 = vunpack.c.h.b16 %v2086
    %v2170 = vunpack.c.l.b16 %v2087
    %v2171 = vunpack.c.h.b16 %v2087
    %v2172 = vunpack.c.l.b16 %v2088
    %v2173 = vunpack.c.h.b16 %v2088
    %v2174 = vunpack.c.l.b16 %v2089
    %v2175 = vunpack.c.h.b16 %v2089
    %v2176 = vunpack.c.l.b16 %v2090
    %v2177 = vunpack.c.h.b16 %v2090
    %v2178 = vunpack.c.l.b16 %v2091
    %v2179 = vunpack.c.h.b16 %v2091
    %v2180 = vunpack.c.l.b16 %v2092
    %v2181 = vunpack.c.h.b16 %v2092
    %v2182 = vunpack.c.l.b16 %v2093
    %v2183 = vunpack.c.h.b16 %v2093
    %v2184 = vunpack.c.l.b16 %v2094
    %v2185 = vunpack.c.h.b16 %v2094
    %v2186 = vunpack.c.l.b16 %v2095
    %v2187 = vunpack.c.h.b16 %v2095
    %v2188 = vunpack.c.l.b16 %v2096
    %v2189 = vunpack.c.h.b16 %v2096
    %v2190 = vunpack.c.l.b16 %v2097
    %v2191 = vunpack.c.h.b16 %v2097
    %v2192 = vunpack.c.l.b16 %v2098
    %v2193 = vunpack.c.h.b16 %v2098
    %v2194 = vunpack.c.l.b16 %v2099
    %v2195 = vunpack.c.h.b16 %v2099
    %v2196 = vpack.c.b16 %v2136, %v2132
    %v2197 = vpack.c.b16 %v2137, %v2133
    %v2198 = vpack.c.b16 %v2138, %v2134
    %v2199 = vpack.c.b16 %v2139, %v2135
    %v2200 = vpack.c.b16 %v2144, %v2140
    %v2201 = vpack.c.b16 %v2145, %v2141
    %v2202 = vpack.c.b16 %v2146, %v2142
    %v2203 = vpack.c.b16 %v2147, %v2143
    %v2204 = vpack.c.b16 %v2152, %v2148
    %v2205 = vpack.c.b16 %v2153, %v2149
    %v2206 = vpack.c.b16 %v2154, %v2150
    %v2207 = vpack.c.b16 %v2155, %v2151
    %v2208 = vpack.c.b16 %v2160, %v2156
    %v2209 = vpack.c.b16 %v2161, %v2157
    %v2210 = vpack.c.b16 %v2162, %v2158
    %v2211 = vpack.c.b16 %v2163, %v2159
    %v2212 = vpack.c.b16 %v2168, %v2164
    %v2213 = vpack.c.b16 %v2169, %v2165
    %v2214 = vpack.c.b16 %v2170, %v2166
    %v2215 = vpack.c.b16 %v2171, %v2167
    %v2216 = vpack.c.b16 %v2176, %v2172
    %v2217 = vpack.c.b16 %v2177, %v2173
    %v2218 = vpack.c.b16 %v2178, %v2174
    %v2219 = vpack.c.b16 %v2179, %v2175
    %v2220 = vpack.c.b16 %v2184, %v2180
    %v2221 = vpack.c.b16 %v2185, %v2181
    %v2222 = vpack.c.b16 %v2186, %v2182
    %v2223 = vpack.c.b16 %v2187, %v2183
    %v2224 = vpack.c.b16 %v2192, %v2188
    %v2225 = vpack.c.b16 %v2193, %v2189
    %v2226 = vpack.c.b16 %v2194, %v2190
    %v2227 = vpack.c.b16 %v2195, %v2191
    %2260 = vmatprep.subr.bf16.mxu0 %v2225
    %2261 = vmatpush1.bf16.msra.mxu0 %v2224
    %2262 = vmatprep.subr.bf16.mxu0 %v2221
    %2263 = vmatpush1.bf16.msra.mxu0 %v2220
    %2264 = vmatprep.subr.bf16.mxu0 %v2217
    %2265 = vmatpush1.bf16.msra.mxu0 %v2216
    %2266 = vmatprep.subr.bf16.mxu0 %v2213
    %2267 = vmatpush1.bf16.msra.mxu0 %v2212
    %2268 = vmatprep.subr.bf16.mxu0 %v2209
    %2269 = vmatpush1.bf16.msra.mxu0 %v2208
    %2270 = vmatprep.subr.bf16.mxu0 %v2205
    %2271 = vmatpush1.bf16.msra.mxu0 %v2204
    %2272 = vmatprep.subr.bf16.mxu0 %v2201
    %2273 = vmatpush1.bf16.msra.mxu0 %v2200
    %2274 = vmatprep.subr.bf16.mxu0 %v2197
    %2275 = vmatpush1.bf16.msra.mxu0 %v2196
    %2276 = vmatprep.subr.bf16.mxu0 0
    %2277 = vmatpush2.bf16.msra.mxu0 0
    %2278 = vmatprep.subr.bf16.mxu0 0
    %2279 = vmatpush2.bf16.msra.mxu0 0
    %2280 = vmatprep.subr.bf16.mxu0 0
    %2281 = vmatpush2.bf16.msra.mxu0 0
    %2282 = vmatprep.subr.bf16.mxu0 0
    %2283 = vmatpush2.bf16.msra.mxu0 0
    %2284 = vmatprep.subr.bf16.mxu0 0
    %2285 = vmatpush2.bf16.msra.mxu0 0
    %2286 = vmatprep.subr.bf16.mxu0 0
    %2287 = vmatpush2.bf16.msra.mxu0 0
    %2288 = vmatprep.subr.bf16.mxu0 0
    %2289 = vmatpush2.bf16.msra.mxu0 0
    %2290 = vmatprep.subr.bf16.mxu0 0
    %2291 = vmatpush2.bf16.msra.mxu0 0
    %2292 = vmatprep.mubr.bf16.mxu0 0
    %2293 = vmatmul.mubr.bf16.gmra.mxu0 0
    %v2294 = vpop.f32.mrf.mxu0
    %v2295 = vadd.f32 0.0, %v2294
    %v2296 = vpop.f32.mrf.mxu0
    %v2297 = vadd.f32 0.0, %v2296
    %v2298 = vpop.f32.mrf.mxu0
    %v2299 = vpop.f32.mrf.mxu0
    %2300 = vdwg.mxu0
    %2301 = vmatprep.subr.bf16.mxu0 %v2227
    %2302 = vmatpush1.bf16.msra.mxu0 %v2226
    %2303 = vmatprep.subr.bf16.mxu0 %v2223
    %2304 = vmatpush1.bf16.msra.mxu0 %v2222
    %2305 = vmatprep.subr.bf16.mxu0 %v2219
    %2306 = vmatpush1.bf16.msra.mxu0 %v2218
    %2307 = vmatprep.subr.bf16.mxu0 %v2215
    %2308 = vmatpush1.bf16.msra.mxu0 %v2214
    %2309 = vmatprep.subr.bf16.mxu0 %v2211
    %2310 = vmatpush1.bf16.msra.mxu0 %v2210
    %2311 = vmatprep.subr.bf16.mxu0 %v2207
    %2312 = vmatpush1.bf16.msra.mxu0 %v2206
    %2313 = vmatprep.subr.bf16.mxu0 %v2203
    %2314 = vmatpush1.bf16.msra.mxu0 %v2202
    %2315 = vmatprep.subr.bf16.mxu0 %v2199
    %2316 = vmatpush1.bf16.msra.mxu0 %v2198
    %2317 = vmatprep.subr.bf16.mxu0 0
    %2318 = vmatpush2.bf16.msra.mxu0 0
    %2319 = vmatprep.subr.bf16.mxu0 0
    %2320 = vmatpush2.bf16.msra.mxu0 0
    %2321 = vmatprep.subr.bf16.mxu0 0
    %2322 = vmatpush2.bf16.msra.mxu0 0
    %2323 = vmatprep.subr.bf16.mxu0 0
    %2324 = vmatpush2.bf16.msra.mxu0 0
    %2325 = vmatprep.subr.bf16.mxu0 0
    %2326 = vmatpush2.bf16.msra.mxu0 0
    %2327 = vmatprep.subr.bf16.mxu0 0
    %2328 = vmatpush2.bf16.msra.mxu0 0
    %2329 = vmatprep.subr.bf16.mxu0 0
    %2330 = vmatpush2.bf16.msra.mxu0 0
    %2331 = vmatprep.subr.bf16.mxu0 0
    %2332 = vmatpush2.bf16.msra.mxu0 0
    %2333 = vmatprep.mubr.bf16.mxu0 0
    %2334 = vmatmul.mubr.bf16.gmra.mxu0 0
    %v2335 = vpop.f32.mrf.mxu0
    %v2336 = vadd.f32 0.0, %v2335
    %v2337 = vpop.f32.mrf.mxu0
    %v2338 = vadd.f32 0.0, %v2337
    %v2339 = vpop.f32.mrf.mxu0
    %v2340 = vpop.f32.mrf.mxu0
    %2341 = vdwg.mxu0
    %v2342 = vadd.f32 %v1957, %v2295
    %v2343 = vadd.f32 %v1959, %v2297
    %v2344 = vadd.f32 %v2030, %v2336
    %v2345 = vadd.f32 %v2032, %v2338
    %v2346 = vxor.u32 %v2342, 2147483648
    %v2347 = vxor.u32 %v2343, 2147483648
    %v2348 = vxor.u32 %v2344, 2147483648
    %v2349 = vmul.f32 %v2346, 1.442695
    %v2350 = vpow.pop %v2349
    %v2351 = vmul.f32 %v2347, 1.442695
    %v2352 = vpow.pop %v2351
    %v2353 = vmul.f32 %v2348, 1.442695
    %v2354 = vpow.pop %v2353
    %v2355 = vadd.f32 %v2350, 1.0
    %v2356 = vadd.f32 %v2352, 1.0
    %v2357 = vadd.f32 %v2354, 1.0
    %v2358 = vrcp.pop %v2355
    %v2359 = vmul.f32 1.0, %v2358
    %v2360 = vrcp.pop %v2356
    %v2361 = vmul.f32 1.0, %v2360
    %v2362 = vrcp.pop %v2357
    %v2363 = vmul.f32 1.0, %v2362
    %v2364 = vtanh.pop %v2345
    %v2365 = vmul.f32 %v2361, 0.0
    %v2366 = vmul.f32 %v2359, %v2364
    %v2367 = vadd.f32 %v2365, %v2366
    %v2368 = vtanh.pop %v2367
    %v2369 = vmul.f32 %v2363, %v2368
    %v2370 = vpack.c.bf16 %v2369, %v2369
    %2371 = vmatprep.subr.bf16.mxu0 %v2225
    %2372 = vmatpush1.bf16.msra.mxu0 %v2224
    %2373 = vmatprep.subr.bf16.mxu0 %v2221
    %2374 = vmatpush1.bf16.msra.mxu0 %v2220
    %2375 = vmatprep.subr.bf16.mxu0 %v2217
    %2376 = vmatpush1.bf16.msra.mxu0 %v2216
    %2377 = vmatprep.subr.bf16.mxu0 %v2213
    %2378 = vmatpush1.bf16.msra.mxu0 %v2212
    %2379 = vmatprep.subr.bf16.mxu0 %v2209
    %2380 = vmatpush1.bf16.msra.mxu0 %v2208
    %2381 = vmatprep.subr.bf16.mxu0 %v2205
    %2382 = vmatpush1.bf16.msra.mxu0 %v2204
    %2383 = vmatprep.subr.bf16.mxu0 %v2201
    %2384 = vmatpush1.bf16.msra.mxu0 %v2200
    %2385 = vmatprep.subr.bf16.mxu0 %v2197
    %2386 = vmatpush1.bf16.msra.mxu0 %v2196
    %2387 = vmatprep.subr.bf16.mxu0 0
    %2388 = vmatpush2.bf16.msra.mxu0 0
    %2389 = vmatprep.subr.bf16.mxu0 0
    %2390 = vmatpush2.bf16.msra.mxu0 0
    %2391 = vmatprep.subr.bf16.mxu0 0
    %2392 = vmatpush2.bf16.msra.mxu0 0
    %2393 = vmatprep.subr.bf16.mxu0 0
    %2394 = vmatpush2.bf16.msra.mxu0 0
    %2395 = vmatprep.subr.bf16.mxu0 0
    %2396 = vmatpush2.bf16.msra.mxu0 0
    %2397 = vmatprep.subr.bf16.mxu0 0
    %2398 = vmatpush2.bf16.msra.mxu0 0
    %2399 = vmatprep.subr.bf16.mxu0 0
    %2400 = vmatpush2.bf16.msra.mxu0 0
    %2401 = vmatprep.subr.bf16.mxu0 0
    %2402 = vmatpush2.bf16.msra.mxu0 0
    %2403 = vmatprep.mubr.bf16.mxu0 0
    %2404 = vmatmul.mubr.bf16.gmra.mxu0 %v2370
    %v2405 = vpop.f32.mrf.mxu0
    %v2406 = vadd.f32 0.0, %v2405
    %v2407 = vpop.f32.mrf.mxu0
    %v2408 = vadd.f32 0.0, %v2407
    %v2409 = vpop.f32.mrf.mxu0
    %v2410 = vpop.f32.mrf.mxu0
    %2411 = vdwg.mxu0
    %2412 = vmatprep.subr.bf16.mxu0 %v2227
    %2413 = vmatpush1.bf16.msra.mxu0 %v2226
    %2414 = vmatprep.subr.bf16.mxu0 %v2223
    %2415 = vmatpush1.bf16.msra.mxu0 %v2222
    %2416 = vmatprep.subr.bf16.mxu0 %v2219
    %2417 = vmatpush1.bf16.msra.mxu0 %v2218
    %2418 = vmatprep.subr.bf16.mxu0 %v2215
    %2419 = vmatpush1.bf16.msra.mxu0 %v2214
    %2420 = vmatprep.subr.bf16.mxu0 %v2211
    %2421 = vmatpush1.bf16.msra.mxu0 %v2210
    %2422 = vmatprep.subr.bf16.mxu0 %v2207
    %2423 = vmatpush1.bf16.msra.mxu0 %v2206
    %2424 = vmatprep.subr.bf16.mxu0 %v2203
    %2425 = vmatpush1.bf16.msra.mxu0 %v2202
    %2426 = vmatprep.subr.bf16.mxu0 %v2199
    %2427 = vmatpush1.bf16.msra.mxu0 %v2198
    %2428 = vmatprep.subr.bf16.mxu0 0
    %2429 = vmatpush2.bf16.msra.mxu0 0
    %2430 = vmatprep.subr.bf16.mxu0 0
    %2431 = vmatpush2.bf16.msra.mxu0 0
    %2432 = vmatprep.subr.bf16.mxu0 0
    %2433 = vmatpush2.bf16.msra.mxu0 0
    %2434 = vmatprep.subr.bf16.mxu0 0
    %2435 = vmatpush2.bf16.msra.mxu0 0
    %2436 = vmatprep.subr.bf16.mxu0 0
    %2437 = vmatpush2.bf16.msra.mxu0 0
    %2438 = vmatprep.subr.bf16.mxu0 0
    %2439 = vmatpush2.bf16.msra.mxu0 0
    %2440 = vmatprep.subr.bf16.mxu0 0
    %2441 = vmatpush2.bf16.msra.mxu0 0
    %2442 = vmatprep.subr.bf16.mxu0 0
    %2443 = vmatpush2.bf16.msra.mxu0 0
    %2444 = vmatprep.mubr.bf16.mxu0 0
    %2445 = vmatmul.mubr.bf16.gmra.mxu0 %v2370
    %v2446 = vpop.f32.mrf.mxu0
    %v2447 = vadd.f32 0.0, %v2446
    %v2448 = vpop.f32.mrf.mxu0
    %v2449 = vadd.f32 0.0, %v2448
    %v2450 = vpop.f32.mrf.mxu0
    %v2451 = vpop.f32.mrf.mxu0
    %2452 = vdwg.mxu0
    %v2453 = vadd.f32 %v1961, %v2406
    %v2454 = vadd.f32 %v1963, %v2408
    %v2455 = vadd.f32 %v2034, %v2447
    %v2456 = vadd.f32 %v2036, %v2449
    %v2457 = vxor.u32 %v2453, 2147483648
    %v2458 = vxor.u32 %v2454, 2147483648
    %v2459 = vxor.u32 %v2455, 2147483648
    %v2460 = vmul.f32 %v2457, 1.442695
    %v2461 = vpow.pop %v2460
    %v2462 = vmul.f32 %v2458, 1.442695
    %v2463 = vpow.pop %v2462
    %v2464 = vmul.f32 %v2459, 1.442695
    %v2465 = vpow.pop %v2464
    %v2466 = vadd.f32 %v2461, 1.0
    %v2467 = vadd.f32 %v2463, 1.0
    %v2468 = vadd.f32 %v2465, 1.0
    %v2469 = vrcp.pop %v2466
    %v2470 = vmul.f32 1.0, %v2469
    %v2471 = vrcp.pop %v2467
    %v2472 = vmul.f32 1.0, %v2471
    %v2473 = vrcp.pop %v2468
    %v2474 = vmul.f32 1.0, %v2473
    %v2475 = vtanh.pop %v2456
    %v2476 = vmul.f32 %v2472, %v2367
    %v2477 = vmul.f32 %v2470, %v2475
    %v2478 = vadd.f32 %v2476, %v2477
    %v2479 = vtanh.pop %v2478
    %v2480 = vmul.f32 %v2474, %v2479
    %v2481 = vpack.c.bf16 %v2480, %v2480
    %2482 = vmatprep.subr.bf16.mxu0 %v2225
    %2483 = vmatpush1.bf16.msra.mxu0 %v2224
    %2484 = vmatprep.subr.bf16.mxu0 %v2221
    %2485 = vmatpush1.bf16.msra.mxu0 %v2220
    %2486 = vmatprep.subr.bf16.mxu0 %v2217
    %2487 = vmatpush1.bf16.msra.mxu0 %v2216
    %2488 = vmatprep.subr.bf16.mxu0 %v2213
    %2489 = vmatpush1.bf16.msra.mxu0 %v2212
    %2490 = vmatprep.subr.bf16.mxu0 %v2209
    %2491 = vmatpush1.bf16.msra.mxu0 %v2208
    %2492 = vmatprep.subr.bf16.mxu0 %v2205
    %2493 = vmatpush1.bf16.msra.mxu0 %v2204
    %2494 = vmatprep.subr.bf16.mxu0 %v2201
    %2495 = vmatpush1.bf16.msra.mxu0 %v2200
    %2496 = vmatprep.subr.bf16.mxu0 %v2197
    %2497 = vmatpush1.bf16.msra.mxu0 %v2196
    %2498 = vmatprep.subr.bf16.mxu0 0
    %2499 = vmatpush2.bf16.msra.mxu0 0
    %2500 = vmatprep.subr.bf16.mxu0 0
    %2501 = vmatpush2.bf16.msra.mxu0 0
    %2502 = vmatprep.subr.bf16.mxu0 0
    %2503 = vmatpush2.bf16.msra.mxu0 0
    %2504 = vmatprep.subr.bf16.mxu0 0
    %2505 = vmatpush2.bf16.msra.mxu0 0
    %2506 = vmatprep.subr.bf16.mxu0 0
    %2507 = vmatpush2.bf16.msra.mxu0 0
    %2508 = vmatprep.subr.bf16.mxu0 0
    %2509 = vmatpush2.bf16.msra.mxu0 0
    %2510 = vmatprep.subr.bf16.mxu0 0
    %2511 = vmatpush2.bf16.msra.mxu0 0
    %2512 = vmatprep.subr.bf16.mxu0 0
    %2513 = vmatpush2.bf16.msra.mxu0 0
    %2514 = vmatprep.mubr.bf16.mxu0 0
    %2515 = vmatmul.mubr.bf16.gmra.mxu0 %v2481
    %v2516 = vpop.f32.mrf.mxu0
    %v2517 = vadd.f32 0.0, %v2516
    %v2518 = vpop.f32.mrf.mxu0
    %v2519 = vadd.f32 0.0, %v2518
    %v2520 = vpop.f32.mrf.mxu0
    %v2521 = vpop.f32.mrf.mxu0
    %2522 = vdwg.mxu0
    %2523 = vmatprep.subr.bf16.mxu0 %v2227
    %2524 = vmatpush1.bf16.msra.mxu0 %v2226
    %2525 = vmatprep.subr.bf16.mxu0 %v2223
    %2526 = vmatpush1.bf16.msra.mxu0 %v2222
    %2527 = vmatprep.subr.bf16.mxu0 %v2219
    %2528 = vmatpush1.bf16.msra.mxu0 %v2218
    %2529 = vmatprep.subr.bf16.mxu0 %v2215
    %2530 = vmatpush1.bf16.msra.mxu0 %v2214
    %2531 = vmatprep.subr.bf16.mxu0 %v2211
    %2532 = vmatpush1.bf16.msra.mxu0 %v2210
    %2533 = vmatprep.subr.bf16.mxu0 %v2207
    %2534 = vmatpush1.bf16.msra.mxu0 %v2206
    %2535 = vmatprep.subr.bf16.mxu0 %v2203
    %2536 = vmatpush1.bf16.msra.mxu0 %v2202
    %2537 = vmatprep.subr.bf16.mxu0 %v2199
    %2538 = vmatpush1.bf16.msra.mxu0 %v2198
    %2539 = vmatprep.subr.bf16.mxu0 0
    %2540 = vmatpush2.bf16.msra.mxu0 0
    %2541 = vmatprep.subr.bf16.mxu0 0
    %2542 = vmatpush2.bf16.msra.mxu0 0
    %2543 = vmatprep.subr.bf16.mxu0 0
    %2544 = vmatpush2.bf16.msra.mxu0 0
    %2545 = vmatprep.subr.bf16.mxu0 0
    %2546 = vmatpush2.bf16.msra.mxu0 0
    %2547 = vmatprep.subr.bf16.mxu0 0
    %2548 = vmatpush2.bf16.msra.mxu0 0
    %2549 = vmatprep.subr.bf16.mxu0 0
    %2550 = vmatpush2.bf16.msra.mxu0 0
    %2551 = vmatprep.subr.bf16.mxu0 0
    %2552 = vmatpush2.bf16.msra.mxu0 0
    %2553 = vmatprep.subr.bf16.mxu0 0
    %2554 = vmatpush2.bf16.msra.mxu0 0
    %2555 = vmatprep.mubr.bf16.mxu0 0
    %2556 = vmatmul.mubr.bf16.gmra.mxu0 %v2481
    %v2557 = vpop.f32.mrf.mxu0
    %v2558 = vadd.f32 0.0, %v2557
    %v2559 = vpop.f32.mrf.mxu0
    %v2560 = vadd.f32 0.0, %v2559
    %v2561 = vpop.f32.mrf.mxu0
    %v2562 = vpop.f32.mrf.mxu0
    %2563 = vdwg.mxu0
    %v2564 = vadd.f32 %v1967, %v2517
    %v2565 = vadd.f32 %v1969, %v2519
    %v2566 = vadd.f32 %v2040, %v2558
    %v2567 = vadd.f32 %v2042, %v2560
    %v2568 = vxor.u32 %v2564, 2147483648
    %v2569 = vxor.u32 %v2565, 2147483648
    %v2570 = vxor.u32 %v2566, 2147483648
    %v2571 = vmul.f32 %v2568, 1.442695
    %v2572 = vpow.pop %v2571
    %v2573 = vmul.f32 %v2569, 1.442695
    %v2574 = vpow.pop %v2573
    %v2575 = vmul.f32 %v2570, 1.442695
    %v2576 = vpow.pop %v2575
    %v2577 = vadd.f32 %v2572, 1.0
    %v2578 = vadd.f32 %v2574, 1.0
    %v2579 = vadd.f32 %v2576, 1.0
    %v2580 = vrcp.pop %v2577
    %v2581 = vmul.f32 1.0, %v2580
    %v2582 = vrcp.pop %v2578
    %v2583 = vmul.f32 1.0, %v2582
    %v2584 = vrcp.pop %v2579
    %v2585 = vmul.f32 1.0, %v2584
    %v2586 = vtanh.pop %v2567
    %v2587 = vmul.f32 %v2583, %v2478
    %v2588 = vmul.f32 %v2581, %v2586
    %v2589 = vadd.f32 %v2587, %v2588
    %v2590 = vtanh.pop %v2589
    %v2591 = vmul.f32 %v2585, %v2590
    %v2592 = vpack.c.bf16 %v2591, %v2591
    %2593 = vmatprep.subr.bf16.mxu0 %v2225
    %2594 = vmatpush1.bf16.msra.mxu0 %v2224
    %2595 = vmatprep.subr.bf16.mxu0 %v2221
    %2596 = vmatpush1.bf16.msra.mxu0 %v2220
    %2597 = vmatprep.subr.bf16.mxu0 %v2217
    %2598 = vmatpush1.bf16.msra.mxu0 %v2216
    %2599 = vmatprep.subr.bf16.mxu0 %v2213
    %2600 = vmatpush1.bf16.msra.mxu0 %v2212
    %2601 = vmatprep.subr.bf16.mxu0 %v2209
    %2602 = vmatpush1.bf16.msra.mxu0 %v2208
    %2603 = vmatprep.subr.bf16.mxu0 %v2205
    %2604 = vmatpush1.bf16.msra.mxu0 %v2204
    %2605 = vmatprep.subr.bf16.mxu0 %v2201
    %2606 = vmatpush1.bf16.msra.mxu0 %v2200
    %2607 = vmatprep.subr.bf16.mxu0 %v2197
    %2608 = vmatpush1.bf16.msra.mxu0 %v2196
    %2609 = vmatprep.subr.bf16.mxu0 0
    %2610 = vmatpush2.bf16.msra.mxu0 0
    %2611 = vmatprep.subr.bf16.mxu0 0
    %2612 = vmatpush2.bf16.msra.mxu0 0
    %2613 = vmatprep.subr.bf16.mxu0 0
    %2614 = vmatpush2.bf16.msra.mxu0 0
    %2615 = vmatprep.subr.bf16.mxu0 0
    %2616 = vmatpush2.bf16.msra.mxu0 0
    %2617 = vmatprep.subr.bf16.mxu0 0
    %2618 = vmatpush2.bf16.msra.mxu0 0
    %2619 = vmatprep.subr.bf16.mxu0 0
    %2620 = vmatpush2.bf16.msra.mxu0 0
    %2621 = vmatprep.subr.bf16.mxu0 0
    %2622 = vmatpush2.bf16.msra.mxu0 0
    %2623 = vmatprep.subr.bf16.mxu0 0
    %2624 = vmatpush2.bf16.msra.mxu0 0
    %2625 = vmatprep.mubr.bf16.mxu0 0
    %2626 = vmatmul.mubr.bf16.gmra.mxu0 %v2592
    %v2627 = vpop.f32.mrf.mxu0
    %v2628 = vadd.f32 0.0, %v2627
    %v2629 = vpop.f32.mrf.mxu0
    %v2630 = vadd.f32 0.0, %v2629
    %v2631 = vpop.f32.mrf.mxu0
    %v2632 = vpop.f32.mrf.mxu0
    %2633 = vdwg.mxu0
    %2634 = vmatprep.subr.bf16.mxu0 %v2227
    %2635 = vmatpush1.bf16.msra.mxu0 %v2226
    %2636 = vmatprep.subr.bf16.mxu0 %v2223
    %2637 = vmatpush1.bf16.msra.mxu0 %v2222
    %2638 = vmatprep.subr.bf16.mxu0 %v2219
    %2639 = vmatpush1.bf16.msra.mxu0 %v2218
    %2640 = vmatprep.subr.bf16.mxu0 %v2215
    %2641 = vmatpush1.bf16.msra.mxu0 %v2214
    %2642 = vmatprep.subr.bf16.mxu0 %v2211
    %2643 = vmatpush1.bf16.msra.mxu0 %v2210
    %2644 = vmatprep.subr.bf16.mxu0 %v2207
    %2645 = vmatpush1.bf16.msra.mxu0 %v2206
    %2646 = vmatprep.subr.bf16.mxu0 %v2203
    %2647 = vmatpush1.bf16.msra.mxu0 %v2202
    %2648 = vmatprep.subr.bf16.mxu0 %v2199
    %2649 = vmatpush1.bf16.msra.mxu0 %v2198
    %2650 = vmatprep.subr.bf16.mxu0 0
    %2651 = vmatpush2.bf16.msra.mxu0 0
    %2652 = vmatprep.subr.bf16.mxu0 0
    %2653 = vmatpush2.bf16.msra.mxu0 0
    %2654 = vmatprep.subr.bf16.mxu0 0
    %2655 = vmatpush2.bf16.msra.mxu0 0
    %2656 = vmatprep.subr.bf16.mxu0 0
    %2657 = vmatpush2.bf16.msra.mxu0 0
    %2658 = vmatprep.subr.bf16.mxu0 0
    %2659 = vmatpush2.bf16.msra.mxu0 0
    %2660 = vmatprep.subr.bf16.mxu0 0
    %2661 = vmatpush2.bf16.msra.mxu0 0
    %2662 = vmatprep.subr.bf16.mxu0 0
    %2663 = vmatpush2.bf16.msra.mxu0 0
    %2664 = vmatprep.subr.bf16.mxu0 0
    %2665 = vmatpush2.bf16.msra.mxu0 0
    %2666 = vmatprep.mubr.bf16.mxu0 0
    %2667 = vmatmul.mubr.bf16.gmra.mxu0 %v2592
    %v2668 = vpop.f32.mrf.mxu0
    %v2669 = vadd.f32 0.0, %v2668
    %v2670 = vpop.f32.mrf.mxu0
    %v2671 = vadd.f32 0.0, %v2670
    %v2672 = vpop.f32.mrf.mxu0
    %v2673 = vpop.f32.mrf.mxu0
    %2674 = vdwg.mxu0
    %v2675 = vadd.f32 %v1971, %v2628
    %v2676 = vadd.f32 %v1973, %v2630
    %v2677 = vadd.f32 %v2044, %v2669
    %v2678 = vadd.f32 %v2046, %v2671
    %v2679 = vxor.u32 %v2675, 2147483648
    %v2680 = vxor.u32 %v2676, 2147483648
    %v2681 = vxor.u32 %v2677, 2147483648
    %v2682 = vmul.f32 %v2679, 1.442695
    %v2683 = vpow.pop %v2682
    %v2684 = vmul.f32 %v2680, 1.442695
    %v2685 = vpow.pop %v2684
    %v2686 = vmul.f32 %v2681, 1.442695
    %v2687 = vpow.pop %v2686
    %v2688 = vadd.f32 %v2683, 1.0
    %v2689 = vadd.f32 %v2685, 1.0
    %v2690 = vadd.f32 %v2687, 1.0
    %v2691 = vrcp.pop %v2688
    %v2692 = vmul.f32 1.0, %v2691
    %v2693 = vrcp.pop %v2689
    %v2694 = vmul.f32 1.0, %v2693
    %v2695 = vrcp.pop %v2690
    %v2696 = vmul.f32 1.0, %v2695
    %v2697 = vtanh.pop %v2678
    %v2698 = vmul.f32 %v2694, %v2589
    %v2699 = vmul.f32 %v2692, %v2697
    %v2700 = vadd.f32 %v2698, %v2699
    %v2701 = vtanh.pop %v2700
    %v2702 = vmul.f32 %v2696, %v2701
    %v2703 = vpack.c.bf16 %v2702, %v2702
    %2704 = vmatprep.subr.bf16.mxu0 %v2225
    %2705 = vmatpush1.bf16.msra.mxu0 %v2224
    %2706 = vmatprep.subr.bf16.mxu0 %v2221
    %2707 = vmatpush1.bf16.msra.mxu0 %v2220
    %2708 = vmatprep.subr.bf16.mxu0 %v2217
    %2709 = vmatpush1.bf16.msra.mxu0 %v2216
    %2710 = vmatprep.subr.bf16.mxu0 %v2213
    %2711 = vmatpush1.bf16.msra.mxu0 %v2212
    %2712 = vmatprep.subr.bf16.mxu0 %v2209
    %2713 = vmatpush1.bf16.msra.mxu0 %v2208
    %2714 = vmatprep.subr.bf16.mxu0 %v2205
    %2715 = vmatpush1.bf16.msra.mxu0 %v2204
    %2716 = vmatprep.subr.bf16.mxu0 %v2201
    %2717 = vmatpush1.bf16.msra.mxu0 %v2200
    %2718 = vmatprep.subr.bf16.mxu0 %v2197
    %2719 = vmatpush1.bf16.msra.mxu0 %v2196
    %2720 = vmatprep.subr.bf16.mxu0 0
    %2721 = vmatpush2.bf16.msra.mxu0 0
    %2722 = vmatprep.subr.bf16.mxu0 0
    %2723 = vmatpush2.bf16.msra.mxu0 0
    %2724 = vmatprep.subr.bf16.mxu0 0
    %2725 = vmatpush2.bf16.msra.mxu0 0
    %2726 = vmatprep.subr.bf16.mxu0 0
    %2727 = vmatpush2.bf16.msra.mxu0 0
    %2728 = vmatprep.subr.bf16.mxu0 0
    %2729 = vmatpush2.bf16.msra.mxu0 0
    %2730 = vmatprep.subr.bf16.mxu0 0
    %2731 = vmatpush2.bf16.msra.mxu0 0
    %2732 = vmatprep.subr.bf16.mxu0 0
    %2733 = vmatpush2.bf16.msra.mxu0 0
    %2734 = vmatprep.subr.bf16.mxu0 0
    %2735 = vmatpush2.bf16.msra.mxu0 0
    %2736 = vmatprep.mubr.bf16.mxu0 0
    %2737 = vmatmul.mubr.bf16.gmra.mxu0 %v2703
    %v2738 = vpop.f32.mrf.mxu0
    %v2739 = vadd.f32 0.0, %v2738
    %v2740 = vpop.f32.mrf.mxu0
    %v2741 = vadd.f32 0.0, %v2740
    %v2742 = vpop.f32.mrf.mxu0
    %v2743 = vpop.f32.mrf.mxu0
    %2744 = vdwg.mxu0
    %2745 = vmatprep.subr.bf16.mxu0 %v2227
    %2746 = vmatpush1.bf16.msra.mxu0 %v2226
    %2747 = vmatprep.subr.bf16.mxu0 %v2223
    %2748 = vmatpush1.bf16.msra.mxu0 %v2222
    %2749 = vmatprep.subr.bf16.mxu0 %v2219
    %2750 = vmatpush1.bf16.msra.mxu0 %v2218
    %2751 = vmatprep.subr.bf16.mxu0 %v2215
    %2752 = vmatpush1.bf16.msra.mxu0 %v2214
    %2753 = vmatprep.subr.bf16.mxu0 %v2211
    %2754 = vmatpush1.bf16.msra.mxu0 %v2210
    %2755 = vmatprep.subr.bf16.mxu0 %v2207
    %2756 = vmatpush1.bf16.msra.mxu0 %v2206
    %2757 = vmatprep.subr.bf16.mxu0 %v2203
    %2758 = vmatpush1.bf16.msra.mxu0 %v2202
    %2759 = vmatprep.subr.bf16.mxu0 %v2199
    %2760 = vmatpush1.bf16.msra.mxu0 %v2198
    %2761 = vmatprep.subr.bf16.mxu0 0
    %2762 = vmatpush2.bf16.msra.mxu0 0
    %2763 = vmatprep.subr.bf16.mxu0 0
    %2764 = vmatpush2.bf16.msra.mxu0 0
    %2765 = vmatprep.subr.bf16.mxu0 0
    %2766 = vmatpush2.bf16.msra.mxu0 0
    %2767 = vmatprep.subr.bf16.mxu0 0
    %2768 = vmatpush2.bf16.msra.mxu0 0
    %2769 = vmatprep.subr.bf16.mxu0 0
    %2770 = vmatpush2.bf16.msra.mxu0 0
    %2771 = vmatprep.subr.bf16.mxu0 0
    %2772 = vmatpush2.bf16.msra.mxu0 0
    %2773 = vmatprep.subr.bf16.mxu0 0
    %2774 = vmatpush2.bf16.msra.mxu0 0
    %2775 = vmatprep.subr.bf16.mxu0 0
    %2776 = vmatpush2.bf16.msra.mxu0 0
    %2777 = vmatprep.mubr.bf16.mxu0 0
    %2778 = vmatmul.mubr.bf16.gmra.mxu0 %v2703
    %v2779 = vpop.f32.mrf.mxu0
    %v2780 = vadd.f32 0.0, %v2779
    %v2781 = vpop.f32.mrf.mxu0
    %v2782 = vadd.f32 0.0, %v2781
    %v2783 = vpop.f32.mrf.mxu0
    %v2784 = vpop.f32.mrf.mxu0
    %2785 = vdwg.mxu0
    %v2786 = vadd.f32 %v1977, %v2739
    %v2787 = vadd.f32 %v1979, %v2741
    %v2788 = vadd.f32 %v2050, %v2780
    %v2789 = vadd.f32 %v2052, %v2782
    %v2790 = vxor.u32 %v2786, 2147483648
    %v2791 = vxor.u32 %v2787, 2147483648
    %v2792 = vxor.u32 %v2788, 2147483648
    %v2793 = vmul.f32 %v2790, 1.442695
    %v2794 = vpow.pop %v2793
    %v2795 = vmul.f32 %v2791, 1.442695
    %v2796 = vpow.pop %v2795
    %v2797 = vmul.f32 %v2792, 1.442695
    %v2798 = vpow.pop %v2797
    %v2799 = vadd.f32 %v2794, 1.0
    %v2800 = vadd.f32 %v2796, 1.0
    %v2801 = vadd.f32 %v2798, 1.0
    %v2802 = vrcp.pop %v2799
    %v2803 = vmul.f32 1.0, %v2802
    %v2804 = vrcp.pop %v2800
    %v2805 = vmul.f32 1.0, %v2804
    %v2806 = vrcp.pop %v2801
    %v2807 = vmul.f32 1.0, %v2806
    %v2808 = vtanh.pop %v2789
    %v2809 = vmul.f32 %v2805, %v2700
    %v2810 = vmul.f32 %v2803, %v2808
    %v2811 = vadd.f32 %v2809, %v2810
    %v2812 = vtanh.pop %v2811
    %v2813 = vmul.f32 %v2807, %v2812
    %v2814 = vpack.c.bf16 %v2813, %v2813
    %2815 = vmatprep.subr.bf16.mxu0 %v2225
    %2816 = vmatpush1.bf16.msra.mxu0 %v2224
    %2817 = vmatprep.subr.bf16.mxu0 %v2221
    %2818 = vmatpush1.bf16.msra.mxu0 %v2220
    %2819 = vmatprep.subr.bf16.mxu0 %v2217
    %2820 = vmatpush1.bf16.msra.mxu0 %v2216
    %2821 = vmatprep.subr.bf16.mxu0 %v2213
    %2822 = vmatpush1.bf16.msra.mxu0 %v2212
    %2823 = vmatprep.subr.bf16.mxu0 %v2209
    %2824 = vmatpush1.bf16.msra.mxu0 %v2208
    %2825 = vmatprep.subr.bf16.mxu0 %v2205
    %2826 = vmatpush1.bf16.msra.mxu0 %v2204
    %2827 = vmatprep.subr.bf16.mxu0 %v2201
    %2828 = vmatpush1.bf16.msra.mxu0 %v2200
    %2829 = vmatprep.subr.bf16.mxu0 %v2197
    %2830 = vmatpush1.bf16.msra.mxu0 %v2196
    %2831 = vmatprep.subr.bf16.mxu0 0
    %2832 = vmatpush2.bf16.msra.mxu0 0
    %2833 = vmatprep.subr.bf16.mxu0 0
    %2834 = vmatpush2.bf16.msra.mxu0 0
    %2835 = vmatprep.subr.bf16.mxu0 0
    %2836 = vmatpush2.bf16.msra.mxu0 0
    %2837 = vmatprep.subr.bf16.mxu0 0
    %2838 = vmatpush2.bf16.msra.mxu0 0
    %2839 = vmatprep.subr.bf16.mxu0 0
    %2840 = vmatpush2.bf16.msra.mxu0 0
    %2841 = vmatprep.subr.bf16.mxu0 0
    %2842 = vmatpush2.bf16.msra.mxu0 0
    %2843 = vmatprep.subr.bf16.mxu0 0
    %2844 = vmatpush2.bf16.msra.mxu0 0
    %2845 = vmatprep.subr.bf16.mxu0 0
    %2846 = vmatpush2.bf16.msra.mxu0 0
    %2847 = vmatprep.mubr.bf16.mxu0 0
    %2848 = vmatmul.mubr.bf16.gmra.mxu0 %v2814
    %v2849 = vpop.f32.mrf.mxu0
    %v2850 = vadd.f32 0.0, %v2849
    %v2851 = vpop.f32.mrf.mxu0
    %v2852 = vadd.f32 0.0, %v2851
    %v2853 = vpop.f32.mrf.mxu0
    %v2854 = vpop.f32.mrf.mxu0
    %2855 = vdwg.mxu0
    %2856 = vmatprep.subr.bf16.mxu0 %v2227
    %2857 = vmatpush1.bf16.msra.mxu0 %v2226
    %2858 = vmatprep.subr.bf16.mxu0 %v2223
    %2859 = vmatpush1.bf16.msra.mxu0 %v2222
    %2860 = vmatprep.subr.bf16.mxu0 %v2219
    %2861 = vmatpush1.bf16.msra.mxu0 %v2218
    %2862 = vmatprep.subr.bf16.mxu0 %v2215
    %2863 = vmatpush1.bf16.msra.mxu0 %v2214
    %2864 = vmatprep.subr.bf16.mxu0 %v2211
    %2865 = vmatpush1.bf16.msra.mxu0 %v2210
    %2866 = vmatprep.subr.bf16.mxu0 %v2207
    %2867 = vmatpush1.bf16.msra.mxu0 %v2206
    %2868 = vmatprep.subr.bf16.mxu0 %v2203
    %2869 = vmatpush1.bf16.msra.mxu0 %v2202
    %2870 = vmatprep.subr.bf16.mxu0 %v2199
    %2871 = vmatpush1.bf16.msra.mxu0 %v2198
    %2872 = vmatprep.subr.bf16.mxu0 0
    %2873 = vmatpush2.bf16.msra.mxu0 0
    %2874 = vmatprep.subr.bf16.mxu0 0
    %2875 = vmatpush2.bf16.msra.mxu0 0
    %2876 = vmatprep.subr.bf16.mxu0 0
    %2877 = vmatpush2.bf16.msra.mxu0 0
    %2878 = vmatprep.subr.bf16.mxu0 0
    %2879 = vmatpush2.bf16.msra.mxu0 0
    %2880 = vmatprep.subr.bf16.mxu0 0
    %2881 = vmatpush2.bf16.msra.mxu0 0
    %2882 = vmatprep.subr.bf16.mxu0 0
    %2883 = vmatpush2.bf16.msra.mxu0 0
    %2884 = vmatprep.subr.bf16.mxu0 0
    %2885 = vmatpush2.bf16.msra.mxu0 0
    %2886 = vmatprep.subr.bf16.mxu0 0
    %2887 = vmatpush2.bf16.msra.mxu0 0
    %2888 = vmatprep.mubr.bf16.mxu0 0
    %2889 = vmatmul.mubr.bf16.gmra.mxu0 %v2814
    %v2890 = vpop.f32.mrf.mxu0
    %v2891 = vadd.f32 0.0, %v2890
    %v2892 = vpop.f32.mrf.mxu0
    %v2893 = vadd.f32 0.0, %v2892
    %v2894 = vpop.f32.mrf.mxu0
    %v2895 = vpop.f32.mrf.mxu0
    %2896 = vdwg.mxu0
    %v2897 = vadd.f32 %v1981, %v2850
    %v2898 = vadd.f32 %v1983, %v2852
    %v2899 = vadd.f32 %v2054, %v2891
    %v2900 = vadd.f32 %v2056, %v2893
    %v2901 = vxor.u32 %v2897, 2147483648
    %v2902 = vxor.u32 %v2898, 2147483648
    %v2903 = vxor.u32 %v2899, 2147483648
    %v2904 = vmul.f32 %v2901, 1.442695
    %v2905 = vpow.pop %v2904
    %v2906 = vmul.f32 %v2902, 1.442695
    %v2907 = vpow.pop %v2906
    %v2908 = vmul.f32 %v2903, 1.442695
    %v2909 = vpow.pop %v2908
    %v2910 = vadd.f32 %v2905, 1.0
    %v2911 = vadd.f32 %v2907, 1.0
    %v2912 = vadd.f32 %v2909, 1.0
    %v2913 = vrcp.pop %v2910
    %v2914 = vmul.f32 1.0, %v2913
    %v2915 = vrcp.pop %v2911
    %v2916 = vmul.f32 1.0, %v2915
    %v2917 = vrcp.pop %v2912
    %v2918 = vmul.f32 1.0, %v2917
    %v2919 = vtanh.pop %v2900
    %v2920 = vmul.f32 %v2916, %v2811
    %v2921 = vmul.f32 %v2914, %v2919
    %v2922 = vadd.f32 %v2920, %v2921
    %v2923 = vtanh.pop %v2922
    %v2924 = vmul.f32 %v2918, %v2923
    %v2925 = vpack.c.bf16 %v2924, %v2924
    %2926 = vmatprep.subr.bf16.mxu0 %v2225
    %2927 = vmatpush1.bf16.msra.mxu0 %v2224
    %2928 = vmatprep.subr.bf16.mxu0 %v2221
    %2929 = vmatpush1.bf16.msra.mxu0 %v2220
    %2930 = vmatprep.subr.bf16.mxu0 %v2217
    %2931 = vmatpush1.bf16.msra.mxu0 %v2216
    %2932 = vmatprep.subr.bf16.mxu0 %v2213
    %2933 = vmatpush1.bf16.msra.mxu0 %v2212
    %2934 = vmatprep.subr.bf16.mxu0 %v2209
    %2935 = vmatpush1.bf16.msra.mxu0 %v2208
    %2936 = vmatprep.subr.bf16.mxu0 %v2205
    %2937 = vmatpush1.bf16.msra.mxu0 %v2204
    %2938 = vmatprep.subr.bf16.mxu0 %v2201
    %2939 = vmatpush1.bf16.msra.mxu0 %v2200
    %2940 = vmatprep.subr.bf16.mxu0 %v2197
    %2941 = vmatpush1.bf16.msra.mxu0 %v2196
    %2942 = vmatprep.subr.bf16.mxu0 0
    %2943 = vmatpush2.bf16.msra.mxu0 0
    %2944 = vmatprep.subr.bf16.mxu0 0
    %2945 = vmatpush2.bf16.msra.mxu0 0
    %2946 = vmatprep.subr.bf16.mxu0 0
    %2947 = vmatpush2.bf16.msra.mxu0 0
    %2948 = vmatprep.subr.bf16.mxu0 0
    %2949 = vmatpush2.bf16.msra.mxu0 0
    %2950 = vmatprep.subr.bf16.mxu0 0
    %2951 = vmatpush2.bf16.msra.mxu0 0
    %2952 = vmatprep.subr.bf16.mxu0 0
    %2953 = vmatpush2.bf16.msra.mxu0 0
    %2954 = vmatprep.subr.bf16.mxu0 0
    %2955 = vmatpush2.bf16.msra.mxu0 0
    %2956 = vmatprep.subr.bf16.mxu0 0
    %2957 = vmatpush2.bf16.msra.mxu0 0
    %2958 = vmatprep.mubr.bf16.mxu0 0
    %2959 = vmatmul.mubr.bf16.gmra.mxu0 %v2925
    %v2960 = vpop.f32.mrf.mxu0
    %v2961 = vadd.f32 0.0, %v2960
    %v2962 = vpop.f32.mrf.mxu0
    %v2963 = vadd.f32 0.0, %v2962
    %v2964 = vpop.f32.mrf.mxu0
    %v2965 = vpop.f32.mrf.mxu0
    %2966 = vdwg.mxu0
    %2967 = vmatprep.subr.bf16.mxu0 %v2227
    %2968 = vmatpush1.bf16.msra.mxu0 %v2226
    %2969 = vmatprep.subr.bf16.mxu0 %v2223
    %2970 = vmatpush1.bf16.msra.mxu0 %v2222
    %2971 = vmatprep.subr.bf16.mxu0 %v2219
    %2972 = vmatpush1.bf16.msra.mxu0 %v2218
    %2973 = vmatprep.subr.bf16.mxu0 %v2215
    %2974 = vmatpush1.bf16.msra.mxu0 %v2214
    %2975 = vmatprep.subr.bf16.mxu0 %v2211
    %2976 = vmatpush1.bf16.msra.mxu0 %v2210
    %2977 = vmatprep.subr.bf16.mxu0 %v2207
    %2978 = vmatpush1.bf16.msra.mxu0 %v2206
    %2979 = vmatprep.subr.bf16.mxu0 %v2203
    %2980 = vmatpush1.bf16.msra.mxu0 %v2202
    %2981 = vmatprep.subr.bf16.mxu0 %v2199
    %2982 = vmatpush1.bf16.msra.mxu0 %v2198
    %2983 = vmatprep.subr.bf16.mxu0 0
    %2984 = vmatpush2.bf16.msra.mxu0 0
    %2985 = vmatprep.subr.bf16.mxu0 0
    %2986 = vmatpush2.bf16.msra.mxu0 0
    %2987 = vmatprep.subr.bf16.mxu0 0
    %2988 = vmatpush2.bf16.msra.mxu0 0
    %2989 = vmatprep.subr.bf16.mxu0 0
    %2990 = vmatpush2.bf16.msra.mxu0 0
    %2991 = vmatprep.subr.bf16.mxu0 0
    %2992 = vmatpush2.bf16.msra.mxu0 0
    %2993 = vmatprep.subr.bf16.mxu0 0
    %2994 = vmatpush2.bf16.msra.mxu0 0
    %2995 = vmatprep.subr.bf16.mxu0 0
    %2996 = vmatpush2.bf16.msra.mxu0 0
    %2997 = vmatprep.subr.bf16.mxu0 0
    %2998 = vmatpush2.bf16.msra.mxu0 0
    %2999 = vmatprep.mubr.bf16.mxu0 0
    %3000 = vmatmul.mubr.bf16.gmra.mxu0 %v2925
    %v3001 = vpop.f32.mrf.mxu0
    %v3002 = vadd.f32 0.0, %v3001
    %v3003 = vpop.f32.mrf.mxu0
    %v3004 = vadd.f32 0.0, %v3003
    %v3005 = vpop.f32.mrf.mxu0
    %v3006 = vpop.f32.mrf.mxu0
    %3007 = vdwg.mxu0
    %v3008 = vadd.f32 %v1987, %v2961
    %v3009 = vadd.f32 %v1989, %v2963
    %v3010 = vadd.f32 %v2060, %v3002
    %v3011 = vadd.f32 %v2062, %v3004
    %v3012 = vxor.u32 %v3008, 2147483648
    %v3013 = vxor.u32 %v3009, 2147483648
    %v3014 = vxor.u32 %v3010, 2147483648
    %v3015 = vmul.f32 %v3012, 1.442695
    %v3016 = vpow.pop %v3015
    %v3017 = vmul.f32 %v3013, 1.442695
    %v3018 = vpow.pop %v3017
    %v3019 = vmul.f32 %v3014, 1.442695
    %v3020 = vpow.pop %v3019
    %v3021 = vadd.f32 %v3016, 1.0
    %v3022 = vadd.f32 %v3018, 1.0
    %v3023 = vadd.f32 %v3020, 1.0
    %v3024 = vrcp.pop %v3021
    %v3025 = vmul.f32 1.0, %v3024
    %v3026 = vrcp.pop %v3022
    %v3027 = vmul.f32 1.0, %v3026
    %v3028 = vrcp.pop %v3023
    %v3029 = vmul.f32 1.0, %v3028
    %v3030 = vtanh.pop %v3011
    %v3031 = vmul.f32 %v3027, %v2922
    %v3032 = vmul.f32 %v3025, %v3030
    %v3033 = vadd.f32 %v3031, %v3032
    %v3034 = vtanh.pop %v3033
    %v3035 = vmul.f32 %v3029, %v3034
    %v3036 = vpack.c.bf16 %v3035, %v3035
    %3037 = vmatprep.subr.bf16.mxu0 %v2225
    %3038 = vmatpush1.bf16.msra.mxu0 %v2224
    %3039 = vmatprep.subr.bf16.mxu0 %v2221
    %3040 = vmatpush1.bf16.msra.mxu0 %v2220
    %3041 = vmatprep.subr.bf16.mxu0 %v2217
    %3042 = vmatpush1.bf16.msra.mxu0 %v2216
    %3043 = vmatprep.subr.bf16.mxu0 %v2213
    %3044 = vmatpush1.bf16.msra.mxu0 %v2212
    %3045 = vmatprep.subr.bf16.mxu0 %v2209
    %3046 = vmatpush1.bf16.msra.mxu0 %v2208
    %3047 = vmatprep.subr.bf16.mxu0 %v2205
    %3048 = vmatpush1.bf16.msra.mxu0 %v2204
    %3049 = vmatprep.subr.bf16.mxu0 %v2201
    %3050 = vmatpush1.bf16.msra.mxu0 %v2200
    %3051 = vmatprep.subr.bf16.mxu0 %v2197
    %3052 = vmatpush1.bf16.msra.mxu0 %v2196
    %3053 = vmatprep.subr.bf16.mxu0 0
    %3054 = vmatpush2.bf16.msra.mxu0 0
    %3055 = vmatprep.subr.bf16.mxu0 0
    %3056 = vmatpush2.bf16.msra.mxu0 0
    %3057 = vmatprep.subr.bf16.mxu0 0
    %3058 = vmatpush2.bf16.msra.mxu0 0
    %3059 = vmatprep.subr.bf16.mxu0 0
    %3060 = vmatpush2.bf16.msra.mxu0 0
    %3061 = vmatprep.subr.bf16.mxu0 0
    %3062 = vmatpush2.bf16.msra.mxu0 0
    %3063 = vmatprep.subr.bf16.mxu0 0
    %3064 = vmatpush2.bf16.msra.mxu0 0
    %3065 = vmatprep.subr.bf16.mxu0 0
    %3066 = vmatpush2.bf16.msra.mxu0 0
    %3067 = vmatprep.subr.bf16.mxu0 0
    %3068 = vmatpush2.bf16.msra.mxu0 0
    %3069 = vmatprep.mubr.bf16.mxu0 0
    %3070 = vmatmul.mubr.bf16.gmra.mxu0 %v3036
    %v3071 = vpop.f32.mrf.mxu0
    %v3072 = vadd.f32 0.0, %v3071
    %v3073 = vpop.f32.mrf.mxu0
    %v3074 = vadd.f32 0.0, %v3073
    %v3075 = vpop.f32.mrf.mxu0
    %v3076 = vpop.f32.mrf.mxu0
    %3077 = vdwg.mxu0
    %3078 = vmatprep.subr.bf16.mxu0 %v2227
    %3079 = vmatpush1.bf16.msra.mxu0 %v2226
    %3080 = vmatprep.subr.bf16.mxu0 %v2223
    %3081 = vmatpush1.bf16.msra.mxu0 %v2222
    %3082 = vmatprep.subr.bf16.mxu0 %v2219
    %3083 = vmatpush1.bf16.msra.mxu0 %v2218
    %3084 = vmatprep.subr.bf16.mxu0 %v2215
    %3085 = vmatpush1.bf16.msra.mxu0 %v2214
    %3086 = vmatprep.subr.bf16.mxu0 %v2211
    %3087 = vmatpush1.bf16.msra.mxu0 %v2210
    %3088 = vmatprep.subr.bf16.mxu0 %v2207
    %3089 = vmatpush1.bf16.msra.mxu0 %v2206
    %3090 = vmatprep.subr.bf16.mxu0 %v2203
    %3091 = vmatpush1.bf16.msra.mxu0 %v2202
    %3092 = vmatprep.subr.bf16.mxu0 %v2199
    %3093 = vmatpush1.bf16.msra.mxu0 %v2198
    %3094 = vmatprep.subr.bf16.mxu0 0
    %3095 = vmatpush2.bf16.msra.mxu0 0
    %3096 = vmatprep.subr.bf16.mxu0 0
    %3097 = vmatpush2.bf16.msra.mxu0 0
    %3098 = vmatprep.subr.bf16.mxu0 0
    %3099 = vmatpush2.bf16.msra.mxu0 0
    %3100 = vmatprep.subr.bf16.mxu0 0
    %3101 = vmatpush2.bf16.msra.mxu0 0
    %3102 = vmatprep.subr.bf16.mxu0 0
    %3103 = vmatpush2.bf16.msra.mxu0 0
    %3104 = vmatprep.subr.bf16.mxu0 0
    %3105 = vmatpush2.bf16.msra.mxu0 0
    %3106 = vmatprep.subr.bf16.mxu0 0
    %3107 = vmatpush2.bf16.msra.mxu0 0
    %3108 = vmatprep.subr.bf16.mxu0 0
    %3109 = vmatpush2.bf16.msra.mxu0 0
    %3110 = vmatprep.mubr.bf16.mxu0 0
    %3111 = vmatmul.mubr.bf16.gmra.mxu0 %v3036
    %v3112 = vpop.f32.mrf.mxu0
    %v3113 = vadd.f32 0.0, %v3112
    %v3114 = vpop.f32.mrf.mxu0
    %v3115 = vadd.f32 0.0, %v3114
    %v3116 = vpop.f32.mrf.mxu0
    %v3117 = vpop.f32.mrf.mxu0
    %3118 = vdwg.mxu0
    %v3119 = vadd.f32 %v1991, %v3072
    %v3120 = vadd.f32 %v1993, %v3074
    %v3121 = vadd.f32 %v2064, %v3113
    %v3122 = vadd.f32 %v2066, %v3115
    %v3123 = vxor.u32 %v3119, 2147483648
    %v3124 = vxor.u32 %v3120, 2147483648
    %v3125 = vxor.u32 %v3121, 2147483648
    %v3126 = vmul.f32 %v3123, 1.442695
    %v3127 = vpow.pop %v3126
    %v3128 = vmul.f32 %v3124, 1.442695
    %v3129 = vpow.pop %v3128
    %v3130 = vmul.f32 %v3125, 1.442695
    %v3131 = vpow.pop %v3130
    %v3132 = vadd.f32 %v3127, 1.0
    %v3133 = vadd.f32 %v3129, 1.0
    %v3134 = vadd.f32 %v3131, 1.0
    %v3135 = vrcp.pop %v3132
    %v3136 = vmul.f32 1.0, %v3135
    %v3137 = vrcp.pop %v3133
    %v3138 = vmul.f32 1.0, %v3137
    %v3139 = vrcp.pop %v3134
    %v3140 = vmul.f32 1.0, %v3139
    %v3141 = vtanh.pop %v3122
    %v3142 = vmul.f32 %v3138, %v3033
    %v3143 = vmul.f32 %v3136, %v3141
    %v3144 = vadd.f32 %v3142, %v3143
    %v3145 = vtanh.pop %v3144
    %v3146 = vmul.f32 %v3140, %v3145
    %v3147 = vpack.c.bf16 %v3146, %v3146
    %v3148 = vld [vmem:[%s9] sm:$0xf]
    %v3149 = vld [vmem:[%s9 + $0x4] sm:$0xf]
    %v3150 = vld [vmem:[%s9 + $0x8] sm:$0xf]
    %v3151 = vld [vmem:[%s9 + $0xc] sm:$0xf]
    %v3152 = vld [vmem:[%s9 + $0x10] sm:$0xf]
    %v3153 = vld [vmem:[%s9 + $0x14] sm:$0xf]
    %v3154 = vld [vmem:[%s9 + $0x18] sm:$0xf]
    %v3155 = vld [vmem:[%s9 + $0x1c] sm:$0xf]
    %v3156 = vld [vmem:[%s9 + $0x20] sm:$0xf]
    %v3157 = vld [vmem:[%s9 + $0x24] sm:$0xf]
    %v3158 = vld [vmem:[%s9 + $0x28] sm:$0xf]
    %v3159 = vld [vmem:[%s9 + $0x2c] sm:$0xf]
    %v3160 = vld [vmem:[%s9 + $0x30] sm:$0xf]
    %v3161 = vld [vmem:[%s9 + $0x34] sm:$0xf]
    %v3162 = vld [vmem:[%s9 + $0x38] sm:$0xf]
    %v3163 = vld [vmem:[%s9 + $0x3c] sm:$0xf]
    %v3164 = vld [vmem:[%s10] sm:$0x1]
    %v3166 = vlaneseq
    %v3167 = vshrl.u32 %v3166, 7
    %v3168 = vsub.s32 0, %v3167
    %v3169 = vrot.slane %v3164, %v3168
    %v3187 = vunpack.c.l.b16 %v3148
    %v3188 = vunpack.c.l.b16 %v3149
    %v3189 = vunpack.c.l.b16 %v3150
    %v3190 = vunpack.c.l.b16 %v3151
    %v3191 = vunpack.c.l.b16 %v3152
    %v3192 = vunpack.c.l.b16 %v3153
    %v3193 = vunpack.c.l.b16 %v3154
    %v3194 = vunpack.c.l.b16 %v3155
    %v3195 = vunpack.c.l.b16 %v3156
    %v3196 = vunpack.c.l.b16 %v3157
    %v3197 = vunpack.c.l.b16 %v3158
    %v3198 = vunpack.c.l.b16 %v3159
    %v3199 = vunpack.c.l.b16 %v3160
    %v3200 = vunpack.c.l.b16 %v3161
    %v3201 = vunpack.c.l.b16 %v3162
    %v3202 = vunpack.c.l.b16 %v3163
    %v3203 = vpack.c.b16 %v3188, %v3187
    %v3204 = vpack.c.b16 %v3190, %v3189
    %v3205 = vpack.c.b16 %v3192, %v3191
    %v3206 = vpack.c.b16 %v3194, %v3193
    %v3207 = vpack.c.b16 %v3196, %v3195
    %v3208 = vpack.c.b16 %v3198, %v3197
    %v3209 = vpack.c.b16 %v3200, %v3199
    %v3210 = vpack.c.b16 %v3202, %v3201
    %3219 = vmatprep.subr.bf16.mxu0 0
    %3220 = vmatpush1.bf16.msra.mxu0 %v3210
    %3221 = vmatprep.subr.bf16.mxu0 0
    %3222 = vmatpush1.bf16.msra.mxu0 %v3209
    %3223 = vmatprep.subr.bf16.mxu0 0
    %3224 = vmatpush1.bf16.msra.mxu0 %v3208
    %3225 = vmatprep.subr.bf16.mxu0 0
    %3226 = vmatpush1.bf16.msra.mxu0 %v3207
    %3227 = vmatprep.subr.bf16.mxu0 0
    %3228 = vmatpush1.bf16.msra.mxu0 %v3206
    %3229 = vmatprep.subr.bf16.mxu0 0
    %3230 = vmatpush1.bf16.msra.mxu0 %v3205
    %3231 = vmatprep.subr.bf16.mxu0 0
    %3232 = vmatpush1.bf16.msra.mxu0 %v3204
    %3233 = vmatprep.subr.bf16.mxu0 0
    %3234 = vmatpush1.bf16.msra.mxu0 %v3203
    %3235 = vmatprep.subr.bf16.mxu0 0
    %3236 = vmatpush2.bf16.msra.mxu0 0
    %3237 = vmatprep.subr.bf16.mxu0 0
    %3238 = vmatpush2.bf16.msra.mxu0 0
    %3239 = vmatprep.subr.bf16.mxu0 0
    %3240 = vmatpush2.bf16.msra.mxu0 0
    %3241 = vmatprep.subr.bf16.mxu0 0
    %3242 = vmatpush2.bf16.msra.mxu0 0
    %3243 = vmatprep.subr.bf16.mxu0 0
    %3244 = vmatpush2.bf16.msra.mxu0 0
    %3245 = vmatprep.subr.bf16.mxu0 0
    %3246 = vmatpush2.bf16.msra.mxu0 0
    %3247 = vmatprep.subr.bf16.mxu0 0
    %3248 = vmatpush2.bf16.msra.mxu0 0
    %3249 = vmatprep.subr.bf16.mxu0 0
    %3250 = vmatpush2.bf16.msra.mxu0 0
    %3251 = vmatprep.mubr.bf16.mxu0 0
    %3252 = vmatmul.mubr.bf16.gmra.mxu0 %v3147
    %v3253 = vpop.f32.mrf.mxu0
    %v3254 = vadd.f32 %v3169, %v3253
    %v3255 = vpop.f32.mrf.mxu0
    %v3256 = vpop.f32.mrf.mxu0
    %v3257 = vpop.f32.mrf.mxu0
    %3258 = vdwg.mxu0
    %3259 = vst [vmem:[#allocation11] sm:$0xff] %v3254
    // Predicated region
    $region62: #{tpu_custom_call.1} parent=1 // pred_check
      _
    $region63: #{tpu_custom_call.1} parent=1 // pred_check_branch
      %3261 = sbr.rel (0) target = $region65
    $region64: #{tpu_custom_call.1} parent=1 // pred_region
      %s3263 = ssub.s32 128, 128
      %3264 = vsyncadd [#allocation5], %s3263
      %s3266 = sshll.u32 [#allocation11], 4
      %s3267 = int_to_ptr.vmem [resolvable:$true] %s3266
      %3269 = dma.vmem_to_hbm [thread:$0]  %s3267, 128, %s11, [#allocation5]
    $region65: #{tpu_custom_call.1} parent=1 // pred_fallthru
      _
    // Predicated region
    $region66: #{tpu_custom_call.1} parent=1 // pred_check
      _
    $region67: #{tpu_custom_call.1} parent=1 // pred_check_branch
      %3271 = sbr.rel (0) target = $region69
    $region68: #{tpu_custom_call.1} parent=1 // pred_region
      %3272 = dma.done [#allocation5], 128
    $region69: #{tpu_custom_call.1} parent=1 // pred_fallthru
      _
    %3273 = vsyncpa [#allocation4], 1
    %3274 = vsyncpa [#allocation7], 1
    %3275 = vsyncpa [#allocation10], 1
    %3276 = vsyncpa [#allocation5], 1

</llo_original>
